<compile_context>
chip_gen: v6e
topology: v6e:2x2x1
jax: 0.10.0
libtpu: 0.0.40
codegen_flags: <defaults>
</compile_context>

<pallas_src>
import jax
import jax.numpy as jnp
import numpy as np
from jax.experimental import pallas as pl
from jax.experimental.pallas import tpu as pltpu


# ----------------------------------------------------------------------------
# Host-side slab packing (done ONCE, outside the per-call path).
# ----------------------------------------------------------------------------
def _pack_rows(arrays):
    """Row-stack equal-width 2-D arrays, padding each block's row count to a
    multiple of 8 so every block starts on a sublane-tile boundary.
    Returns (slab, [(row_offset, true_rows), ...]) with static Python offsets."""
    blocks, offs, off = [], [], 0
    for a in arrays:
        r = a.shape[0]
        pad = (-r) % 8
        if pad:
            a = jnp.pad(a, ((0, pad), (0, 0)))
        blocks.append(a)
        offs.append((off, r))
        off += a.shape[0]
    return jnp.concatenate(blocks, axis=0), offs


def pack_params(params):
    """Pack the per-array parameter dict into two contiguous VMEM-friendly slabs."""
    H = params["lstm"][0]["wh4"].shape[0]
    FH = params["ff_first"][0].shape[1]
    L = len(params["lstm"])
    n_ff_hidden = len(params["ff_hidden"])

    # --- LSTM slab: width 4H.  Per layer: Wi4 [d_in,4H], Wh4 [H,4H], b4 [1,4H] ---
    lstm_arrays = []
    for layer in params["lstm"]:
        lstm_arrays += [layer["wi4"], layer["wh4"], layer["b4"]]
    lstm_slab, lstm_offs = _pack_rows(lstm_arrays)

    # --- FF slab: width FH.  w1h, w1c, b1, (W,b)*hidden, wout, bout(row-padded) ---
    w1h, w1c, b1 = params["ff_first"]
    ff_arrays = [w1h, w1c, b1]
    for w, b in params["ff_hidden"]:
        ff_arrays += [w, b]
    wout, bout = params["ff_out"]                       # [1,FH], [1,1]
    ff_arrays += [wout, jnp.pad(bout, ((0, 0), (0, FH - 1)))]
    ff_slab, ff_offs = _pack_rows(ff_arrays)

    return {
        "H": H, "FH": FH, "L": L, "n_ff_hidden": n_ff_hidden,
        "lstm_slab": lstm_slab, "lstm_offs": tuple(lstm_offs),
        "ff_slab": ff_slab, "ff_offs": tuple(ff_offs),
    }


# ----------------------------------------------------------------------------
# Fused forward kernel factory (static offsets baked into the closure).
# ----------------------------------------------------------------------------
def make_fused_kernel(seq_len, H, n_lstm_layers, n_ff_hidden, lstm_offs, ff_offs):
    L = n_lstm_layers

    def kernel(macro_ref, ret_ref, char_ref, lstm_ref, ff_ref, out_ref):
        # ---- unpack slabs with static, sublane-aligned ref slices ----
        def lblk(o_r):
            o, r = o_r
            return lstm_ref[o:o + r, :]

        def fblk(o_r):
            o, r = o_r
            return ff_ref[o:o + r, :]

        wi = [lblk(lstm_offs[3 * l + 0]) for l in range(L)]   # [d_in, 4H]
        wh = [lblk(lstm_offs[3 * l + 1]) for l in range(L)]   # [H, 4H]
        b4 = [lblk(lstm_offs[3 * l + 2]) for l in range(L)]   # [1, 4H]

        k = 0
        w1h = fblk(ff_offs[k]); k += 1                        # [H, FH]
        w1c = fblk(ff_offs[k]); k += 1                        # [C, FH]
        b1 = fblk(ff_offs[k]); k += 1                         # [1, FH]
        ff_hid = []
        for _ in range(n_ff_hidden):
            w = fblk(ff_offs[k]); k += 1                      # [FH, FH]
            b = fblk(ff_offs[k]); k += 1                      # [1, FH]
            ff_hid.append((w, b))
        wout = fblk(ff_offs[k]); k += 1                       # [1, FH]
        bout = fblk(ff_offs[k])[:, :1]                        # [1, 1]

        # -------------------- stacked LSTM (batch = 1) --------------------
        # Layer-0 input projection hoisted: one wide [T, D_in] @ [D_in, 4H] matmul.
        x_proj0 = jnp.dot(macro_ref[...], wi[0],
                          preferred_element_type=jnp.float32) + b4[0]      # [T, 4H]

        hs = [jnp.zeros((1, H), jnp.float32) for _ in range(L)]
        cs = [jnp.zeros((1, H), jnp.float32) for _ in range(L)]

        # Wavefront-interleaved recurrence: layer l+1's step t is computed directly
        # from the value h_t of layer l (no VMEM h_seq), so the serial dependency
        # chain is seq_len + L - 1 links instead of seq_len * L.
        # TODO(synk): for seq_len >~ 32 switch this full unroll to
        #             lax.fori_loop(..., unroll=4..8) with (hs, cs) as the carry.
        for t in range(seq_len):
            below = x_proj0[t:t + 1, :]        # layer-0 input, already projected+biased
            for l in range(L):
                rec = jnp.dot(hs[l], wh[l], preferred_element_type=jnp.float32)
                if l == 0:
                    pre = below + rec                                         # [1, 4H]
                else:
                    pre = (jnp.dot(below, wi[l],
                                   preferred_element_type=jnp.float32)
                           + b4[l] + rec)                                     # [1, 4H]
                # gate order [i, f, o, g]: one sigmoid over 3H lanes, one tanh over H.
                ifo = jax.nn.sigmoid(pre[:, :3 * H])
                g = jnp.tanh(pre[:, 3 * H:])
                i_g = ifo[:, :H]
                f_g = ifo[:, H:2 * H]
                o_g = ifo[:, 2 * H:3 * H]
                cs[l] = f_g * cs[l] + i_g * g
                hs[l] = o_g * jnp.tanh(cs[l])
                below = hs[l]                  # feeds layer l+1 at this same timestep
        h_final = hs[L - 1]                    # [1, H]

        # -------------------- FeedforwardNet head --------------------
        # concat replaced by split weight:
        #   relu([h|char] @ W1 + b1) == relu(char @ W1_c + (h @ W1_h + b1))
        hproj = jnp.dot(h_final, w1h, preferred_element_type=jnp.float32) + b1  # [1,FH]
        a = jnp.maximum(
            jnp.dot(char_ref[...], w1c, preferred_element_type=jnp.float32) + hproj,
            0.0)                                                                 # [N,FH]
        for w, b in ff_hid:
            a = jnp.maximum(
                jnp.dot(a, w, preferred_element_type=jnp.float32) + b, 0.0)

        # Output layer lane-dense: [1, FH] x [N, FH]^T -> [1, N].
        # TODO(synk): for large stock universes, pad N to a multiple of 128 (or keep
        #             activations [FH, N]) so this store is an unmasked full-lane vst.
        y = jax.lax.dot_general(
            wout, a, dimension_numbers=(((1,), (1,)), ((), ())),
            preferred_element_type=jnp.float32) + bout                           # [1,N]

        out_ref[...] = ret_ref[...] * y

    return kernel


# ----------------------------------------------------------------------------
# Wrapper: single pallas_call, 5 input DMAs, everything VMEM-resident, no grid.
# ----------------------------------------------------------------------------
def conditional_net_forward(packed, macro_x, char_x, ret_x):
    seq_len = macro_x.shape[0]
    n_stocks = char_x.shape[0]
    H, L = packed["H"], packed["L"]

    kernel = make_fused_kernel(seq_len, H, L, packed["n_ff_hidden"],
                               packed["lstm_offs"], packed["ff_offs"])
    vmem = pl.BlockSpec(memory_space=pltpu.MemorySpace.VMEM)

    out = pl.pallas_call(
        kernel,
        out_shape=jax.ShapeDtypeStruct((1, n_stocks), jnp.float32),
        in_specs=[vmem] * 5,
        out_specs=vmem,
    )(macro_x, ret_x[None, :], char_x, packed["lstm_slab"], packed["ff_slab"])
    return out[0]                                 # [n_stocks]


# ----------------------------------------------------------------------------
# Deterministic parameter init (PyTorch-style uniform(-1/sqrt(fan), 1/sqrt(fan))),
# generated directly in the fused layout. Gate order inside 4H blocks: [i, f, o, g].
# ----------------------------------------------------------------------------
def init_params(key, macro_size, char_size, lstm_hidden, lstm_layers,
                ff_hidden, ff_layers):
    assert ff_layers >= 1
    keys = iter(jax.random.split(key, 256))

    def u(shape, fan):
        bound = 1.0 / np.sqrt(fan)
        return jax.random.uniform(next(keys), shape, jnp.float32, -bound, bound)

    H = lstm_hidden
    lstm = []
    for l in range(lstm_layers):
        d_in = macro_size if l == 0 else H
        lstm.append({
            "wi4": u((d_in, 4 * H), H),
            "wh4": u((H, 4 * H), H),
            "b4": u((1, 4 * H), H),      # folds PyTorch's b_ih + b_hh into one
        })

    d_concat = H + char_size
    # first FF layer split: [H+C, FH] -> W1_h:[H,FH], W1_c:[C,FH]
    ff_first = (u((H, ff_hidden), d_concat),
                u((char_size, ff_hidden), d_concat),
                u((1, ff_hidden), d_concat))
    ff_hidden_layers = []
    for _ in range(ff_layers - 1):
        ff_hidden_layers.append((u((ff_hidden, ff_hidden), ff_hidden),
                                 u((1, ff_hidden), ff_hidden)))
    ff_out = (u((1, ff_hidden), ff_hidden),   # output weight stored as a row [1, FH]
              u((1, 1), ff_hidden))
    return {"lstm": lstm, "ff_first": ff_first,
            "ff_hidden": ff_hidden_layers, "ff_out": ff_out}


# ----------------------------------------------------------------------------
# Pure-JAX reference (same packed-layout parameters) for a numerical sanity check.
# ----------------------------------------------------------------------------
def reference_forward(params, macro_x, char_x, ret_x):
    H = params["lstm"][0]["wh4"].shape[0]
    x_seq = macro_x
    for layer in params["lstm"]:
        wi4, wh4, b4 = layer["wi4"], layer["wh4"], layer["b4"]
        h = jnp.zeros((1, H), jnp.float32)
        c = jnp.zeros((1, H), jnp.float32)
        outs = []
        for t in range(x_seq.shape[0]):
            pre = x_seq[t:t + 1] @ wi4 + h @ wh4 + b4
            i = jax.nn.sigmoid(pre[:, :H])
            f = jax.nn.sigmoid(pre[:, H:2 * H])
            o = jax.nn.sigmoid(pre[:, 2 * H:3 * H])
            g = jnp.tanh(pre[:, 3 * H:])
            c = f * c + i * g
            h = o * jnp.tanh(c)
            outs.append(h)
        x_seq = jnp.concatenate(outs, axis=0)
    h_final = x_seq[-1:]

    w1h, w1c, b1 = params["ff_first"]
    a = jnp.maximum(h_final @ w1h + char_x @ w1c + b1, 0.0)
    for w, b in params["ff_hidden"]:
        a = jnp.maximum(a @ w + b, 0.0)
    wout, bout = params["ff_out"]
    y = a @ wout.T + bout                         # [N, 1]
    return ret_x * y[:, 0]


if __name__ == "__main__":
    # Small, module-consistent shapes.
    seq_len, macro_size = 8, 4
    lstm_hidden, lstm_num_layers = 32, 2          # 4H = 128 lanes
    char_size = 4
    n_stocks = 8
    ff_hidden, ff_num_layers = 32, 2

    root = jax.random.PRNGKey(0)
    k_in, k_params = jax.random.split(root)
    k_macro, k_char, k_ret = jax.random.split(k_in, 3)

    macro_x = jax.random.normal(k_macro, (seq_len, macro_size), jnp.float32)
    char_x = jax.random.normal(k_char, (n_stocks, char_size), jnp.float32)
    ret_x = jax.random.normal(k_ret, (n_stocks,), jnp.float32)

    params = init_params(k_params, macro_size, char_size, lstm_hidden,
                         lstm_num_layers, ff_hidden, ff_num_layers)
    packed = pack_params(params)                  # one-time slab packing (5 DMAs/call)

    out = conditional_net_forward(packed, macro_x, char_x, ret_x)
    out = jax.block_until_ready(out)

    ref = reference_forward(params, macro_x, char_x, ret_x)
    np.testing.assert_allclose(np.asarray(out), np.asarray(ref), rtol=2e-3, atol=2e-3)

    print("KERNEL_OK")
</pallas_src>

<mosaic_0001>
module attributes {stable_mosaic.version = 11 : i64} {
  func.func @kernel(%arg0: memref<8x4xf32, #tpu.memory_space<vmem>>, %arg1: memref<1x8xf32, #tpu.memory_space<vmem>>, %arg2: memref<8x4xf32, #tpu.memory_space<vmem>>, %arg3: memref<120x128xf32, #tpu.memory_space<vmem>>, %arg4: memref<104x32xf32, #tpu.memory_space<vmem>>, %arg5: memref<1x8xf32, #tpu.memory_space<vmem>>) attributes {dimension_semantics = [], scalar_prefetch = 0 : i64, scratch_operands = 0 : i64, tpu.core_type = #tpu.core_type<tc>} {
    %c0 = arith.constant 0 : index
    %c0_0 = arith.constant 0 : index
    %0 = vector.load %arg3[%c0, %c0_0] : memref<120x128xf32, #tpu.memory_space<vmem>>, vector<4x128xf32>
    %c48 = arith.constant 48 : index
    %c0_1 = arith.constant 0 : index
    %1 = vector.load %arg3[%c48, %c0_1] : memref<120x128xf32, #tpu.memory_space<vmem>>, vector<32x128xf32>
    %c8 = arith.constant 8 : index
    %c0_2 = arith.constant 0 : index
    %2 = vector.load %arg3[%c8, %c0_2] : memref<120x128xf32, #tpu.memory_space<vmem>>, vector<32x128xf32>
    %c80 = arith.constant 80 : index
    %c0_3 = arith.constant 0 : index
    %3 = vector.load %arg3[%c80, %c0_3] : memref<120x128xf32, #tpu.memory_space<vmem>>, vector<32x128xf32>
    %c40 = arith.constant 40 : index
    %c0_4 = arith.constant 0 : index
    %4 = vector.load %arg3[%c40, %c0_4] : memref<120x128xf32, #tpu.memory_space<vmem>>, vector<1x128xf32>
    %c112 = arith.constant 112 : index
    %c0_5 = arith.constant 0 : index
    %5 = vector.load %arg3[%c112, %c0_5] : memref<120x128xf32, #tpu.memory_space<vmem>>, vector<1x128xf32>
    %c0_6 = arith.constant 0 : index
    %c0_7 = arith.constant 0 : index
    %6 = vector.load %arg4[%c0_6, %c0_7] : memref<104x32xf32, #tpu.memory_space<vmem>>, vector<32x32xf32>
    %c32 = arith.constant 32 : index
    %c0_8 = arith.constant 0 : index
    %7 = vector.load %arg4[%c32, %c0_8] : memref<104x32xf32, #tpu.memory_space<vmem>>, vector<4x32xf32>
    %c40_9 = arith.constant 40 : index
    %c0_10 = arith.constant 0 : index
    %8 = vector.load %arg4[%c40_9, %c0_10] : memref<104x32xf32, #tpu.memory_space<vmem>>, vector<1x32xf32>
    %c48_11 = arith.constant 48 : index
    %c0_12 = arith.constant 0 : index
    %9 = vector.load %arg4[%c48_11, %c0_12] : memref<104x32xf32, #tpu.memory_space<vmem>>, vector<32x32xf32>
    %c80_13 = arith.constant 80 : index
    %c0_14 = arith.constant 0 : index
    %10 = vector.load %arg4[%c80_13, %c0_14] : memref<104x32xf32, #tpu.memory_space<vmem>>, vector<1x32xf32>
    %c88 = arith.constant 88 : index
    %c0_15 = arith.constant 0 : index
    %11 = vector.load %arg4[%c88, %c0_15] : memref<104x32xf32, #tpu.memory_space<vmem>>, vector<1x32xf32>
    %c96 = arith.constant 96 : index
    %c0_16 = arith.constant 0 : index
    %12 = vector.load %arg4[%c96, %c0_16] : memref<104x32xf32, #tpu.memory_space<vmem>>, vector<1x32xf32>
    %13 = vector.extract_strided_slice %12 {offsets = [0, 0], sizes = [1, 1], strides = [1, 1]} : vector<1x32xf32> to vector<1x1xf32>
    %c0_17 = arith.constant 0 : index
    %c0_18 = arith.constant 0 : index
    %14 = vector.load %arg0[%c0_17, %c0_18] : memref<8x4xf32, #tpu.memory_space<vmem>>, vector<8x4xf32>
    %cst = arith.constant dense<0.000000e+00> : vector<8x128xf32>
    %15 = tpu.matmul %14, %0, %cst {dimension_numbers = #tpu.dot_dimension_numbers<[1], [0], [0], [1], [0, 0, 1, 1], [], []>} : vector<8x4xf32>, vector<4x128xf32>, vector<8x128xf32> -> vector<8x128xf32>
    %16 = vector.broadcast %4 : vector<1x128xf32> to vector<8x128xf32>
    %17 = arith.addf %15, %16 : vector<8x128xf32>
    %cst_19 = arith.constant 0.000000e+00 : f32
    %18 = vector.broadcast %cst_19 : f32 to vector<1x32xf32>
    %cst_20 = arith.constant 0.000000e+00 : f32
    %19 = vector.broadcast %cst_20 : f32 to vector<1x32xf32>
    %cst_21 = arith.constant 0.000000e+00 : f32
    %20 = vector.broadcast %cst_21 : f32 to vector<1x32xf32>
    %cst_22 = arith.constant 0.000000e+00 : f32
    %21 = vector.broadcast %cst_22 : f32 to vector<1x32xf32>
    %22 = vector.extract_strided_slice %17 {offsets = [0, 0], sizes = [1, 128], strides = [1, 1]} : vector<8x128xf32> to vector<1x128xf32>
    %cst_23 = arith.constant dense<0.000000e+00> : vector<1x128xf32>
    %23 = tpu.matmul %18, %2, %cst_23 {dimension_numbers = #tpu.dot_dimension_numbers<[1], [0], [0], [1], [0, 0, 1, 1], [], []>} : vector<1x32xf32>, vector<32x128xf32>, vector<1x128xf32> -> vector<1x128xf32>
    %24 = arith.addf %22, %23 : vector<1x128xf32>
    %25 = vector.extract_strided_slice %24 {offsets = [0, 0], sizes = [1, 96], strides = [1, 1]} : vector<1x128xf32> to vector<1x96xf32>
    %26 = arith.negf %25 : vector<1x96xf32>
    %27 = math.exp %26 : vector<1x96xf32>
    %cst_24 = arith.constant 1.000000e+00 : f32
    %28 = vector.broadcast %cst_24 : f32 to vector<1x96xf32>
    %29 = arith.addf %28, %27 : vector<1x96xf32>
    %30 = arith.divf %28, %29 : vector<1x96xf32>
    %31 = vector.extract_strided_slice %24 {offsets = [0, 96], sizes = [1, 32], strides = [1, 1]} : vector<1x128xf32> to vector<1x32xf32>
    %32 = math.tanh %31 : vector<1x32xf32>
    %33 = vector.extract_strided_slice %30 {offsets = [0, 0], sizes = [1, 32], strides = [1, 1]} : vector<1x96xf32> to vector<1x32xf32>
    %34 = vector.extract_strided_slice %30 {offsets = [0, 32], sizes = [1, 32], strides = [1, 1]} : vector<1x96xf32> to vector<1x32xf32>
    %35 = vector.extract_strided_slice %30 {offsets = [0, 64], sizes = [1, 32], strides = [1, 1]} : vector<1x96xf32> to vector<1x32xf32>
    %36 = arith.mulf %34, %20 : vector<1x32xf32>
    %37 = arith.mulf %33, %32 : vector<1x32xf32>
    %38 = arith.addf %36, %37 : vector<1x32xf32>
    %39 = math.tanh %38 : vector<1x32xf32>
    %40 = arith.mulf %35, %39 : vector<1x32xf32>
    %cst_25 = arith.constant dense<0.000000e+00> : vector<1x128xf32>
    %41 = tpu.matmul %19, %3, %cst_25 {dimension_numbers = #tpu.dot_dimension_numbers<[1], [0], [0], [1], [0, 0, 1, 1], [], []>} : vector<1x32xf32>, vector<32x128xf32>, vector<1x128xf32> -> vector<1x128xf32>
    %cst_26 = arith.constant dense<0.000000e+00> : vector<1x128xf32>
    %42 = tpu.matmul %40, %1, %cst_26 {dimension_numbers = #tpu.dot_dimension_numbers<[1], [0], [0], [1], [0, 0, 1, 1], [], []>} : vector<1x32xf32>, vector<32x128xf32>, vector<1x128xf32> -> vector<1x128xf32>
    %43 = arith.addf %42, %5 : vector<1x128xf32>
    %44 = arith.addf %43, %41 : vector<1x128xf32>
    %45 = vector.extract_strided_slice %44 {offsets = [0, 0], sizes = [1, 96], strides = [1, 1]} : vector<1x128xf32> to vector<1x96xf32>
    %46 = arith.negf %45 : vector<1x96xf32>
    %47 = math.exp %46 : vector<1x96xf32>
    %cst_27 = arith.constant 1.000000e+00 : f32
    %48 = vector.broadcast %cst_27 : f32 to vector<1x96xf32>
    %49 = arith.addf %48, %47 : vector<1x96xf32>
    %50 = arith.divf %48, %49 : vector<1x96xf32>
    %51 = vector.extract_strided_slice %44 {offsets = [0, 96], sizes = [1, 32], strides = [1, 1]} : vector<1x128xf32> to vector<1x32xf32>
    %52 = math.tanh %51 : vector<1x32xf32>
    %53 = vector.extract_strided_slice %50 {offsets = [0, 0], sizes = [1, 32], strides = [1, 1]} : vector<1x96xf32> to vector<1x32xf32>
    %54 = vector.extract_strided_slice %50 {offsets = [0, 32], sizes = [1, 32], strides = [1, 1]} : vector<1x96xf32> to vector<1x32xf32>
    %55 = vector.extract_strided_slice %50 {offsets = [0, 64], sizes = [1, 32], strides = [1, 1]} : vector<1x96xf32> to vector<1x32xf32>
    %56 = arith.mulf %54, %21 : vector<1x32xf32>
    %57 = arith.mulf %53, %52 : vector<1x32xf32>
    %58 = arith.addf %56, %57 : vector<1x32xf32>
    %59 = math.tanh %58 : vector<1x32xf32>
    %60 = arith.mulf %55, %59 : vector<1x32xf32>
    %61 = vector.extract_strided_slice %17 {offsets = [1, 0], sizes = [1, 128], strides = [1, 1]} : vector<8x128xf32> to vector<1x128xf32>
    %cst_28 = arith.constant dense<0.000000e+00> : vector<1x128xf32>
    %62 = tpu.matmul %40, %2, %cst_28 {dimension_numbers = #tpu.dot_dimension_numbers<[1], [0], [0], [1], [0, 0, 1, 1], [], []>} : vector<1x32xf32>, vector<32x128xf32>, vector<1x128xf32> -> vector<1x128xf32>
    %63 = arith.addf %61, %62 : vector<1x128xf32>
    %64 = vector.extract_strided_slice %63 {offsets = [0, 0], sizes = [1, 96], strides = [1, 1]} : vector<1x128xf32> to vector<1x96xf32>
    %65 = arith.negf %64 : vector<1x96xf32>
    %66 = math.exp %65 : vector<1x96xf32>
    %cst_29 = arith.constant 1.000000e+00 : f32
    %67 = vector.broadcast %cst_29 : f32 to vector<1x96xf32>
    %68 = arith.addf %67, %66 : vector<1x96xf32>
    %69 = arith.divf %67, %68 : vector<1x96xf32>
    %70 = vector.extract_strided_slice %63 {offsets = [0, 96], sizes = [1, 32], strides = [1, 1]} : vector<1x128xf32> to vector<1x32xf32>
    %71 = math.tanh %70 : vector<1x32xf32>
    %72 = vector.extract_strided_slice %69 {offsets = [0, 0], sizes = [1, 32], strides = [1, 1]} : vector<1x96xf32> to vector<1x32xf32>
    %73 = vector.extract_strided_slice %69 {offsets = [0, 32], sizes = [1, 32], strides = [1, 1]} : vector<1x96xf32> to vector<1x32xf32>
    %74 = vector.extract_strided_slice %69 {offsets = [0, 64], sizes = [1, 32], strides = [1, 1]} : vector<1x96xf32> to vector<1x32xf32>
    %75 = arith.mulf %73, %38 : vector<1x32xf32>
    %76 = arith.mulf %72, %71 : vector<1x32xf32>
    %77 = arith.addf %75, %76 : vector<1x32xf32>
    %78 = math.tanh %77 : vector<1x32xf32>
    %79 = arith.mulf %74, %78 : vector<1x32xf32>
    %cst_30 = arith.constant dense<0.000000e+00> : vector<1x128xf32>
    %80 = tpu.matmul %60, %3, %cst_30 {dimension_numbers = #tpu.dot_dimension_numbers<[1], [0], [0], [1], [0, 0, 1, 1], [], []>} : vector<1x32xf32>, vector<32x128xf32>, vector<1x128xf32> -> vector<1x128xf32>
    %cst_31 = arith.constant dense<0.000000e+00> : vector<1x128xf32>
    %81 = tpu.matmul %79, %1, %cst_31 {dimension_numbers = #tpu.dot_dimension_numbers<[1], [0], [0], [1], [0, 0, 1, 1], [], []>} : vector<1x32xf32>, vector<32x128xf32>, vector<1x128xf32> -> vector<1x128xf32>
    %82 = arith.addf %81, %5 : vector<1x128xf32>
    %83 = arith.addf %82, %80 : vector<1x128xf32>
    %84 = vector.extract_strided_slice %83 {offsets = [0, 0], sizes = [1, 96], strides = [1, 1]} : vector<1x128xf32> to vector<1x96xf32>
    %85 = arith.negf %84 : vector<1x96xf32>
    %86 = math.exp %85 : vector<1x96xf32>
    %cst_32 = arith.constant 1.000000e+00 : f32
    %87 = vector.broadcast %cst_32 : f32 to vector<1x96xf32>
    %88 = arith.addf %87, %86 : vector<1x96xf32>
    %89 = arith.divf %87, %88 : vector<1x96xf32>
    %90 = vector.extract_strided_slice %83 {offsets = [0, 96], sizes = [1, 32], strides = [1, 1]} : vector<1x128xf32> to vector<1x32xf32>
    %91 = math.tanh %90 : vector<1x32xf32>
    %92 = vector.extract_strided_slice %89 {offsets = [0, 0], sizes = [1, 32], strides = [1, 1]} : vector<1x96xf32> to vector<1x32xf32>
    %93 = vector.extract_strided_slice %89 {offsets = [0, 32], sizes = [1, 32], strides = [1, 1]} : vector<1x96xf32> to vector<1x32xf32>
    %94 = vector.extract_strided_slice %89 {offsets = [0, 64], sizes = [1, 32], strides = [1, 1]} : vector<1x96xf32> to vector<1x32xf32>
    %95 = arith.mulf %93, %58 : vector<1x32xf32>
    %96 = arith.mulf %92, %91 : vector<1x32xf32>
    %97 = arith.addf %95, %96 : vector<1x32xf32>
    %98 = math.tanh %97 : vector<1x32xf32>
    %99 = arith.mulf %94, %98 : vector<1x32xf32>
    %100 = vector.extract_strided_slice %17 {offsets = [2, 0], sizes = [1, 128], strides = [1, 1]} : vector<8x128xf32> to vector<1x128xf32>
    %cst_33 = arith.constant dense<0.000000e+00> : vector<1x128xf32>
    %101 = tpu.matmul %79, %2, %cst_33 {dimension_numbers = #tpu.dot_dimension_numbers<[1], [0], [0], [1], [0, 0, 1, 1], [], []>} : vector<1x32xf32>, vector<32x128xf32>, vector<1x128xf32> -> vector<1x128xf32>
    %102 = arith.addf %100, %101 : vector<1x128xf32>
    %103 = vector.extract_strided_slice %102 {offsets = [0, 0], sizes = [1, 96], strides = [1, 1]} : vector<1x128xf32> to vector<1x96xf32>
    %104 = arith.negf %103 : vector<1x96xf32>
    %105 = math.exp %104 : vector<1x96xf32>
    %cst_34 = arith.constant 1.000000e+00 : f32
    %106 = vector.broadcast %cst_34 : f32 to vector<1x96xf32>
    %107 = arith.addf %106, %105 : vector<1x96xf32>
    %108 = arith.divf %106, %107 : vector<1x96xf32>
    %109 = vector.extract_strided_slice %102 {offsets = [0, 96], sizes = [1, 32], strides = [1, 1]} : vector<1x128xf32> to vector<1x32xf32>
    %110 = math.tanh %109 : vector<1x32xf32>
    %111 = vector.extract_strided_slice %108 {offsets = [0, 0], sizes = [1, 32], strides = [1, 1]} : vector<1x96xf32> to vector<1x32xf32>
    %112 = vector.extract_strided_slice %108 {offsets = [0, 32], sizes = [1, 32], strides = [1, 1]} : vector<1x96xf32> to vector<1x32xf32>
    %113 = vector.extract_strided_slice %108 {offsets = [0, 64], sizes = [1, 32], strides = [1, 1]} : vector<1x96xf32> to vector<1x32xf32>
    %114 = arith.mulf %112, %77 : vector<1x32xf32>
    %115 = arith.mulf %111, %110 : vector<1x32xf32>
    %116 = arith.addf %114, %115 : vector<1x32xf32>
    %117 = math.tanh %116 : vector<1x32xf32>
    %118 = arith.mulf %113, %117 : vector<1x32xf32>
    %cst_35 = arith.constant dense<0.000000e+00> : vector<1x128xf32>
    %119 = tpu.matmul %99, %3, %cst_35 {dimension_numbers = #tpu.dot_dimension_numbers<[1], [0], [0], [1], [0, 0, 1, 1], [], []>} : vector<1x32xf32>, vector<32x128xf32>, vector<1x128xf32> -> vector<1x128xf32>
    %cst_36 = arith.constant dense<0.000000e+00> : vector<1x128xf32>
    %120 = tpu.matmul %118, %1, %cst_36 {dimension_numbers = #tpu.dot_dimension_numbers<[1], [0], [0], [1], [0, 0, 1, 1], [], []>} : vector<1x32xf32>, vector<32x128xf32>, vector<1x128xf32> -> vector<1x128xf32>
    %121 = arith.addf %120, %5 : vector<1x128xf32>
    %122 = arith.addf %121, %119 : vector<1x128xf32>
    %123 = vector.extract_strided_slice %122 {offsets = [0, 0], sizes = [1, 96], strides = [1, 1]} : vector<1x128xf32> to vector<1x96xf32>
    %124 = arith.negf %123 : vector<1x96xf32>
    %125 = math.exp %124 : vector<1x96xf32>
    %cst_37 = arith.constant 1.000000e+00 : f32
    %126 = vector.broadcast %cst_37 : f32 to vector<1x96xf32>
    %127 = arith.addf %126, %125 : vector<1x96xf32>
    %128 = arith.divf %126, %127 : vector<1x96xf32>
    %129 = vector.extract_strided_slice %122 {offsets = [0, 96], sizes = [1, 32], strides = [1, 1]} : vector<1x128xf32> to vector<1x32xf32>
    %130 = math.tanh %129 : vector<1x32xf32>
    %131 = vector.extract_strided_slice %128 {offsets = [0, 0], sizes = [1, 32], strides = [1, 1]} : vector<1x96xf32> to vector<1x32xf32>
    %132 = vector.extract_strided_slice %128 {offsets = [0, 32], sizes = [1, 32], strides = [1, 1]} : vector<1x96xf32> to vector<1x32xf32>
    %133 = vector.extract_strided_slice %128 {offsets = [0, 64], sizes = [1, 32], strides = [1, 1]} : vector<1x96xf32> to vector<1x32xf32>
    %134 = arith.mulf %132, %97 : vector<1x32xf32>
    %135 = arith.mulf %131, %130 : vector<1x32xf32>
    %136 = arith.addf %134, %135 : vector<1x32xf32>
    %137 = math.tanh %136 : vector<1x32xf32>
    %138 = arith.mulf %133, %137 : vector<1x32xf32>
    %139 = vector.extract_strided_slice %17 {offsets = [3, 0], sizes = [1, 128], strides = [1, 1]} : vector<8x128xf32> to vector<1x128xf32>
    %cst_38 = arith.constant dense<0.000000e+00> : vector<1x128xf32>
    %140 = tpu.matmul %118, %2, %cst_38 {dimension_numbers = #tpu.dot_dimension_numbers<[1], [0], [0], [1], [0, 0, 1, 1], [], []>} : vector<1x32xf32>, vector<32x128xf32>, vector<1x128xf32> -> vector<1x128xf32>
    %141 = arith.addf %139, %140 : vector<1x128xf32>
    %142 = vector.extract_strided_slice %141 {offsets = [0, 0], sizes = [1, 96], strides = [1, 1]} : vector<1x128xf32> to vector<1x96xf32>
    %143 = arith.negf %142 : vector<1x96xf32>
    %144 = math.exp %143 : vector<1x96xf32>
    %cst_39 = arith.constant 1.000000e+00 : f32
    %145 = vector.broadcast %cst_39 : f32 to vector<1x96xf32>
    %146 = arith.addf %145, %144 : vector<1x96xf32>
    %147 = arith.divf %145, %146 : vector<1x96xf32>
    %148 = vector.extract_strided_slice %141 {offsets = [0, 96], sizes = [1, 32], strides = [1, 1]} : vector<1x128xf32> to vector<1x32xf32>
    %149 = math.tanh %148 : vector<1x32xf32>
    %150 = vector.extract_strided_slice %147 {offsets = [0, 0], sizes = [1, 32], strides = [1, 1]} : vector<1x96xf32> to vector<1x32xf32>
    %151 = vector.extract_strided_slice %147 {offsets = [0, 32], sizes = [1, 32], strides = [1, 1]} : vector<1x96xf32> to vector<1x32xf32>
    %152 = vector.extract_strided_slice %147 {offsets = [0, 64], sizes = [1, 32], strides = [1, 1]} : vector<1x96xf32> to vector<1x32xf32>
    %153 = arith.mulf %151, %116 : vector<1x32xf32>
    %154 = arith.mulf %150, %149 : vector<1x32xf32>
    %155 = arith.addf %153, %154 : vector<1x32xf32>
    %156 = math.tanh %155 : vector<1x32xf32>
    %157 = arith.mulf %152, %156 : vector<1x32xf32>
    %cst_40 = arith.constant dense<0.000000e+00> : vector<1x128xf32>
    %158 = tpu.matmul %138, %3, %cst_40 {dimension_numbers = #tpu.dot_dimension_numbers<[1], [0], [0], [1], [0, 0, 1, 1], [], []>} : vector<1x32xf32>, vector<32x128xf32>, vector<1x128xf32> -> vector<1x128xf32>
    %cst_41 = arith.constant dense<0.000000e+00> : vector<1x128xf32>
    %159 = tpu.matmul %157, %1, %cst_41 {dimension_numbers = #tpu.dot_dimension_numbers<[1], [0], [0], [1], [0, 0, 1, 1], [], []>} : vector<1x32xf32>, vector<32x128xf32>, vector<1x128xf32> -> vector<1x128xf32>
    %160 = arith.addf %159, %5 : vector<1x128xf32>
    %161 = arith.addf %160, %158 : vector<1x128xf32>
    %162 = vector.extract_strided_slice %161 {offsets = [0, 0], sizes = [1, 96], strides = [1, 1]} : vector<1x128xf32> to vector<1x96xf32>
    %163 = arith.negf %162 : vector<1x96xf32>
    %164 = math.exp %163 : vector<1x96xf32>
    %cst_42 = arith.constant 1.000000e+00 : f32
    %165 = vector.broadcast %cst_42 : f32 to vector<1x96xf32>
    %166 = arith.addf %165, %164 : vector<1x96xf32>
    %167 = arith.divf %165, %166 : vector<1x96xf32>
    %168 = vector.extract_strided_slice %161 {offsets = [0, 96], sizes = [1, 32], strides = [1, 1]} : vector<1x128xf32> to vector<1x32xf32>
    %169 = math.tanh %168 : vector<1x32xf32>
    %170 = vector.extract_strided_slice %167 {offsets = [0, 0], sizes = [1, 32], strides = [1, 1]} : vector<1x96xf32> to vector<1x32xf32>
    %171 = vector.extract_strided_slice %167 {offsets = [0, 32], sizes = [1, 32], strides = [1, 1]} : vector<1x96xf32> to vector<1x32xf32>
    %172 = vector.extract_strided_slice %167 {offsets = [0, 64], sizes = [1, 32], strides = [1, 1]} : vector<1x96xf32> to vector<1x32xf32>
    %173 = arith.mulf %171, %136 : vector<1x32xf32>
    %174 = arith.mulf %170, %169 : vector<1x32xf32>
    %175 = arith.addf %173, %174 : vector<1x32xf32>
    %176 = math.tanh %175 : vector<1x32xf32>
    %177 = arith.mulf %172, %176 : vector<1x32xf32>
    %178 = vector.extract_strided_slice %17 {offsets = [4, 0], sizes = [1, 128], strides = [1, 1]} : vector<8x128xf32> to vector<1x128xf32>
    %cst_43 = arith.constant dense<0.000000e+00> : vector<1x128xf32>
    %179 = tpu.matmul %157, %2, %cst_43 {dimension_numbers = #tpu.dot_dimension_numbers<[1], [0], [0], [1], [0, 0, 1, 1], [], []>} : vector<1x32xf32>, vector<32x128xf32>, vector<1x128xf32> -> vector<1x128xf32>
    %180 = arith.addf %178, %179 : vector<1x128xf32>
    %181 = vector.extract_strided_slice %180 {offsets = [0, 0], sizes = [1, 96], strides = [1, 1]} : vector<1x128xf32> to vector<1x96xf32>
    %182 = arith.negf %181 : vector<1x96xf32>
    %183 = math.exp %182 : vector<1x96xf32>
    %cst_44 = arith.constant 1.000000e+00 : f32
    %184 = vector.broadcast %cst_44 : f32 to vector<1x96xf32>
    %185 = arith.addf %184, %183 : vector<1x96xf32>
    %186 = arith.divf %184, %185 : vector<1x96xf32>
    %187 = vector.extract_strided_slice %180 {offsets = [0, 96], sizes = [1, 32], strides = [1, 1]} : vector<1x128xf32> to vector<1x32xf32>
    %188 = math.tanh %187 : vector<1x32xf32>
    %189 = vector.extract_strided_slice %186 {offsets = [0, 0], sizes = [1, 32], strides = [1, 1]} : vector<1x96xf32> to vector<1x32xf32>
    %190 = vector.extract_strided_slice %186 {offsets = [0, 32], sizes = [1, 32], strides = [1, 1]} : vector<1x96xf32> to vector<1x32xf32>
    %191 = vector.extract_strided_slice %186 {offsets = [0, 64], sizes = [1, 32], strides = [1, 1]} : vector<1x96xf32> to vector<1x32xf32>
    %192 = arith.mulf %190, %155 : vector<1x32xf32>
    %193 = arith.mulf %189, %188 : vector<1x32xf32>
    %194 = arith.addf %192, %193 : vector<1x32xf32>
    %195 = math.tanh %194 : vector<1x32xf32>
    %196 = arith.mulf %191, %195 : vector<1x32xf32>
    %cst_45 = arith.constant dense<0.000000e+00> : vector<1x128xf32>
    %197 = tpu.matmul %177, %3, %cst_45 {dimension_numbers = #tpu.dot_dimension_numbers<[1], [0], [0], [1], [0, 0, 1, 1], [], []>} : vector<1x32xf32>, vector<32x128xf32>, vector<1x128xf32> -> vector<1x128xf32>
    %cst_46 = arith.constant dense<0.000000e+00> : vector<1x128xf32>
    %198 = tpu.matmul %196, %1, %cst_46 {dimension_numbers = #tpu.dot_dimension_numbers<[1], [0], [0], [1], [0, 0, 1, 1], [], []>} : vector<1x32xf32>, vector<32x128xf32>, vector<1x128xf32> -> vector<1x128xf32>
    %199 = arith.addf %198, %5 : vector<1x128xf32>
    %200 = arith.addf %199, %197 : vector<1x128xf32>
    %201 = vector.extract_strided_slice %200 {offsets = [0, 0], sizes = [1, 96], strides = [1, 1]} : vector<1x128xf32> to vector<1x96xf32>
    %202 = arith.negf %201 : vector<1x96xf32>
    %203 = math.exp %202 : vector<1x96xf32>
    %cst_47 = arith.constant 1.000000e+00 : f32
    %204 = vector.broadcast %cst_47 : f32 to vector<1x96xf32>
    %205 = arith.addf %204, %203 : vector<1x96xf32>
    %206 = arith.divf %204, %205 : vector<1x96xf32>
    %207 = vector.extract_strided_slice %200 {offsets = [0, 96], sizes = [1, 32], strides = [1, 1]} : vector<1x128xf32> to vector<1x32xf32>
    %208 = math.tanh %207 : vector<1x32xf32>
    %209 = vector.extract_strided_slice %206 {offsets = [0, 0], sizes = [1, 32], strides = [1, 1]} : vector<1x96xf32> to vector<1x32xf32>
    %210 = vector.extract_strided_slice %206 {offsets = [0, 32], sizes = [1, 32], strides = [1, 1]} : vector<1x96xf32> to vector<1x32xf32>
    %211 = vector.extract_strided_slice %206 {offsets = [0, 64], sizes = [1, 32], strides = [1, 1]} : vector<1x96xf32> to vector<1x32xf32>
    %212 = arith.mulf %210, %175 : vector<1x32xf32>
    %213 = arith.mulf %209, %208 : vector<1x32xf32>
    %214 = arith.addf %212, %213 : vector<1x32xf32>
    %215 = math.tanh %214 : vector<1x32xf32>
    %216 = arith.mulf %211, %215 : vector<1x32xf32>
    %217 = vector.extract_strided_slice %17 {offsets = [5, 0], sizes = [1, 128], strides = [1, 1]} : vector<8x128xf32> to vector<1x128xf32>
    %cst_48 = arith.constant dense<0.000000e+00> : vector<1x128xf32>
    %218 = tpu.matmul %196, %2, %cst_48 {dimension_numbers = #tpu.dot_dimension_numbers<[1], [0], [0], [1], [0, 0, 1, 1], [], []>} : vector<1x32xf32>, vector<32x128xf32>, vector<1x128xf32> -> vector<1x128xf32>
    %219 = arith.addf %217, %218 : vector<1x128xf32>
    %220 = vector.extract_strided_slice %219 {offsets = [0, 0], sizes = [1, 96], strides = [1, 1]} : vector<1x128xf32> to vector<1x96xf32>
    %221 = arith.negf %220 : vector<1x96xf32>
    %222 = math.exp %221 : vector<1x96xf32>
    %cst_49 = arith.constant 1.000000e+00 : f32
    %223 = vector.broadcast %cst_49 : f32 to vector<1x96xf32>
    %224 = arith.addf %223, %222 : vector<1x96xf32>
    %225 = arith.divf %223, %224 : vector<1x96xf32>
    %226 = vector.extract_strided_slice %219 {offsets = [0, 96], sizes = [1, 32], strides = [1, 1]} : vector<1x128xf32> to vector<1x32xf32>
    %227 = math.tanh %226 : vector<1x32xf32>
    %228 = vector.extract_strided_slice %225 {offsets = [0, 0], sizes = [1, 32], strides = [1, 1]} : vector<1x96xf32> to vector<1x32xf32>
    %229 = vector.extract_strided_slice %225 {offsets = [0, 32], sizes = [1, 32], strides = [1, 1]} : vector<1x96xf32> to vector<1x32xf32>
    %230 = vector.extract_strided_slice %225 {offsets = [0, 64], sizes = [1, 32], strides = [1, 1]} : vector<1x96xf32> to vector<1x32xf32>
    %231 = arith.mulf %229, %194 : vector<1x32xf32>
    %232 = arith.mulf %228, %227 : vector<1x32xf32>
    %233 = arith.addf %231, %232 : vector<1x32xf32>
    %234 = math.tanh %233 : vector<1x32xf32>
    %235 = arith.mulf %230, %234 : vector<1x32xf32>
    %cst_50 = arith.constant dense<0.000000e+00> : vector<1x128xf32>
    %236 = tpu.matmul %216, %3, %cst_50 {dimension_numbers = #tpu.dot_dimension_numbers<[1], [0], [0], [1], [0, 0, 1, 1], [], []>} : vector<1x32xf32>, vector<32x128xf32>, vector<1x128xf32> -> vector<1x128xf32>
    %cst_51 = arith.constant dense<0.000000e+00> : vector<1x128xf32>
    %237 = tpu.matmul %235, %1, %cst_51 {dimension_numbers = #tpu.dot_dimension_numbers<[1], [0], [0], [1], [0, 0, 1, 1], [], []>} : vector<1x32xf32>, vector<32x128xf32>, vector<1x128xf32> -> vector<1x128xf32>
    %238 = arith.addf %237, %5 : vector<1x128xf32>
    %239 = arith.addf %238, %236 : vector<1x128xf32>
    %240 = vector.extract_strided_slice %239 {offsets = [0, 0], sizes = [1, 96], strides = [1, 1]} : vector<1x128xf32> to vector<1x96xf32>
    %241 = arith.negf %240 : vector<1x96xf32>
    %242 = math.exp %241 : vector<1x96xf32>
    %cst_52 = arith.constant 1.000000e+00 : f32
    %243 = vector.broadcast %cst_52 : f32 to vector<1x96xf32>
    %244 = arith.addf %243, %242 : vector<1x96xf32>
    %245 = arith.divf %243, %244 : vector<1x96xf32>
    %246 = vector.extract_strided_slice %239 {offsets = [0, 96], sizes = [1, 32], strides = [1, 1]} : vector<1x128xf32> to vector<1x32xf32>
    %247 = math.tanh %246 : vector<1x32xf32>
    %248 = vector.extract_strided_slice %245 {offsets = [0, 0], sizes = [1, 32], strides = [1, 1]} : vector<1x96xf32> to vector<1x32xf32>
    %249 = vector.extract_strided_slice %245 {offsets = [0, 32], sizes = [1, 32], strides = [1, 1]} : vector<1x96xf32> to vector<1x32xf32>
    %250 = vector.extract_strided_slice %245 {offsets = [0, 64], sizes = [1, 32], strides = [1, 1]} : vector<1x96xf32> to vector<1x32xf32>
    %251 = arith.mulf %249, %214 : vector<1x32xf32>
    %252 = arith.mulf %248, %247 : vector<1x32xf32>
    %253 = arith.addf %251, %252 : vector<1x32xf32>
    %254 = math.tanh %253 : vector<1x32xf32>
    %255 = arith.mulf %250, %254 : vector<1x32xf32>
    %256 = vector.extract_strided_slice %17 {offsets = [6, 0], sizes = [1, 128], strides = [1, 1]} : vector<8x128xf32> to vector<1x128xf32>
    %cst_53 = arith.constant dense<0.000000e+00> : vector<1x128xf32>
    %257 = tpu.matmul %235, %2, %cst_53 {dimension_numbers = #tpu.dot_dimension_numbers<[1], [0], [0], [1], [0, 0, 1, 1], [], []>} : vector<1x32xf32>, vector<32x128xf32>, vector<1x128xf32> -> vector<1x128xf32>
    %258 = arith.addf %256, %257 : vector<1x128xf32>
    %259 = vector.extract_strided_slice %258 {offsets = [0, 0], sizes = [1, 96], strides = [1, 1]} : vector<1x128xf32> to vector<1x96xf32>
    %260 = arith.negf %259 : vector<1x96xf32>
    %261 = math.exp %260 : vector<1x96xf32>
    %cst_54 = arith.constant 1.000000e+00 : f32
    %262 = vector.broadcast %cst_54 : f32 to vector<1x96xf32>
    %263 = arith.addf %262, %261 : vector<1x96xf32>
    %264 = arith.divf %262, %263 : vector<1x96xf32>
    %265 = vector.extract_strided_slice %258 {offsets = [0, 96], sizes = [1, 32], strides = [1, 1]} : vector<1x128xf32> to vector<1x32xf32>
    %266 = math.tanh %265 : vector<1x32xf32>
    %267 = vector.extract_strided_slice %264 {offsets = [0, 0], sizes = [1, 32], strides = [1, 1]} : vector<1x96xf32> to vector<1x32xf32>
    %268 = vector.extract_strided_slice %264 {offsets = [0, 32], sizes = [1, 32], strides = [1, 1]} : vector<1x96xf32> to vector<1x32xf32>
    %269 = vector.extract_strided_slice %264 {offsets = [0, 64], sizes = [1, 32], strides = [1, 1]} : vector<1x96xf32> to vector<1x32xf32>
    %270 = arith.mulf %268, %233 : vector<1x32xf32>
    %271 = arith.mulf %267, %266 : vector<1x32xf32>
    %272 = arith.addf %270, %271 : vector<1x32xf32>
    %273 = math.tanh %272 : vector<1x32xf32>
    %274 = arith.mulf %269, %273 : vector<1x32xf32>
    %cst_55 = arith.constant dense<0.000000e+00> : vector<1x128xf32>
    %275 = tpu.matmul %255, %3, %cst_55 {dimension_numbers = #tpu.dot_dimension_numbers<[1], [0], [0], [1], [0, 0, 1, 1], [], []>} : vector<1x32xf32>, vector<32x128xf32>, vector<1x128xf32> -> vector<1x128xf32>
    %cst_56 = arith.constant dense<0.000000e+00> : vector<1x128xf32>
    %276 = tpu.matmul %274, %1, %cst_56 {dimension_numbers = #tpu.dot_dimension_numbers<[1], [0], [0], [1], [0, 0, 1, 1], [], []>} : vector<1x32xf32>, vector<32x128xf32>, vector<1x128xf32> -> vector<1x128xf32>
    %277 = arith.addf %276, %5 : vector<1x128xf32>
    %278 = arith.addf %277, %275 : vector<1x128xf32>
    %279 = vector.extract_strided_slice %278 {offsets = [0, 0], sizes = [1, 96], strides = [1, 1]} : vector<1x128xf32> to vector<1x96xf32>
    %280 = arith.negf %279 : vector<1x96xf32>
    %281 = math.exp %280 : vector<1x96xf32>
    %cst_57 = arith.constant 1.000000e+00 : f32
    %282 = vector.broadcast %cst_57 : f32 to vector<1x96xf32>
    %283 = arith.addf %282, %281 : vector<1x96xf32>
    %284 = arith.divf %282, %283 : vector<1x96xf32>
    %285 = vector.extract_strided_slice %278 {offsets = [0, 96], sizes = [1, 32], strides = [1, 1]} : vector<1x128xf32> to vector<1x32xf32>
    %286 = math.tanh %285 : vector<1x32xf32>
    %287 = vector.extract_strided_slice %284 {offsets = [0, 0], sizes = [1, 32], strides = [1, 1]} : vector<1x96xf32> to vector<1x32xf32>
    %288 = vector.extract_strided_slice %284 {offsets = [0, 32], sizes = [1, 32], strides = [1, 1]} : vector<1x96xf32> to vector<1x32xf32>
    %289 = vector.extract_strided_slice %284 {offsets = [0, 64], sizes = [1, 32], strides = [1, 1]} : vector<1x96xf32> to vector<1x32xf32>
    %290 = arith.mulf %288, %253 : vector<1x32xf32>
    %291 = arith.mulf %287, %286 : vector<1x32xf32>
    %292 = arith.addf %290, %291 : vector<1x32xf32>
    %293 = math.tanh %292 : vector<1x32xf32>
    %294 = arith.mulf %289, %293 : vector<1x32xf32>
    %295 = vector.extract_strided_slice %17 {offsets = [7, 0], sizes = [1, 128], strides = [1, 1]} : vector<8x128xf32> to vector<1x128xf32>
    %cst_58 = arith.constant dense<0.000000e+00> : vector<1x128xf32>
    %296 = tpu.matmul %274, %2, %cst_58 {dimension_numbers = #tpu.dot_dimension_numbers<[1], [0], [0], [1], [0, 0, 1, 1], [], []>} : vector<1x32xf32>, vector<32x128xf32>, vector<1x128xf32> -> vector<1x128xf32>
    %297 = arith.addf %295, %296 : vector<1x128xf32>
    %298 = vector.extract_strided_slice %297 {offsets = [0, 0], sizes = [1, 96], strides = [1, 1]} : vector<1x128xf32> to vector<1x96xf32>
    %299 = arith.negf %298 : vector<1x96xf32>
    %300 = math.exp %299 : vector<1x96xf32>
    %cst_59 = arith.constant 1.000000e+00 : f32
    %301 = vector.broadcast %cst_59 : f32 to vector<1x96xf32>
    %302 = arith.addf %301, %300 : vector<1x96xf32>
    %303 = arith.divf %301, %302 : vector<1x96xf32>
    %304 = vector.extract_strided_slice %297 {offsets = [0, 96], sizes = [1, 32], strides = [1, 1]} : vector<1x128xf32> to vector<1x32xf32>
    %305 = math.tanh %304 : vector<1x32xf32>
    %306 = vector.extract_strided_slice %303 {offsets = [0, 0], sizes = [1, 32], strides = [1, 1]} : vector<1x96xf32> to vector<1x32xf32>
    %307 = vector.extract_strided_slice %303 {offsets = [0, 32], sizes = [1, 32], strides = [1, 1]} : vector<1x96xf32> to vector<1x32xf32>
    %308 = vector.extract_strided_slice %303 {offsets = [0, 64], sizes = [1, 32], strides = [1, 1]} : vector<1x96xf32> to vector<1x32xf32>
    %309 = arith.mulf %307, %272 : vector<1x32xf32>
    %310 = arith.mulf %306, %305 : vector<1x32xf32>
    %311 = arith.addf %309, %310 : vector<1x32xf32>
    %312 = math.tanh %311 : vector<1x32xf32>
    %313 = arith.mulf %308, %312 : vector<1x32xf32>
    %cst_60 = arith.constant dense<0.000000e+00> : vector<1x128xf32>
    %314 = tpu.matmul %294, %3, %cst_60 {dimension_numbers = #tpu.dot_dimension_numbers<[1], [0], [0], [1], [0, 0, 1, 1], [], []>} : vector<1x32xf32>, vector<32x128xf32>, vector<1x128xf32> -> vector<1x128xf32>
    %cst_61 = arith.constant dense<0.000000e+00> : vector<1x128xf32>
    %315 = tpu.matmul %313, %1, %cst_61 {dimension_numbers = #tpu.dot_dimension_numbers<[1], [0], [0], [1], [0, 0, 1, 1], [], []>} : vector<1x32xf32>, vector<32x128xf32>, vector<1x128xf32> -> vector<1x128xf32>
    %316 = arith.addf %315, %5 : vector<1x128xf32>
    %317 = arith.addf %316, %314 : vector<1x128xf32>
    %318 = vector.extract_strided_slice %317 {offsets = [0, 0], sizes = [1, 96], strides = [1, 1]} : vector<1x128xf32> to vector<1x96xf32>
    %319 = arith.negf %318 : vector<1x96xf32>
    %320 = math.exp %319 : vector<1x96xf32>
    %cst_62 = arith.constant 1.000000e+00 : f32
    %321 = vector.broadcast %cst_62 : f32 to vector<1x96xf32>
    %322 = arith.addf %321, %320 : vector<1x96xf32>
    %323 = arith.divf %321, %322 : vector<1x96xf32>
    %324 = vector.extract_strided_slice %317 {offsets = [0, 96], sizes = [1, 32], strides = [1, 1]} : vector<1x128xf32> to vector<1x32xf32>
    %325 = math.tanh %324 : vector<1x32xf32>
    %326 = vector.extract_strided_slice %323 {offsets = [0, 0], sizes = [1, 32], strides = [1, 1]} : vector<1x96xf32> to vector<1x32xf32>
    %327 = vector.extract_strided_slice %323 {offsets = [0, 32], sizes = [1, 32], strides = [1, 1]} : vector<1x96xf32> to vector<1x32xf32>
    %328 = vector.extract_strided_slice %323 {offsets = [0, 64], sizes = [1, 32], strides = [1, 1]} : vector<1x96xf32> to vector<1x32xf32>
    %329 = arith.mulf %327, %292 : vector<1x32xf32>
    %330 = arith.mulf %326, %325 : vector<1x32xf32>
    %331 = arith.addf %329, %330 : vector<1x32xf32>
    %332 = math.tanh %331 : vector<1x32xf32>
    %333 = arith.mulf %328, %332 : vector<1x32xf32>
    %cst_63 = arith.constant dense<0.000000e+00> : vector<1x32xf32>
    %334 = tpu.matmul %333, %6, %cst_63 {dimension_numbers = #tpu.dot_dimension_numbers<[1], [0], [0], [1], [0, 0, 1, 1], [], []>} : vector<1x32xf32>, vector<32x32xf32>, vector<1x32xf32> -> vector<1x32xf32>
    %335 = arith.addf %334, %8 : vector<1x32xf32>
    %c0_64 = arith.constant 0 : index
    %c0_65 = arith.constant 0 : index
    %336 = vector.load %arg2[%c0_64, %c0_65] : memref<8x4xf32, #tpu.memory_space<vmem>>, vector<8x4xf32>
    %cst_66 = arith.constant dense<0.000000e+00> : vector<8x32xf32>
    %337 = tpu.matmul %336, %7, %cst_66 {dimension_numbers = #tpu.dot_dimension_numbers<[1], [0], [0], [1], [0, 0, 1, 1], [], []>} : vector<8x4xf32>, vector<4x32xf32>, vector<8x32xf32> -> vector<8x32xf32>
    %338 = vector.broadcast %335 : vector<1x32xf32> to vector<8x32xf32>
    %339 = arith.addf %337, %338 : vector<8x32xf32>
    %cst_67 = arith.constant 0.000000e+00 : f32
    %340 = vector.broadcast %cst_67 : f32 to vector<8x32xf32>
    %341 = arith.maximumf %339, %340 : vector<8x32xf32>
    %cst_68 = arith.constant dense<0.000000e+00> : vector<8x32xf32>
    %342 = tpu.matmul %341, %9, %cst_68 {dimension_numbers = #tpu.dot_dimension_numbers<[1], [0], [0], [1], [0, 0, 1, 1], [], []>} : vector<8x32xf32>, vector<32x32xf32>, vector<8x32xf32> -> vector<8x32xf32>
    %343 = vector.broadcast %10 : vector<1x32xf32> to vector<8x32xf32>
    %344 = arith.addf %342, %343 : vector<8x32xf32>
    %cst_69 = arith.constant 0.000000e+00 : f32
    %345 = vector.broadcast %cst_69 : f32 to vector<8x32xf32>
    %346 = arith.maximumf %344, %345 : vector<8x32xf32>
    %cst_70 = arith.constant dense<0.000000e+00> : vector<1x8xf32>
    %347 = tpu.matmul %11, %346, %cst_70 {dimension_numbers = #tpu.dot_dimension_numbers<[1], [1], [0], [0], [0, 0, 1, 0], [], []>} : vector<1x32xf32>, vector<8x32xf32>, vector<1x8xf32> -> vector<1x8xf32>
    %348 = vector.broadcast %13 : vector<1x1xf32> to vector<1x8xf32>
    %349 = arith.addf %347, %348 : vector<1x8xf32>
    %c0_71 = arith.constant 0 : index
    %c0_72 = arith.constant 0 : index
    %350 = vector.load %arg1[%c0_71, %c0_72] : memref<1x8xf32, #tpu.memory_space<vmem>>, vector<1x8xf32>
    %351 = arith.mulf %350, %349 : vector<1x8xf32>
    %c0_73 = arith.constant 0 : index
    %c0_74 = arith.constant 0 : index
    %352 = vector.load %arg5[%c0_73, %c0_74] : memref<1x8xf32, #tpu.memory_space<vmem>>, vector<1x8xf32>
    tpu.vector_store %arg5[%c0_73, %c0_74], %351 {strides = array<i32>} : memref<1x8xf32, #tpu.memory_space<vmem>>, vector<1x8xf32>,
    return
  }
}

</mosaic_0001>

<llo_original>
// kernel: tpu_custom_call.1
$region0: #{tpu_custom_call.1}
  #allocation0 [shape = 'u32[]', space=smem, size = 0x4, offset = 0x4, fixed_abs, tag = 'smem constant byte address 0x4 - core index']
  #allocation1 [shape = 'u32[144,128]{1,0:T(1,128)}', space=vmem, size = 0x12000, scoped, tag = 'internal scratch']
  %s0 = inlined_call_operand.vmem [shape: f32[8,4], index: 0, kind: input, shape index: {}]
  %s1 = inlined_call_operand.vmem [shape: f32[1,8], index: 1, kind: input, shape index: {}]
  %s2 = inlined_call_operand.vmem [shape: f32[8,4], index: 2, kind: input, shape index: {}]
  %s3 = inlined_call_operand.vmem [shape: f32[120,128], index: 3, kind: input, shape index: {}]
  %s4 = inlined_call_operand.vmem [shape: f32[104,32], index: 4, kind: input, shape index: {}]
  %s5 = inlined_call_operand.hbm [shape: f32[1,8], index: 5, kind: output, shape index: {}]
  %s6 = sld [smem:[#allocation0]]
  $region30: #{tpu_custom_call.1} parent=0
    _
  %s8 = ssub.s32 1, %s6
  %s9 = scalar_select 0, %s8, %s6
  $region1: #{tpu_custom_call.1} parent=0
    #allocation2 [shape = 'u8[512]{0}', space=vmem, size = 0x400, scoped, tag = 'output window, operand 0, single buffered']
    #allocation3 [shape = 's32[1]{0}', space=sflag, size = 0x4, scoped, tag = 'scoped memory for tpu_custom_call.1']
    %10 = vsyncpa [#allocation3], 0
    // Predicated region
    $region2: #{tpu_custom_call.1} parent=1 // pred_check
      _
    $region3: #{tpu_custom_call.1} parent=1 // pred_check_branch
      %12 = sbr.rel (0) target = $region5
    $region4: #{tpu_custom_call.1} parent=1 // pred_region
      _
    $region5: #{tpu_custom_call.1} parent=1 // pred_fallthru
      _
    // Predicated region
    $region6: #{tpu_custom_call.1} parent=1 // pred_check
      _
    $region7: #{tpu_custom_call.1} parent=1 // pred_check_branch
      %14 = sbr.rel (0) target = $region9
    $region8: #{tpu_custom_call.1} parent=1 // pred_region
      _
    $region9: #{tpu_custom_call.1} parent=1 // pred_fallthru
      _
    // Predicated region
    $region10: #{tpu_custom_call.1} parent=1 // pred_check
      _
    $region11: #{tpu_custom_call.1} parent=1 // pred_check_branch
      %16 = sbr.rel (0) target = $region13
    $region12: #{tpu_custom_call.1} parent=1 // pred_region
      _
    $region13: #{tpu_custom_call.1} parent=1 // pred_fallthru
      _
    // Predicated region
    $region14: #{tpu_custom_call.1} parent=1 // pred_check
      _
    $region15: #{tpu_custom_call.1} parent=1 // pred_check_branch
      %18 = sbr.rel (0) target = $region17
    $region16: #{tpu_custom_call.1} parent=1 // pred_region
      _
    $region17: #{tpu_custom_call.1} parent=1 // pred_fallthru
      _
    // Predicated region
    $region18: #{tpu_custom_call.1} parent=1 // pred_check
      _
    $region19: #{tpu_custom_call.1} parent=1 // pred_check_branch
      %20 = sbr.rel (0) target = $region21
    $region20: #{tpu_custom_call.1} parent=1 // pred_region
      _
    $region21: #{tpu_custom_call.1} parent=1 // pred_fallthru
      _
    %v21 = vld [vmem:[%s3] sm:$0xf]
    %v22 = vld [vmem:[%s3 + $0x30] sm:$0xff]
    %v23 = vld [vmem:[%s3 + $0x38] sm:$0xff]
    %v24 = vld [vmem:[%s3 + $0x40] sm:$0xff]
    %v25 = vld [vmem:[%s3 + $0x48] sm:$0xff]
    %v26 = vld [vmem:[%s3 + $0x8] sm:$0xff]
    %v27 = vld [vmem:[%s3 + $0x10] sm:$0xff]
    %v28 = vld [vmem:[%s3 + $0x18] sm:$0xff]
    %v29 = vld [vmem:[%s3 + $0x20] sm:$0xff]
    %v30 = vld [vmem:[%s3 + $0x50] sm:$0xff]
    %v31 = vld [vmem:[%s3 + $0x58] sm:$0xff]
    %v32 = vld [vmem:[%s3 + $0x60] sm:$0xff]
    %v33 = vld [vmem:[%s3 + $0x68] sm:$0xff]
    %v34 = vld [vmem:[%s3 + $0x28] sm:$0x1]
    %v35 = vld [vmem:[%s3 + $0x70] sm:$0x1]
    %v36 = vld [vmem:[%s4] sm:$0xff]
    %v37 = vld [vmem:[%s4 + $0x8] sm:$0xff]
    %v38 = vld [vmem:[%s4 + $0x10] sm:$0xff]
    %v39 = vld [vmem:[%s4 + $0x18] sm:$0xff]
    %v40 = vld [vmem:[%s4 + $0x20] sm:$0xf]
    %v41 = vld [vmem:[%s4 + $0x28] sm:$0x1]
    %v42 = vld [vmem:[%s4 + $0x30] sm:$0xff]
    %v43 = vld [vmem:[%s4 + $0x38] sm:$0xff]
    %v44 = vld [vmem:[%s4 + $0x40] sm:$0xff]
    %v45 = vld [vmem:[%s4 + $0x48] sm:$0xff]
    %v46 = vld [vmem:[%s4 + $0x50] sm:$0x1]
    %v47 = vld [vmem:[%s4 + $0x58] sm:$0x1]
    %v48 = vld [vmem:[%s4 + $0x60] sm:$0x1]
    %v49 = vld [vmem:[%s0] sm:$0xff]
    %v50 = vlaneseq
    %v51 = vshrl.u32 %v50, 7
    %v52 = vsub.s32 0, %v51
    %v53 = vrot.slane %v34, %v52
    %vm54 = vcmask 31744
    %v56 = vsel %vm54, %v49, 0
    %vm58 = vcmask 1043456
    %v60 = vsel %vm58, %v21, 0
    %62 = vmatprep.subr.mxu0 0.0
    %63 = vmatpush1.msra.mxu0 0.0
    %64 = vmatprep.subr.mxu0 0.0
    %65 = vmatpush1.msra.mxu0 0.0
    %66 = vmatprep.subr.mxu0 0.0
    %67 = vmatpush1.msra.mxu0 0.0
    %68 = vmatprep.subr.mxu0 0.0
    %69 = vmatpush1.msra.mxu0 0.0
    %70 = vmatprep.subr.mxu0 0.0
    %71 = vmatpush1.msra.mxu0 0.0
    %72 = vmatprep.subr.mxu0 0.0
    %73 = vmatpush1.msra.mxu0 0.0
    %74 = vmatprep.subr.mxu0 0.0
    %75 = vmatpush1.msra.mxu0 0.0
    %76 = vmatprep.subr.mxu0 0.0
    %77 = vmatpush1.msra.mxu0 0.0
    %78 = vmatprep.subr.mxu0 0.0
    %79 = vmatpush1.msra.mxu0 0.0
    %80 = vmatprep.subr.mxu0 0.0
    %81 = vmatpush1.msra.mxu0 0.0
    %82 = vmatprep.subr.mxu0 0.0
    %83 = vmatpush1.msra.mxu0 0.0
    %84 = vmatprep.subr.mxu0 0.0
    %85 = vmatpush1.msra.mxu0 0.0
    %86 = vmatprep.subr.mxu0 0.0
    %87 = vmatpush1.msra.mxu0 0.0
    %88 = vmatprep.subr.mxu0 0.0
    %89 = vmatpush1.msra.mxu0 0.0
    %90 = vmatprep.subr.mxu0 0.0
    %91 = vmatpush1.msra.mxu0 0.0
    %92 = vmatprep.subr.mxu0 0.0
    %93 = vmatpush1.msra.mxu0 %v60
    %94 = vmatprep.subr.mxu0 0.0
    %95 = vmatpush2.msra.mxu0 0.0
    %96 = vmatprep.subr.mxu0 0.0
    %97 = vmatpush2.msra.mxu0 0.0
    %98 = vmatprep.subr.mxu0 0.0
    %99 = vmatpush2.msra.mxu0 0.0
    %100 = vmatprep.subr.mxu0 0.0
    %101 = vmatpush2.msra.mxu0 0.0
    %102 = vmatprep.subr.mxu0 0.0
    %103 = vmatpush2.msra.mxu0 0.0
    %104 = vmatprep.subr.mxu0 0.0
    %105 = vmatpush2.msra.mxu0 0.0
    %106 = vmatprep.subr.mxu0 0.0
    %107 = vmatpush2.msra.mxu0 0.0
    %108 = vmatprep.subr.mxu0 0.0
    %109 = vmatpush2.msra.mxu0 0.0
    %110 = vmatprep.subr.mxu0 0.0
    %111 = vmatpush2.msra.mxu0 0.0
    %112 = vmatprep.subr.mxu0 0.0
    %113 = vmatpush2.msra.mxu0 0.0
    %114 = vmatprep.subr.mxu0 0.0
    %115 = vmatpush2.msra.mxu0 0.0
    %116 = vmatprep.subr.mxu0 0.0
    %117 = vmatpush2.msra.mxu0 0.0
    %118 = vmatprep.subr.mxu0 0.0
    %119 = vmatpush2.msra.mxu0 0.0
    %120 = vmatprep.subr.mxu0 0.0
    %121 = vmatpush2.msra.mxu0 0.0
    %122 = vmatprep.subr.mxu0 0.0
    %123 = vmatpush2.msra.mxu0 0.0
    %124 = vmatprep.subr.mxu0 0.0
    %125 = vmatpush2.msra.mxu0 0.0
    %126 = vmatprep.mubr.f32.mxu0 0.0
    %127 = vmatmul.mubr.f32.gmra.mxu0 %v56
    %v128 = vpop.f32.mrf.mxu0
    %v129 = vadd.f32 %v53, %v128
    %v130 = vpop.f32.mrf.mxu0
    %131 = vdwg.mxu0
    %vm132 = vcmask 261120
    %v134 = vsel %vm132, 0.0, 0
    %136 = vmatprep.subr.mxu0 0.0
    %137 = vmatpush1.msra.mxu0 0.0
    %138 = vmatprep.subr.mxu0 0.0
    %139 = vmatpush1.msra.mxu0 0.0
    %140 = vmatprep.subr.mxu0 0.0
    %141 = vmatpush1.msra.mxu0 0.0
    %142 = vmatprep.subr.mxu0 0.0
    %143 = vmatpush1.msra.mxu0 0.0
    %144 = vmatprep.subr.mxu0 0.0
    %145 = vmatpush1.msra.mxu0 0.0
    %146 = vmatprep.subr.mxu0 0.0
    %147 = vmatpush1.msra.mxu0 0.0
    %148 = vmatprep.subr.mxu0 0.0
    %149 = vmatpush1.msra.mxu0 0.0
    %150 = vmatprep.subr.mxu0 0.0
    %151 = vmatpush1.msra.mxu0 0.0
    %152 = vmatprep.subr.mxu0 0.0
    %153 = vmatpush1.msra.mxu0 0.0
    %154 = vmatprep.subr.mxu0 0.0
    %155 = vmatpush1.msra.mxu0 0.0
    %156 = vmatprep.subr.mxu0 0.0
    %157 = vmatpush1.msra.mxu0 0.0
    %158 = vmatprep.subr.mxu0 0.0
    %159 = vmatpush1.msra.mxu0 0.0
    %160 = vmatprep.subr.mxu0 0.0
    %161 = vmatpush1.msra.mxu0 %v29
    %162 = vmatprep.subr.mxu0 0.0
    %163 = vmatpush1.msra.mxu0 %v28
    %164 = vmatprep.subr.mxu0 0.0
    %165 = vmatpush1.msra.mxu0 %v27
    %166 = vmatprep.subr.mxu0 0.0
    %167 = vmatpush1.msra.mxu0 %v26
    %168 = vmatprep.subr.mxu0 0.0
    %169 = vmatpush2.msra.mxu0 0.0
    %170 = vmatprep.subr.mxu0 0.0
    %171 = vmatpush2.msra.mxu0 0.0
    %172 = vmatprep.subr.mxu0 0.0
    %173 = vmatpush2.msra.mxu0 0.0
    %174 = vmatprep.subr.mxu0 0.0
    %175 = vmatpush2.msra.mxu0 0.0
    %176 = vmatprep.subr.mxu0 0.0
    %177 = vmatpush2.msra.mxu0 0.0
    %178 = vmatprep.subr.mxu0 0.0
    %179 = vmatpush2.msra.mxu0 0.0
    %180 = vmatprep.subr.mxu0 0.0
    %181 = vmatpush2.msra.mxu0 0.0
    %182 = vmatprep.subr.mxu0 0.0
    %183 = vmatpush2.msra.mxu0 0.0
    %184 = vmatprep.subr.mxu0 0.0
    %185 = vmatpush2.msra.mxu0 0.0
    %186 = vmatprep.subr.mxu0 0.0
    %187 = vmatpush2.msra.mxu0 0.0
    %188 = vmatprep.subr.mxu0 0.0
    %189 = vmatpush2.msra.mxu0 0.0
    %190 = vmatprep.subr.mxu0 0.0
    %191 = vmatpush2.msra.mxu0 0.0
    %192 = vmatprep.subr.mxu0 0.0
    %193 = vmatpush2.msra.mxu0 0.0
    %194 = vmatprep.subr.mxu0 0.0
    %195 = vmatpush2.msra.mxu0 0.0
    %196 = vmatprep.subr.mxu0 0.0
    %197 = vmatpush2.msra.mxu0 0.0
    %198 = vmatprep.subr.mxu0 0.0
    %199 = vmatpush2.msra.mxu0 0.0
    %200 = vmatprep.mubr.f32.mxu0 0.0
    %201 = vmatmul.mubr.f32.gmra.mxu0 %v134
    %v202 = vpop.f32.mrf.mxu0
    %v203 = vadd.f32 0.0, %v202
    %v204 = vpop.f32.mrf.mxu0
    %205 = vdwg.mxu0
    %v206 = vadd.f32 %v129, %v203
    %v207 = vxor.u32 %v206, 2147483648
    %v208 = vmul.f32 %v207, 1.442695
    %v209 = vpow.pop %v208
    %v210 = vadd.f32 %v209, 1.0
    %v211 = vrcp.pop %v210
    %v212 = vmul.f32 1.0, %v211
    %v213 = vtanh.pop %v206
    %v214 = vmul.f32 %v212, 0.0
    %216 = vrot.lane.b32.xlu0 %v213, 32
    %v217 = vpop.permute.xlu0 %216
    %v219 = vmul.f32 %v212, %v217
    %221 = vrot.lane.b32.xlu0 %v219, 32
    %v222 = vpop.permute.xlu0 %221
    %v224 = vadd.f32 %v214, %v222
    %v225 = vtanh.pop %v224
    %227 = vrot.lane.b32.xlu0 %v225, 32
    %v228 = vpop.permute.xlu0 %227
    %v230 = vmul.f32 %v212, %v228
    %231 = vmatprep.subr.mxu0 0.0
    %232 = vmatpush1.msra.mxu0 0.0
    %233 = vmatprep.subr.mxu0 0.0
    %234 = vmatpush1.msra.mxu0 0.0
    %235 = vmatprep.subr.mxu0 0.0
    %236 = vmatpush1.msra.mxu0 0.0
    %237 = vmatprep.subr.mxu0 0.0
    %238 = vmatpush1.msra.mxu0 0.0
    %239 = vmatprep.subr.mxu0 0.0
    %240 = vmatpush1.msra.mxu0 0.0
    %241 = vmatprep.subr.mxu0 0.0
    %242 = vmatpush1.msra.mxu0 0.0
    %243 = vmatprep.subr.mxu0 0.0
    %244 = vmatpush1.msra.mxu0 0.0
    %245 = vmatprep.subr.mxu0 0.0
    %246 = vmatpush1.msra.mxu0 0.0
    %247 = vmatprep.subr.mxu0 0.0
    %248 = vmatpush1.msra.mxu0 0.0
    %249 = vmatprep.subr.mxu0 0.0
    %250 = vmatpush1.msra.mxu0 0.0
    %251 = vmatprep.subr.mxu0 0.0
    %252 = vmatpush1.msra.mxu0 0.0
    %253 = vmatprep.subr.mxu0 0.0
    %254 = vmatpush1.msra.mxu0 0.0
    %255 = vmatprep.subr.mxu0 0.0
    %256 = vmatpush1.msra.mxu0 %v33
    %257 = vmatprep.subr.mxu0 0.0
    %258 = vmatpush1.msra.mxu0 %v32
    %259 = vmatprep.subr.mxu0 0.0
    %260 = vmatpush1.msra.mxu0 %v31
    %261 = vmatprep.subr.mxu0 0.0
    %262 = vmatpush1.msra.mxu0 %v30
    %263 = vmatprep.subr.mxu0 0.0
    %264 = vmatpush2.msra.mxu0 0.0
    %265 = vmatprep.subr.mxu0 0.0
    %266 = vmatpush2.msra.mxu0 0.0
    %267 = vmatprep.subr.mxu0 0.0
    %268 = vmatpush2.msra.mxu0 0.0
    %269 = vmatprep.subr.mxu0 0.0
    %270 = vmatpush2.msra.mxu0 0.0
    %271 = vmatprep.subr.mxu0 0.0
    %272 = vmatpush2.msra.mxu0 0.0
    %273 = vmatprep.subr.mxu0 0.0
    %274 = vmatpush2.msra.mxu0 0.0
    %275 = vmatprep.subr.mxu0 0.0
    %276 = vmatpush2.msra.mxu0 0.0
    %277 = vmatprep.subr.mxu0 0.0
    %278 = vmatpush2.msra.mxu0 0.0
    %279 = vmatprep.subr.mxu0 0.0
    %280 = vmatpush2.msra.mxu0 0.0
    %281 = vmatprep.subr.mxu0 0.0
    %282 = vmatpush2.msra.mxu0 0.0
    %283 = vmatprep.subr.mxu0 0.0
    %284 = vmatpush2.msra.mxu0 0.0
    %285 = vmatprep.subr.mxu0 0.0
    %286 = vmatpush2.msra.mxu0 0.0
    %287 = vmatprep.subr.mxu0 0.0
    %288 = vmatpush2.msra.mxu0 0.0
    %289 = vmatprep.subr.mxu0 0.0
    %290 = vmatpush2.msra.mxu0 0.0
    %291 = vmatprep.subr.mxu0 0.0
    %292 = vmatpush2.msra.mxu0 0.0
    %293 = vmatprep.subr.mxu0 0.0
    %294 = vmatpush2.msra.mxu0 0.0
    %295 = vmatprep.mubr.f32.mxu0 0.0
    %296 = vmatmul.mubr.f32.gmra.mxu0 %v134
    %v297 = vpop.f32.mrf.mxu0
    %v298 = vadd.f32 0.0, %v297
    %v299 = vpop.f32.mrf.mxu0
    %300 = vdwg.mxu0
    %302 = vrot.lane.b32.xlu0 %v230, 64
    %v303 = vpop.permute.xlu0 %302
    %v304 = vsel %vm132, %v303, 0
    %306 = vmatprep.subr.mxu0 0.0
    %307 = vmatpush1.msra.mxu0 0.0
    %308 = vmatprep.subr.mxu0 0.0
    %309 = vmatpush1.msra.mxu0 0.0
    %310 = vmatprep.subr.mxu0 0.0
    %311 = vmatpush1.msra.mxu0 0.0
    %312 = vmatprep.subr.mxu0 0.0
    %313 = vmatpush1.msra.mxu0 0.0
    %314 = vmatprep.subr.mxu0 0.0
    %315 = vmatpush1.msra.mxu0 0.0
    %316 = vmatprep.subr.mxu0 0.0
    %317 = vmatpush1.msra.mxu0 0.0
    %318 = vmatprep.subr.mxu0 0.0
    %319 = vmatpush1.msra.mxu0 0.0
    %320 = vmatprep.subr.mxu0 0.0
    %321 = vmatpush1.msra.mxu0 0.0
    %322 = vmatprep.subr.mxu0 0.0
    %323 = vmatpush1.msra.mxu0 0.0
    %324 = vmatprep.subr.mxu0 0.0
    %325 = vmatpush1.msra.mxu0 0.0
    %326 = vmatprep.subr.mxu0 0.0
    %327 = vmatpush1.msra.mxu0 0.0
    %328 = vmatprep.subr.mxu0 0.0
    %329 = vmatpush1.msra.mxu0 0.0
    %330 = vmatprep.subr.mxu0 0.0
    %331 = vmatpush1.msra.mxu0 %v25
    %332 = vmatprep.subr.mxu0 0.0
    %333 = vmatpush1.msra.mxu0 %v24
    %334 = vmatprep.subr.mxu0 0.0
    %335 = vmatpush1.msra.mxu0 %v23
    %336 = vmatprep.subr.mxu0 0.0
    %337 = vmatpush1.msra.mxu0 %v22
    %338 = vmatprep.subr.mxu0 0.0
    %339 = vmatpush2.msra.mxu0 0.0
    %340 = vmatprep.subr.mxu0 0.0
    %341 = vmatpush2.msra.mxu0 0.0
    %342 = vmatprep.subr.mxu0 0.0
    %343 = vmatpush2.msra.mxu0 0.0
    %344 = vmatprep.subr.mxu0 0.0
    %345 = vmatpush2.msra.mxu0 0.0
    %346 = vmatprep.subr.mxu0 0.0
    %347 = vmatpush2.msra.mxu0 0.0
    %348 = vmatprep.subr.mxu0 0.0
    %349 = vmatpush2.msra.mxu0 0.0
    %350 = vmatprep.subr.mxu0 0.0
    %351 = vmatpush2.msra.mxu0 0.0
    %352 = vmatprep.subr.mxu0 0.0
    %353 = vmatpush2.msra.mxu0 0.0
    %354 = vmatprep.subr.mxu0 0.0
    %355 = vmatpush2.msra.mxu0 0.0
    %356 = vmatprep.subr.mxu0 0.0
    %357 = vmatpush2.msra.mxu0 0.0
    %358 = vmatprep.subr.mxu0 0.0
    %359 = vmatpush2.msra.mxu0 0.0
    %360 = vmatprep.subr.mxu0 0.0
    %361 = vmatpush2.msra.mxu0 0.0
    %362 = vmatprep.subr.mxu0 0.0
    %363 = vmatpush2.msra.mxu0 0.0
    %364 = vmatprep.subr.mxu0 0.0
    %365 = vmatpush2.msra.mxu0 0.0
    %366 = vmatprep.subr.mxu0 0.0
    %367 = vmatpush2.msra.mxu0 0.0
    %368 = vmatprep.subr.mxu0 0.0
    %369 = vmatpush2.msra.mxu0 0.0
    %370 = vmatprep.mubr.f32.mxu0 0.0
    %371 = vmatmul.mubr.f32.gmra.mxu0 %v304
    %v372 = vpop.f32.mrf.mxu0
    %v373 = vadd.f32 %v35, %v372
    %v374 = vpop.f32.mrf.mxu0
    %375 = vdwg.mxu0
    %v376 = vadd.f32 %v373, %v298
    %v377 = vxor.u32 %v376, 2147483648
    %v378 = vmul.f32 %v377, 1.442695
    %v379 = vpow.pop %v378
    %v380 = vadd.f32 %v379, 1.0
    %v381 = vrcp.pop %v380
    %v382 = vmul.f32 1.0, %v381
    %v383 = vtanh.pop %v376
    %v384 = vmul.f32 %v382, 0.0
    %386 = vrot.lane.b32.xlu0 %v383, 32
    %v387 = vpop.permute.xlu0 %386
    %v389 = vmul.f32 %v382, %v387
    %391 = vrot.lane.b32.xlu0 %v389, 32
    %v392 = vpop.permute.xlu0 %391
    %v394 = vadd.f32 %v384, %v392
    %v395 = vtanh.pop %v394
    %397 = vrot.lane.b32.xlu0 %v395, 32
    %v398 = vpop.permute.xlu0 %397
    %v400 = vmul.f32 %v382, %v398
    %401 = vmatprep.subr.mxu0 0.0
    %402 = vmatpush1.msra.mxu0 0.0
    %403 = vmatprep.subr.mxu0 0.0
    %404 = vmatpush1.msra.mxu0 0.0
    %405 = vmatprep.subr.mxu0 0.0
    %406 = vmatpush1.msra.mxu0 0.0
    %407 = vmatprep.subr.mxu0 0.0
    %408 = vmatpush1.msra.mxu0 0.0
    %409 = vmatprep.subr.mxu0 0.0
    %410 = vmatpush1.msra.mxu0 0.0
    %411 = vmatprep.subr.mxu0 0.0
    %412 = vmatpush1.msra.mxu0 0.0
    %413 = vmatprep.subr.mxu0 0.0
    %414 = vmatpush1.msra.mxu0 0.0
    %415 = vmatprep.subr.mxu0 0.0
    %416 = vmatpush1.msra.mxu0 0.0
    %417 = vmatprep.subr.mxu0 0.0
    %418 = vmatpush1.msra.mxu0 0.0
    %419 = vmatprep.subr.mxu0 0.0
    %420 = vmatpush1.msra.mxu0 0.0
    %421 = vmatprep.subr.mxu0 0.0
    %422 = vmatpush1.msra.mxu0 0.0
    %423 = vmatprep.subr.mxu0 0.0
    %424 = vmatpush1.msra.mxu0 0.0
    %425 = vmatprep.subr.mxu0 0.0
    %426 = vmatpush1.msra.mxu0 %v29
    %427 = vmatprep.subr.mxu0 0.0
    %428 = vmatpush1.msra.mxu0 %v28
    %429 = vmatprep.subr.mxu0 0.0
    %430 = vmatpush1.msra.mxu0 %v27
    %431 = vmatprep.subr.mxu0 0.0
    %432 = vmatpush1.msra.mxu0 %v26
    %433 = vmatprep.subr.mxu0 0.0
    %434 = vmatpush2.msra.mxu0 0.0
    %435 = vmatprep.subr.mxu0 0.0
    %436 = vmatpush2.msra.mxu0 0.0
    %437 = vmatprep.subr.mxu0 0.0
    %438 = vmatpush2.msra.mxu0 0.0
    %439 = vmatprep.subr.mxu0 0.0
    %440 = vmatpush2.msra.mxu0 0.0
    %441 = vmatprep.subr.mxu0 0.0
    %442 = vmatpush2.msra.mxu0 0.0
    %443 = vmatprep.subr.mxu0 0.0
    %444 = vmatpush2.msra.mxu0 0.0
    %445 = vmatprep.subr.mxu0 0.0
    %446 = vmatpush2.msra.mxu0 0.0
    %447 = vmatprep.subr.mxu0 0.0
    %448 = vmatpush2.msra.mxu0 0.0
    %449 = vmatprep.subr.mxu0 0.0
    %450 = vmatpush2.msra.mxu0 0.0
    %451 = vmatprep.subr.mxu0 0.0
    %452 = vmatpush2.msra.mxu0 0.0
    %453 = vmatprep.subr.mxu0 0.0
    %454 = vmatpush2.msra.mxu0 0.0
    %455 = vmatprep.subr.mxu0 0.0
    %456 = vmatpush2.msra.mxu0 0.0
    %457 = vmatprep.subr.mxu0 0.0
    %458 = vmatpush2.msra.mxu0 0.0
    %459 = vmatprep.subr.mxu0 0.0
    %460 = vmatpush2.msra.mxu0 0.0
    %461 = vmatprep.subr.mxu0 0.0
    %462 = vmatpush2.msra.mxu0 0.0
    %463 = vmatprep.subr.mxu0 0.0
    %464 = vmatpush2.msra.mxu0 0.0
    %465 = vmatprep.mubr.f32.mxu0 0.0
    %466 = vmatmul.mubr.f32.gmra.mxu0 %v304
    %v467 = vpop.f32.mrf.mxu0
    %v468 = vadd.f32 0.0, %v467
    %v469 = vpop.f32.mrf.mxu0
    %470 = vdwg.mxu0
    %v472 = vrot.slane %v468, 7
    %v474 = vadd.f32 %v129, %v472
    %v475 = vxor.u32 %v474, 2147483648
    %v476 = vmul.f32 %v475, 1.442695
    %v477 = vpow.pop %v476
    %v478 = vadd.f32 %v477, 1.0
    %v479 = vrcp.pop %v478
    %v480 = vmul.f32 1.0, %v479
    %v481 = vtanh.pop %v474
    %v483 = vrot.slane %v224, 7
    %v485 = vmul.f32 %v480, %v483
    %487 = vrot.lane.b32.xlu0 %v481, 32
    %v488 = vpop.permute.xlu0 %487
    %v490 = vmul.f32 %v480, %v488
    %492 = vrot.lane.b32.xlu0 %v490, 32
    %v493 = vpop.permute.xlu0 %492
    %v495 = vadd.f32 %v485, %v493
    %v496 = vtanh.pop %v495
    %498 = vrot.lane.b32.xlu0 %v496, 32
    %v499 = vpop.permute.xlu0 %498
    %v501 = vmul.f32 %v480, %v499
    %503 = vrot.lane.b32.xlu0 %v400, 64
    %v504 = vpop.permute.xlu0 %503
    %v505 = vsel %vm132, %v504, 0
    %507 = vmatprep.subr.mxu0 0.0
    %508 = vmatpush1.msra.mxu0 0.0
    %509 = vmatprep.subr.mxu0 0.0
    %510 = vmatpush1.msra.mxu0 0.0
    %511 = vmatprep.subr.mxu0 0.0
    %512 = vmatpush1.msra.mxu0 0.0
    %513 = vmatprep.subr.mxu0 0.0
    %514 = vmatpush1.msra.mxu0 0.0
    %515 = vmatprep.subr.mxu0 0.0
    %516 = vmatpush1.msra.mxu0 0.0
    %517 = vmatprep.subr.mxu0 0.0
    %518 = vmatpush1.msra.mxu0 0.0
    %519 = vmatprep.subr.mxu0 0.0
    %520 = vmatpush1.msra.mxu0 0.0
    %521 = vmatprep.subr.mxu0 0.0
    %522 = vmatpush1.msra.mxu0 0.0
    %523 = vmatprep.subr.mxu0 0.0
    %524 = vmatpush1.msra.mxu0 0.0
    %525 = vmatprep.subr.mxu0 0.0
    %526 = vmatpush1.msra.mxu0 0.0
    %527 = vmatprep.subr.mxu0 0.0
    %528 = vmatpush1.msra.mxu0 0.0
    %529 = vmatprep.subr.mxu0 0.0
    %530 = vmatpush1.msra.mxu0 0.0
    %531 = vmatprep.subr.mxu0 0.0
    %532 = vmatpush1.msra.mxu0 %v33
    %533 = vmatprep.subr.mxu0 0.0
    %534 = vmatpush1.msra.mxu0 %v32
    %535 = vmatprep.subr.mxu0 0.0
    %536 = vmatpush1.msra.mxu0 %v31
    %537 = vmatprep.subr.mxu0 0.0
    %538 = vmatpush1.msra.mxu0 %v30
    %539 = vmatprep.subr.mxu0 0.0
    %540 = vmatpush2.msra.mxu0 0.0
    %541 = vmatprep.subr.mxu0 0.0
    %542 = vmatpush2.msra.mxu0 0.0
    %543 = vmatprep.subr.mxu0 0.0
    %544 = vmatpush2.msra.mxu0 0.0
    %545 = vmatprep.subr.mxu0 0.0
    %546 = vmatpush2.msra.mxu0 0.0
    %547 = vmatprep.subr.mxu0 0.0
    %548 = vmatpush2.msra.mxu0 0.0
    %549 = vmatprep.subr.mxu0 0.0
    %550 = vmatpush2.msra.mxu0 0.0
    %551 = vmatprep.subr.mxu0 0.0
    %552 = vmatpush2.msra.mxu0 0.0
    %553 = vmatprep.subr.mxu0 0.0
    %554 = vmatpush2.msra.mxu0 0.0
    %555 = vmatprep.subr.mxu0 0.0
    %556 = vmatpush2.msra.mxu0 0.0
    %557 = vmatprep.subr.mxu0 0.0
    %558 = vmatpush2.msra.mxu0 0.0
    %559 = vmatprep.subr.mxu0 0.0
    %560 = vmatpush2.msra.mxu0 0.0
    %561 = vmatprep.subr.mxu0 0.0
    %562 = vmatpush2.msra.mxu0 0.0
    %563 = vmatprep.subr.mxu0 0.0
    %564 = vmatpush2.msra.mxu0 0.0
    %565 = vmatprep.subr.mxu0 0.0
    %566 = vmatpush2.msra.mxu0 0.0
    %567 = vmatprep.subr.mxu0 0.0
    %568 = vmatpush2.msra.mxu0 0.0
    %569 = vmatprep.subr.mxu0 0.0
    %570 = vmatpush2.msra.mxu0 0.0
    %571 = vmatprep.mubr.f32.mxu0 0.0
    %572 = vmatmul.mubr.f32.gmra.mxu0 %v505
    %v573 = vpop.f32.mrf.mxu0
    %v574 = vadd.f32 0.0, %v573
    %v575 = vpop.f32.mrf.mxu0
    %576 = vdwg.mxu0
    %v578 = vrot.slane %v501, 1
    %579 = vrot.lane.b32.xlu0 %v578, 64
    %v580 = vpop.permute.xlu0 %579
    %v581 = vsel %vm132, %v580, 0
    %583 = vmatprep.subr.mxu0 0.0
    %584 = vmatpush1.msra.mxu0 0.0
    %585 = vmatprep.subr.mxu0 0.0
    %586 = vmatpush1.msra.mxu0 0.0
    %587 = vmatprep.subr.mxu0 0.0
    %588 = vmatpush1.msra.mxu0 0.0
    %589 = vmatprep.subr.mxu0 0.0
    %590 = vmatpush1.msra.mxu0 0.0
    %591 = vmatprep.subr.mxu0 0.0
    %592 = vmatpush1.msra.mxu0 0.0
    %593 = vmatprep.subr.mxu0 0.0
    %594 = vmatpush1.msra.mxu0 0.0
    %595 = vmatprep.subr.mxu0 0.0
    %596 = vmatpush1.msra.mxu0 0.0
    %597 = vmatprep.subr.mxu0 0.0
    %598 = vmatpush1.msra.mxu0 0.0
    %599 = vmatprep.subr.mxu0 0.0
    %600 = vmatpush1.msra.mxu0 0.0
    %601 = vmatprep.subr.mxu0 0.0
    %602 = vmatpush1.msra.mxu0 0.0
    %603 = vmatprep.subr.mxu0 0.0
    %604 = vmatpush1.msra.mxu0 0.0
    %605 = vmatprep.subr.mxu0 0.0
    %606 = vmatpush1.msra.mxu0 0.0
    %607 = vmatprep.subr.mxu0 0.0
    %608 = vmatpush1.msra.mxu0 %v25
    %609 = vmatprep.subr.mxu0 0.0
    %610 = vmatpush1.msra.mxu0 %v24
    %611 = vmatprep.subr.mxu0 0.0
    %612 = vmatpush1.msra.mxu0 %v23
    %613 = vmatprep.subr.mxu0 0.0
    %614 = vmatpush1.msra.mxu0 %v22
    %615 = vmatprep.subr.mxu0 0.0
    %616 = vmatpush2.msra.mxu0 0.0
    %617 = vmatprep.subr.mxu0 0.0
    %618 = vmatpush2.msra.mxu0 0.0
    %619 = vmatprep.subr.mxu0 0.0
    %620 = vmatpush2.msra.mxu0 0.0
    %621 = vmatprep.subr.mxu0 0.0
    %622 = vmatpush2.msra.mxu0 0.0
    %623 = vmatprep.subr.mxu0 0.0
    %624 = vmatpush2.msra.mxu0 0.0
    %625 = vmatprep.subr.mxu0 0.0
    %626 = vmatpush2.msra.mxu0 0.0
    %627 = vmatprep.subr.mxu0 0.0
    %628 = vmatpush2.msra.mxu0 0.0
    %629 = vmatprep.subr.mxu0 0.0
    %630 = vmatpush2.msra.mxu0 0.0
    %631 = vmatprep.subr.mxu0 0.0
    %632 = vmatpush2.msra.mxu0 0.0
    %633 = vmatprep.subr.mxu0 0.0
    %634 = vmatpush2.msra.mxu0 0.0
    %635 = vmatprep.subr.mxu0 0.0
    %636 = vmatpush2.msra.mxu0 0.0
    %637 = vmatprep.subr.mxu0 0.0
    %638 = vmatpush2.msra.mxu0 0.0
    %639 = vmatprep.subr.mxu0 0.0
    %640 = vmatpush2.msra.mxu0 0.0
    %641 = vmatprep.subr.mxu0 0.0
    %642 = vmatpush2.msra.mxu0 0.0
    %643 = vmatprep.subr.mxu0 0.0
    %644 = vmatpush2.msra.mxu0 0.0
    %645 = vmatprep.subr.mxu0 0.0
    %646 = vmatpush2.msra.mxu0 0.0
    %647 = vmatprep.mubr.f32.mxu0 0.0
    %648 = vmatmul.mubr.f32.gmra.mxu0 %v581
    %v649 = vpop.f32.mrf.mxu0
    %v650 = vadd.f32 %v35, %v649
    %v651 = vpop.f32.mrf.mxu0
    %652 = vdwg.mxu0
    %v653 = vadd.f32 %v650, %v574
    %v654 = vxor.u32 %v653, 2147483648
    %v655 = vmul.f32 %v654, 1.442695
    %v656 = vpow.pop %v655
    %v657 = vadd.f32 %v656, 1.0
    %v658 = vrcp.pop %v657
    %v659 = vmul.f32 1.0, %v658
    %v660 = vtanh.pop %v653
    %v661 = vmul.f32 %v659, %v394
    %663 = vrot.lane.b32.xlu0 %v660, 32
    %v664 = vpop.permute.xlu0 %663
    %v666 = vmul.f32 %v659, %v664
    %668 = vrot.lane.b32.xlu0 %v666, 32
    %v669 = vpop.permute.xlu0 %668
    %v671 = vadd.f32 %v661, %v669
    %v672 = vtanh.pop %v671
    %674 = vrot.lane.b32.xlu0 %v672, 32
    %v675 = vpop.permute.xlu0 %674
    %v677 = vmul.f32 %v659, %v675
    %678 = vmatprep.subr.mxu0 0.0
    %679 = vmatpush1.msra.mxu0 0.0
    %680 = vmatprep.subr.mxu0 0.0
    %681 = vmatpush1.msra.mxu0 0.0
    %682 = vmatprep.subr.mxu0 0.0
    %683 = vmatpush1.msra.mxu0 0.0
    %684 = vmatprep.subr.mxu0 0.0
    %685 = vmatpush1.msra.mxu0 0.0
    %686 = vmatprep.subr.mxu0 0.0
    %687 = vmatpush1.msra.mxu0 0.0
    %688 = vmatprep.subr.mxu0 0.0
    %689 = vmatpush1.msra.mxu0 0.0
    %690 = vmatprep.subr.mxu0 0.0
    %691 = vmatpush1.msra.mxu0 0.0
    %692 = vmatprep.subr.mxu0 0.0
    %693 = vmatpush1.msra.mxu0 0.0
    %694 = vmatprep.subr.mxu0 0.0
    %695 = vmatpush1.msra.mxu0 0.0
    %696 = vmatprep.subr.mxu0 0.0
    %697 = vmatpush1.msra.mxu0 0.0
    %698 = vmatprep.subr.mxu0 0.0
    %699 = vmatpush1.msra.mxu0 0.0
    %700 = vmatprep.subr.mxu0 0.0
    %701 = vmatpush1.msra.mxu0 0.0
    %702 = vmatprep.subr.mxu0 0.0
    %703 = vmatpush1.msra.mxu0 %v29
    %704 = vmatprep.subr.mxu0 0.0
    %705 = vmatpush1.msra.mxu0 %v28
    %706 = vmatprep.subr.mxu0 0.0
    %707 = vmatpush1.msra.mxu0 %v27
    %708 = vmatprep.subr.mxu0 0.0
    %709 = vmatpush1.msra.mxu0 %v26
    %710 = vmatprep.subr.mxu0 0.0
    %711 = vmatpush2.msra.mxu0 0.0
    %712 = vmatprep.subr.mxu0 0.0
    %713 = vmatpush2.msra.mxu0 0.0
    %714 = vmatprep.subr.mxu0 0.0
    %715 = vmatpush2.msra.mxu0 0.0
    %716 = vmatprep.subr.mxu0 0.0
    %717 = vmatpush2.msra.mxu0 0.0
    %718 = vmatprep.subr.mxu0 0.0
    %719 = vmatpush2.msra.mxu0 0.0
    %720 = vmatprep.subr.mxu0 0.0
    %721 = vmatpush2.msra.mxu0 0.0
    %722 = vmatprep.subr.mxu0 0.0
    %723 = vmatpush2.msra.mxu0 0.0
    %724 = vmatprep.subr.mxu0 0.0
    %725 = vmatpush2.msra.mxu0 0.0
    %726 = vmatprep.subr.mxu0 0.0
    %727 = vmatpush2.msra.mxu0 0.0
    %728 = vmatprep.subr.mxu0 0.0
    %729 = vmatpush2.msra.mxu0 0.0
    %730 = vmatprep.subr.mxu0 0.0
    %731 = vmatpush2.msra.mxu0 0.0
    %732 = vmatprep.subr.mxu0 0.0
    %733 = vmatpush2.msra.mxu0 0.0
    %734 = vmatprep.subr.mxu0 0.0
    %735 = vmatpush2.msra.mxu0 0.0
    %736 = vmatprep.subr.mxu0 0.0
    %737 = vmatpush2.msra.mxu0 0.0
    %738 = vmatprep.subr.mxu0 0.0
    %739 = vmatpush2.msra.mxu0 0.0
    %740 = vmatprep.subr.mxu0 0.0
    %741 = vmatpush2.msra.mxu0 0.0
    %742 = vmatprep.mubr.f32.mxu0 0.0
    %743 = vmatmul.mubr.f32.gmra.mxu0 %v581
    %v744 = vpop.f32.mrf.mxu0
    %v745 = vadd.f32 0.0, %v744
    %v746 = vpop.f32.mrf.mxu0
    %747 = vdwg.mxu0
    %v749 = vrot.slane %v745, 6
    %v751 = vadd.f32 %v129, %v749
    %v752 = vxor.u32 %v751, 2147483648
    %v753 = vmul.f32 %v752, 1.442695
    %v754 = vpow.pop %v753
    %v755 = vadd.f32 %v754, 1.0
    %v756 = vrcp.pop %v755
    %v757 = vmul.f32 1.0, %v756
    %v758 = vtanh.pop %v751
    %v760 = vrot.slane %v495, 7
    %v762 = vmul.f32 %v757, %v760
    %764 = vrot.lane.b32.xlu0 %v758, 32
    %v765 = vpop.permute.xlu0 %764
    %v767 = vmul.f32 %v757, %v765
    %769 = vrot.lane.b32.xlu0 %v767, 32
    %v770 = vpop.permute.xlu0 %769
    %v772 = vadd.f32 %v762, %v770
    %v773 = vtanh.pop %v772
    %775 = vrot.lane.b32.xlu0 %v773, 32
    %v776 = vpop.permute.xlu0 %775
    %v778 = vmul.f32 %v757, %v776
    %780 = vrot.lane.b32.xlu0 %v677, 64
    %v781 = vpop.permute.xlu0 %780
    %v782 = vsel %vm132, %v781, 0
    %784 = vmatprep.subr.mxu0 0.0
    %785 = vmatpush1.msra.mxu0 0.0
    %786 = vmatprep.subr.mxu0 0.0
    %787 = vmatpush1.msra.mxu0 0.0
    %788 = vmatprep.subr.mxu0 0.0
    %789 = vmatpush1.msra.mxu0 0.0
    %790 = vmatprep.subr.mxu0 0.0
    %791 = vmatpush1.msra.mxu0 0.0
    %792 = vmatprep.subr.mxu0 0.0
    %793 = vmatpush1.msra.mxu0 0.0
    %794 = vmatprep.subr.mxu0 0.0
    %795 = vmatpush1.msra.mxu0 0.0
    %796 = vmatprep.subr.mxu0 0.0
    %797 = vmatpush1.msra.mxu0 0.0
    %798 = vmatprep.subr.mxu0 0.0
    %799 = vmatpush1.msra.mxu0 0.0
    %800 = vmatprep.subr.mxu0 0.0
    %801 = vmatpush1.msra.mxu0 0.0
    %802 = vmatprep.subr.mxu0 0.0
    %803 = vmatpush1.msra.mxu0 0.0
    %804 = vmatprep.subr.mxu0 0.0
    %805 = vmatpush1.msra.mxu0 0.0
    %806 = vmatprep.subr.mxu0 0.0
    %807 = vmatpush1.msra.mxu0 0.0
    %808 = vmatprep.subr.mxu0 0.0
    %809 = vmatpush1.msra.mxu0 %v33
    %810 = vmatprep.subr.mxu0 0.0
    %811 = vmatpush1.msra.mxu0 %v32
    %812 = vmatprep.subr.mxu0 0.0
    %813 = vmatpush1.msra.mxu0 %v31
    %814 = vmatprep.subr.mxu0 0.0
    %815 = vmatpush1.msra.mxu0 %v30
    %816 = vmatprep.subr.mxu0 0.0
    %817 = vmatpush2.msra.mxu0 0.0
    %818 = vmatprep.subr.mxu0 0.0
    %819 = vmatpush2.msra.mxu0 0.0
    %820 = vmatprep.subr.mxu0 0.0
    %821 = vmatpush2.msra.mxu0 0.0
    %822 = vmatprep.subr.mxu0 0.0
    %823 = vmatpush2.msra.mxu0 0.0
    %824 = vmatprep.subr.mxu0 0.0
    %825 = vmatpush2.msra.mxu0 0.0
    %826 = vmatprep.subr.mxu0 0.0
    %827 = vmatpush2.msra.mxu0 0.0
    %828 = vmatprep.subr.mxu0 0.0
    %829 = vmatpush2.msra.mxu0 0.0
    %830 = vmatprep.subr.mxu0 0.0
    %831 = vmatpush2.msra.mxu0 0.0
    %832 = vmatprep.subr.mxu0 0.0
    %833 = vmatpush2.msra.mxu0 0.0
    %834 = vmatprep.subr.mxu0 0.0
    %835 = vmatpush2.msra.mxu0 0.0
    %836 = vmatprep.subr.mxu0 0.0
    %837 = vmatpush2.msra.mxu0 0.0
    %838 = vmatprep.subr.mxu0 0.0
    %839 = vmatpush2.msra.mxu0 0.0
    %840 = vmatprep.subr.mxu0 0.0
    %841 = vmatpush2.msra.mxu0 0.0
    %842 = vmatprep.subr.mxu0 0.0
    %843 = vmatpush2.msra.mxu0 0.0
    %844 = vmatprep.subr.mxu0 0.0
    %845 = vmatpush2.msra.mxu0 0.0
    %846 = vmatprep.subr.mxu0 0.0
    %847 = vmatpush2.msra.mxu0 0.0
    %848 = vmatprep.mubr.f32.mxu0 0.0
    %849 = vmatmul.mubr.f32.gmra.mxu0 %v782
    %v850 = vpop.f32.mrf.mxu0
    %v851 = vadd.f32 0.0, %v850
    %v852 = vpop.f32.mrf.mxu0
    %853 = vdwg.mxu0
    %v855 = vrot.slane %v778, 2
    %856 = vrot.lane.b32.xlu0 %v855, 64
    %v857 = vpop.permute.xlu0 %856
    %v858 = vsel %vm132, %v857, 0
    %860 = vmatprep.subr.mxu0 0.0
    %861 = vmatpush1.msra.mxu0 0.0
    %862 = vmatprep.subr.mxu0 0.0
    %863 = vmatpush1.msra.mxu0 0.0
    %864 = vmatprep.subr.mxu0 0.0
    %865 = vmatpush1.msra.mxu0 0.0
    %866 = vmatprep.subr.mxu0 0.0
    %867 = vmatpush1.msra.mxu0 0.0
    %868 = vmatprep.subr.mxu0 0.0
    %869 = vmatpush1.msra.mxu0 0.0
    %870 = vmatprep.subr.mxu0 0.0
    %871 = vmatpush1.msra.mxu0 0.0
    %872 = vmatprep.subr.mxu0 0.0
    %873 = vmatpush1.msra.mxu0 0.0
    %874 = vmatprep.subr.mxu0 0.0
    %875 = vmatpush1.msra.mxu0 0.0
    %876 = vmatprep.subr.mxu0 0.0
    %877 = vmatpush1.msra.mxu0 0.0
    %878 = vmatprep.subr.mxu0 0.0
    %879 = vmatpush1.msra.mxu0 0.0
    %880 = vmatprep.subr.mxu0 0.0
    %881 = vmatpush1.msra.mxu0 0.0
    %882 = vmatprep.subr.mxu0 0.0
    %883 = vmatpush1.msra.mxu0 0.0
    %884 = vmatprep.subr.mxu0 0.0
    %885 = vmatpush1.msra.mxu0 %v25
    %886 = vmatprep.subr.mxu0 0.0
    %887 = vmatpush1.msra.mxu0 %v24
    %888 = vmatprep.subr.mxu0 0.0
    %889 = vmatpush1.msra.mxu0 %v23
    %890 = vmatprep.subr.mxu0 0.0
    %891 = vmatpush1.msra.mxu0 %v22
    %892 = vmatprep.subr.mxu0 0.0
    %893 = vmatpush2.msra.mxu0 0.0
    %894 = vmatprep.subr.mxu0 0.0
    %895 = vmatpush2.msra.mxu0 0.0
    %896 = vmatprep.subr.mxu0 0.0
    %897 = vmatpush2.msra.mxu0 0.0
    %898 = vmatprep.subr.mxu0 0.0
    %899 = vmatpush2.msra.mxu0 0.0
    %900 = vmatprep.subr.mxu0 0.0
    %901 = vmatpush2.msra.mxu0 0.0
    %902 = vmatprep.subr.mxu0 0.0
    %903 = vmatpush2.msra.mxu0 0.0
    %904 = vmatprep.subr.mxu0 0.0
    %905 = vmatpush2.msra.mxu0 0.0
    %906 = vmatprep.subr.mxu0 0.0
    %907 = vmatpush2.msra.mxu0 0.0
    %908 = vmatprep.subr.mxu0 0.0
    %909 = vmatpush2.msra.mxu0 0.0
    %910 = vmatprep.subr.mxu0 0.0
    %911 = vmatpush2.msra.mxu0 0.0
    %912 = vmatprep.subr.mxu0 0.0
    %913 = vmatpush2.msra.mxu0 0.0
    %914 = vmatprep.subr.mxu0 0.0
    %915 = vmatpush2.msra.mxu0 0.0
    %916 = vmatprep.subr.mxu0 0.0
    %917 = vmatpush2.msra.mxu0 0.0
    %918 = vmatprep.subr.mxu0 0.0
    %919 = vmatpush2.msra.mxu0 0.0
    %920 = vmatprep.subr.mxu0 0.0
    %921 = vmatpush2.msra.mxu0 0.0
    %922 = vmatprep.subr.mxu0 0.0
    %923 = vmatpush2.msra.mxu0 0.0
    %924 = vmatprep.mubr.f32.mxu0 0.0
    %925 = vmatmul.mubr.f32.gmra.mxu0 %v858
    %v926 = vpop.f32.mrf.mxu0
    %v927 = vadd.f32 %v35, %v926
    %v928 = vpop.f32.mrf.mxu0
    %929 = vdwg.mxu0
    %v930 = vadd.f32 %v927, %v851
    %v931 = vxor.u32 %v930, 2147483648
    %v932 = vmul.f32 %v931, 1.442695
    %v933 = vpow.pop %v932
    %v934 = vadd.f32 %v933, 1.0
    %v935 = vrcp.pop %v934
    %v936 = vmul.f32 1.0, %v935
    %v937 = vtanh.pop %v930
    %v938 = vmul.f32 %v936, %v671
    %940 = vrot.lane.b32.xlu0 %v937, 32
    %v941 = vpop.permute.xlu0 %940
    %v943 = vmul.f32 %v936, %v941
    %945 = vrot.lane.b32.xlu0 %v943, 32
    %v946 = vpop.permute.xlu0 %945
    %v948 = vadd.f32 %v938, %v946
    %v949 = vtanh.pop %v948
    %951 = vrot.lane.b32.xlu0 %v949, 32
    %v952 = vpop.permute.xlu0 %951
    %v954 = vmul.f32 %v936, %v952
    %955 = vmatprep.subr.mxu0 0.0
    %956 = vmatpush1.msra.mxu0 0.0
    %957 = vmatprep.subr.mxu0 0.0
    %958 = vmatpush1.msra.mxu0 0.0
    %959 = vmatprep.subr.mxu0 0.0
    %960 = vmatpush1.msra.mxu0 0.0
    %961 = vmatprep.subr.mxu0 0.0
    %962 = vmatpush1.msra.mxu0 0.0
    %963 = vmatprep.subr.mxu0 0.0
    %964 = vmatpush1.msra.mxu0 0.0
    %965 = vmatprep.subr.mxu0 0.0
    %966 = vmatpush1.msra.mxu0 0.0
    %967 = vmatprep.subr.mxu0 0.0
    %968 = vmatpush1.msra.mxu0 0.0
    %969 = vmatprep.subr.mxu0 0.0
    %970 = vmatpush1.msra.mxu0 0.0
    %971 = vmatprep.subr.mxu0 0.0
    %972 = vmatpush1.msra.mxu0 0.0
    %973 = vmatprep.subr.mxu0 0.0
    %974 = vmatpush1.msra.mxu0 0.0
    %975 = vmatprep.subr.mxu0 0.0
    %976 = vmatpush1.msra.mxu0 0.0
    %977 = vmatprep.subr.mxu0 0.0
    %978 = vmatpush1.msra.mxu0 0.0
    %979 = vmatprep.subr.mxu0 0.0
    %980 = vmatpush1.msra.mxu0 %v29
    %981 = vmatprep.subr.mxu0 0.0
    %982 = vmatpush1.msra.mxu0 %v28
    %983 = vmatprep.subr.mxu0 0.0
    %984 = vmatpush1.msra.mxu0 %v27
    %985 = vmatprep.subr.mxu0 0.0
    %986 = vmatpush1.msra.mxu0 %v26
    %987 = vmatprep.subr.mxu0 0.0
    %988 = vmatpush2.msra.mxu0 0.0
    %989 = vmatprep.subr.mxu0 0.0
    %990 = vmatpush2.msra.mxu0 0.0
    %991 = vmatprep.subr.mxu0 0.0
    %992 = vmatpush2.msra.mxu0 0.0
    %993 = vmatprep.subr.mxu0 0.0
    %994 = vmatpush2.msra.mxu0 0.0
    %995 = vmatprep.subr.mxu0 0.0
    %996 = vmatpush2.msra.mxu0 0.0
    %997 = vmatprep.subr.mxu0 0.0
    %998 = vmatpush2.msra.mxu0 0.0
    %999 = vmatprep.subr.mxu0 0.0
    %1000 = vmatpush2.msra.mxu0 0.0
    %1001 = vmatprep.subr.mxu0 0.0
    %1002 = vmatpush2.msra.mxu0 0.0
    %1003 = vmatprep.subr.mxu0 0.0
    %1004 = vmatpush2.msra.mxu0 0.0
    %1005 = vmatprep.subr.mxu0 0.0
    %1006 = vmatpush2.msra.mxu0 0.0
    %1007 = vmatprep.subr.mxu0 0.0
    %1008 = vmatpush2.msra.mxu0 0.0
    %1009 = vmatprep.subr.mxu0 0.0
    %1010 = vmatpush2.msra.mxu0 0.0
    %1011 = vmatprep.subr.mxu0 0.0
    %1012 = vmatpush2.msra.mxu0 0.0
    %1013 = vmatprep.subr.mxu0 0.0
    %1014 = vmatpush2.msra.mxu0 0.0
    %1015 = vmatprep.subr.mxu0 0.0
    %1016 = vmatpush2.msra.mxu0 0.0
    %1017 = vmatprep.subr.mxu0 0.0
    %1018 = vmatpush2.msra.mxu0 0.0
    %1019 = vmatprep.mubr.f32.mxu0 0.0
    %1020 = vmatmul.mubr.f32.gmra.mxu0 %v858
    %v1021 = vpop.f32.mrf.mxu0
    %v1022 = vadd.f32 0.0, %v1021
    %v1023 = vpop.f32.mrf.mxu0
    %1024 = vdwg.mxu0
    %v1026 = vrot.slane %v1022, 5
    %v1028 = vadd.f32 %v129, %v1026
    %v1029 = vxor.u32 %v1028, 2147483648
    %v1030 = vmul.f32 %v1029, 1.442695
    %v1031 = vpow.pop %v1030
    %v1032 = vadd.f32 %v1031, 1.0
    %v1033 = vrcp.pop %v1032
    %v1034 = vmul.f32 1.0, %v1033
    %v1035 = vtanh.pop %v1028
    %v1037 = vrot.slane %v772, 7
    %v1039 = vmul.f32 %v1034, %v1037
    %1041 = vrot.lane.b32.xlu0 %v1035, 32
    %v1042 = vpop.permute.xlu0 %1041
    %v1044 = vmul.f32 %v1034, %v1042
    %1046 = vrot.lane.b32.xlu0 %v1044, 32
    %v1047 = vpop.permute.xlu0 %1046
    %v1049 = vadd.f32 %v1039, %v1047
    %v1050 = vtanh.pop %v1049
    %1052 = vrot.lane.b32.xlu0 %v1050, 32
    %v1053 = vpop.permute.xlu0 %1052
    %v1055 = vmul.f32 %v1034, %v1053
    %1057 = vrot.lane.b32.xlu0 %v954, 64
    %v1058 = vpop.permute.xlu0 %1057
    %v1059 = vsel %vm132, %v1058, 0
    %1061 = vmatprep.subr.mxu0 0.0
    %1062 = vmatpush1.msra.mxu0 0.0
    %1063 = vmatprep.subr.mxu0 0.0
    %1064 = vmatpush1.msra.mxu0 0.0
    %1065 = vmatprep.subr.mxu0 0.0
    %1066 = vmatpush1.msra.mxu0 0.0
    %1067 = vmatprep.subr.mxu0 0.0
    %1068 = vmatpush1.msra.mxu0 0.0
    %1069 = vmatprep.subr.mxu0 0.0
    %1070 = vmatpush1.msra.mxu0 0.0
    %1071 = vmatprep.subr.mxu0 0.0
    %1072 = vmatpush1.msra.mxu0 0.0
    %1073 = vmatprep.subr.mxu0 0.0
    %1074 = vmatpush1.msra.mxu0 0.0
    %1075 = vmatprep.subr.mxu0 0.0
    %1076 = vmatpush1.msra.mxu0 0.0
    %1077 = vmatprep.subr.mxu0 0.0
    %1078 = vmatpush1.msra.mxu0 0.0
    %1079 = vmatprep.subr.mxu0 0.0
    %1080 = vmatpush1.msra.mxu0 0.0
    %1081 = vmatprep.subr.mxu0 0.0
    %1082 = vmatpush1.msra.mxu0 0.0
    %1083 = vmatprep.subr.mxu0 0.0
    %1084 = vmatpush1.msra.mxu0 0.0
    %1085 = vmatprep.subr.mxu0 0.0
    %1086 = vmatpush1.msra.mxu0 %v33
    %1087 = vmatprep.subr.mxu0 0.0
    %1088 = vmatpush1.msra.mxu0 %v32
    %1089 = vmatprep.subr.mxu0 0.0
    %1090 = vmatpush1.msra.mxu0 %v31
    %1091 = vmatprep.subr.mxu0 0.0
    %1092 = vmatpush1.msra.mxu0 %v30
    %1093 = vmatprep.subr.mxu0 0.0
    %1094 = vmatpush2.msra.mxu0 0.0
    %1095 = vmatprep.subr.mxu0 0.0
    %1096 = vmatpush2.msra.mxu0 0.0
    %1097 = vmatprep.subr.mxu0 0.0
    %1098 = vmatpush2.msra.mxu0 0.0
    %1099 = vmatprep.subr.mxu0 0.0
    %1100 = vmatpush2.msra.mxu0 0.0
    %1101 = vmatprep.subr.mxu0 0.0
    %1102 = vmatpush2.msra.mxu0 0.0
    %1103 = vmatprep.subr.mxu0 0.0
    %1104 = vmatpush2.msra.mxu0 0.0
    %1105 = vmatprep.subr.mxu0 0.0
    %1106 = vmatpush2.msra.mxu0 0.0
    %1107 = vmatprep.subr.mxu0 0.0
    %1108 = vmatpush2.msra.mxu0 0.0
    %1109 = vmatprep.subr.mxu0 0.0
    %1110 = vmatpush2.msra.mxu0 0.0
    %1111 = vmatprep.subr.mxu0 0.0
    %1112 = vmatpush2.msra.mxu0 0.0
    %1113 = vmatprep.subr.mxu0 0.0
    %1114 = vmatpush2.msra.mxu0 0.0
    %1115 = vmatprep.subr.mxu0 0.0
    %1116 = vmatpush2.msra.mxu0 0.0
    %1117 = vmatprep.subr.mxu0 0.0
    %1118 = vmatpush2.msra.mxu0 0.0
    %1119 = vmatprep.subr.mxu0 0.0
    %1120 = vmatpush2.msra.mxu0 0.0
    %1121 = vmatprep.subr.mxu0 0.0
    %1122 = vmatpush2.msra.mxu0 0.0
    %1123 = vmatprep.subr.mxu0 0.0
    %1124 = vmatpush2.msra.mxu0 0.0
    %1125 = vmatprep.mubr.f32.mxu0 0.0
    %1126 = vmatmul.mubr.f32.gmra.mxu0 %v1059
    %v1127 = vpop.f32.mrf.mxu0
    %v1128 = vadd.f32 0.0, %v1127
    %v1129 = vpop.f32.mrf.mxu0
    %1130 = vdwg.mxu0
    %v1132 = vrot.slane %v1055, 3
    %1133 = vrot.lane.b32.xlu0 %v1132, 64
    %v1134 = vpop.permute.xlu0 %1133
    %v1135 = vsel %vm132, %v1134, 0
    %1137 = vmatprep.subr.mxu0 0.0
    %1138 = vmatpush1.msra.mxu0 0.0
    %1139 = vmatprep.subr.mxu0 0.0
    %1140 = vmatpush1.msra.mxu0 0.0
    %1141 = vmatprep.subr.mxu0 0.0
    %1142 = vmatpush1.msra.mxu0 0.0
    %1143 = vmatprep.subr.mxu0 0.0
    %1144 = vmatpush1.msra.mxu0 0.0
    %1145 = vmatprep.subr.mxu0 0.0
    %1146 = vmatpush1.msra.mxu0 0.0
    %1147 = vmatprep.subr.mxu0 0.0
    %1148 = vmatpush1.msra.mxu0 0.0
    %1149 = vmatprep.subr.mxu0 0.0
    %1150 = vmatpush1.msra.mxu0 0.0
    %1151 = vmatprep.subr.mxu0 0.0
    %1152 = vmatpush1.msra.mxu0 0.0
    %1153 = vmatprep.subr.mxu0 0.0
    %1154 = vmatpush1.msra.mxu0 0.0
    %1155 = vmatprep.subr.mxu0 0.0
    %1156 = vmatpush1.msra.mxu0 0.0
    %1157 = vmatprep.subr.mxu0 0.0
    %1158 = vmatpush1.msra.mxu0 0.0
    %1159 = vmatprep.subr.mxu0 0.0
    %1160 = vmatpush1.msra.mxu0 0.0
    %1161 = vmatprep.subr.mxu0 0.0
    %1162 = vmatpush1.msra.mxu0 %v25
    %1163 = vmatprep.subr.mxu0 0.0
    %1164 = vmatpush1.msra.mxu0 %v24
    %1165 = vmatprep.subr.mxu0 0.0
    %1166 = vmatpush1.msra.mxu0 %v23
    %1167 = vmatprep.subr.mxu0 0.0
    %1168 = vmatpush1.msra.mxu0 %v22
    %1169 = vmatprep.subr.mxu0 0.0
    %1170 = vmatpush2.msra.mxu0 0.0
    %1171 = vmatprep.subr.mxu0 0.0
    %1172 = vmatpush2.msra.mxu0 0.0
    %1173 = vmatprep.subr.mxu0 0.0
    %1174 = vmatpush2.msra.mxu0 0.0
    %1175 = vmatprep.subr.mxu0 0.0
    %1176 = vmatpush2.msra.mxu0 0.0
    %1177 = vmatprep.subr.mxu0 0.0
    %1178 = vmatpush2.msra.mxu0 0.0
    %1179 = vmatprep.subr.mxu0 0.0
    %1180 = vmatpush2.msra.mxu0 0.0
    %1181 = vmatprep.subr.mxu0 0.0
    %1182 = vmatpush2.msra.mxu0 0.0
    %1183 = vmatprep.subr.mxu0 0.0
    %1184 = vmatpush2.msra.mxu0 0.0
    %1185 = vmatprep.subr.mxu0 0.0
    %1186 = vmatpush2.msra.mxu0 0.0
    %1187 = vmatprep.subr.mxu0 0.0
    %1188 = vmatpush2.msra.mxu0 0.0
    %1189 = vmatprep.subr.mxu0 0.0
    %1190 = vmatpush2.msra.mxu0 0.0
    %1191 = vmatprep.subr.mxu0 0.0
    %1192 = vmatpush2.msra.mxu0 0.0
    %1193 = vmatprep.subr.mxu0 0.0
    %1194 = vmatpush2.msra.mxu0 0.0
    %1195 = vmatprep.subr.mxu0 0.0
    %1196 = vmatpush2.msra.mxu0 0.0
    %1197 = vmatprep.subr.mxu0 0.0
    %1198 = vmatpush2.msra.mxu0 0.0
    %1199 = vmatprep.subr.mxu0 0.0
    %1200 = vmatpush2.msra.mxu0 0.0
    %1201 = vmatprep.mubr.f32.mxu0 0.0
    %1202 = vmatmul.mubr.f32.gmra.mxu0 %v1135
    %v1203 = vpop.f32.mrf.mxu0
    %v1204 = vadd.f32 %v35, %v1203
    %v1205 = vpop.f32.mrf.mxu0
    %1206 = vdwg.mxu0
    %v1207 = vadd.f32 %v1204, %v1128
    %v1208 = vxor.u32 %v1207, 2147483648
    %v1209 = vmul.f32 %v1208, 1.442695
    %v1210 = vpow.pop %v1209
    %v1211 = vadd.f32 %v1210, 1.0
    %v1212 = vrcp.pop %v1211
    %v1213 = vmul.f32 1.0, %v1212
    %v1214 = vtanh.pop %v1207
    %v1215 = vmul.f32 %v1213, %v948
    %1217 = vrot.lane.b32.xlu0 %v1214, 32
    %v1218 = vpop.permute.xlu0 %1217
    %v1220 = vmul.f32 %v1213, %v1218
    %1222 = vrot.lane.b32.xlu0 %v1220, 32
    %v1223 = vpop.permute.xlu0 %1222
    %v1225 = vadd.f32 %v1215, %v1223
    %v1226 = vtanh.pop %v1225
    %1228 = vrot.lane.b32.xlu0 %v1226, 32
    %v1229 = vpop.permute.xlu0 %1228
    %v1231 = vmul.f32 %v1213, %v1229
    %1232 = vmatprep.subr.mxu0 0.0
    %1233 = vmatpush1.msra.mxu0 0.0
    %1234 = vmatprep.subr.mxu0 0.0
    %1235 = vmatpush1.msra.mxu0 0.0
    %1236 = vmatprep.subr.mxu0 0.0
    %1237 = vmatpush1.msra.mxu0 0.0
    %1238 = vmatprep.subr.mxu0 0.0
    %1239 = vmatpush1.msra.mxu0 0.0
    %1240 = vmatprep.subr.mxu0 0.0
    %1241 = vmatpush1.msra.mxu0 0.0
    %1242 = vmatprep.subr.mxu0 0.0
    %1243 = vmatpush1.msra.mxu0 0.0
    %1244 = vmatprep.subr.mxu0 0.0
    %1245 = vmatpush1.msra.mxu0 0.0
    %1246 = vmatprep.subr.mxu0 0.0
    %1247 = vmatpush1.msra.mxu0 0.0
    %1248 = vmatprep.subr.mxu0 0.0
    %1249 = vmatpush1.msra.mxu0 0.0
    %1250 = vmatprep.subr.mxu0 0.0
    %1251 = vmatpush1.msra.mxu0 0.0
    %1252 = vmatprep.subr.mxu0 0.0
    %1253 = vmatpush1.msra.mxu0 0.0
    %1254 = vmatprep.subr.mxu0 0.0
    %1255 = vmatpush1.msra.mxu0 0.0
    %1256 = vmatprep.subr.mxu0 0.0
    %1257 = vmatpush1.msra.mxu0 %v29
    %1258 = vmatprep.subr.mxu0 0.0
    %1259 = vmatpush1.msra.mxu0 %v28
    %1260 = vmatprep.subr.mxu0 0.0
    %1261 = vmatpush1.msra.mxu0 %v27
    %1262 = vmatprep.subr.mxu0 0.0
    %1263 = vmatpush1.msra.mxu0 %v26
    %1264 = vmatprep.subr.mxu0 0.0
    %1265 = vmatpush2.msra.mxu0 0.0
    %1266 = vmatprep.subr.mxu0 0.0
    %1267 = vmatpush2.msra.mxu0 0.0
    %1268 = vmatprep.subr.mxu0 0.0
    %1269 = vmatpush2.msra.mxu0 0.0
    %1270 = vmatprep.subr.mxu0 0.0
    %1271 = vmatpush2.msra.mxu0 0.0
    %1272 = vmatprep.subr.mxu0 0.0
    %1273 = vmatpush2.msra.mxu0 0.0
    %1274 = vmatprep.subr.mxu0 0.0
    %1275 = vmatpush2.msra.mxu0 0.0
    %1276 = vmatprep.subr.mxu0 0.0
    %1277 = vmatpush2.msra.mxu0 0.0
    %1278 = vmatprep.subr.mxu0 0.0
    %1279 = vmatpush2.msra.mxu0 0.0
    %1280 = vmatprep.subr.mxu0 0.0
    %1281 = vmatpush2.msra.mxu0 0.0
    %1282 = vmatprep.subr.mxu0 0.0
    %1283 = vmatpush2.msra.mxu0 0.0
    %1284 = vmatprep.subr.mxu0 0.0
    %1285 = vmatpush2.msra.mxu0 0.0
    %1286 = vmatprep.subr.mxu0 0.0
    %1287 = vmatpush2.msra.mxu0 0.0
    %1288 = vmatprep.subr.mxu0 0.0
    %1289 = vmatpush2.msra.mxu0 0.0
    %1290 = vmatprep.subr.mxu0 0.0
    %1291 = vmatpush2.msra.mxu0 0.0
    %1292 = vmatprep.subr.mxu0 0.0
    %1293 = vmatpush2.msra.mxu0 0.0
    %1294 = vmatprep.subr.mxu0 0.0
    %1295 = vmatpush2.msra.mxu0 0.0
    %1296 = vmatprep.mubr.f32.mxu0 0.0
    %1297 = vmatmul.mubr.f32.gmra.mxu0 %v1135
    %v1298 = vpop.f32.mrf.mxu0
    %v1299 = vadd.f32 0.0, %v1298
    %v1300 = vpop.f32.mrf.mxu0
    %1301 = vdwg.mxu0
    %v1303 = vrot.slane %v1299, 4
    %v1305 = vadd.f32 %v129, %v1303
    %v1306 = vxor.u32 %v1305, 2147483648
    %v1307 = vmul.f32 %v1306, 1.442695
    %v1308 = vpow.pop %v1307
    %v1309 = vadd.f32 %v1308, 1.0
    %v1310 = vrcp.pop %v1309
    %v1311 = vmul.f32 1.0, %v1310
    %v1312 = vtanh.pop %v1305
    %v1314 = vrot.slane %v1049, 7
    %v1316 = vmul.f32 %v1311, %v1314
    %1318 = vrot.lane.b32.xlu0 %v1312, 32
    %v1319 = vpop.permute.xlu0 %1318
    %v1321 = vmul.f32 %v1311, %v1319
    %1323 = vrot.lane.b32.xlu0 %v1321, 32
    %v1324 = vpop.permute.xlu0 %1323
    %v1326 = vadd.f32 %v1316, %v1324
    %v1327 = vtanh.pop %v1326
    %1329 = vrot.lane.b32.xlu0 %v1327, 32
    %v1330 = vpop.permute.xlu0 %1329
    %v1332 = vmul.f32 %v1311, %v1330
    %1334 = vrot.lane.b32.xlu0 %v1231, 64
    %v1335 = vpop.permute.xlu0 %1334
    %v1336 = vsel %vm132, %v1335, 0
    %1338 = vmatprep.subr.mxu0 0.0
    %1339 = vmatpush1.msra.mxu0 0.0
    %1340 = vmatprep.subr.mxu0 0.0
    %1341 = vmatpush1.msra.mxu0 0.0
    %1342 = vmatprep.subr.mxu0 0.0
    %1343 = vmatpush1.msra.mxu0 0.0
    %1344 = vmatprep.subr.mxu0 0.0
    %1345 = vmatpush1.msra.mxu0 0.0
    %1346 = vmatprep.subr.mxu0 0.0
    %1347 = vmatpush1.msra.mxu0 0.0
    %1348 = vmatprep.subr.mxu0 0.0
    %1349 = vmatpush1.msra.mxu0 0.0
    %1350 = vmatprep.subr.mxu0 0.0
    %1351 = vmatpush1.msra.mxu0 0.0
    %1352 = vmatprep.subr.mxu0 0.0
    %1353 = vmatpush1.msra.mxu0 0.0
    %1354 = vmatprep.subr.mxu0 0.0
    %1355 = vmatpush1.msra.mxu0 0.0
    %1356 = vmatprep.subr.mxu0 0.0
    %1357 = vmatpush1.msra.mxu0 0.0
    %1358 = vmatprep.subr.mxu0 0.0
    %1359 = vmatpush1.msra.mxu0 0.0
    %1360 = vmatprep.subr.mxu0 0.0
    %1361 = vmatpush1.msra.mxu0 0.0
    %1362 = vmatprep.subr.mxu0 0.0
    %1363 = vmatpush1.msra.mxu0 %v33
    %1364 = vmatprep.subr.mxu0 0.0
    %1365 = vmatpush1.msra.mxu0 %v32
    %1366 = vmatprep.subr.mxu0 0.0
    %1367 = vmatpush1.msra.mxu0 %v31
    %1368 = vmatprep.subr.mxu0 0.0
    %1369 = vmatpush1.msra.mxu0 %v30
    %1370 = vmatprep.subr.mxu0 0.0
    %1371 = vmatpush2.msra.mxu0 0.0
    %1372 = vmatprep.subr.mxu0 0.0
    %1373 = vmatpush2.msra.mxu0 0.0
    %1374 = vmatprep.subr.mxu0 0.0
    %1375 = vmatpush2.msra.mxu0 0.0
    %1376 = vmatprep.subr.mxu0 0.0
    %1377 = vmatpush2.msra.mxu0 0.0
    %1378 = vmatprep.subr.mxu0 0.0
    %1379 = vmatpush2.msra.mxu0 0.0
    %1380 = vmatprep.subr.mxu0 0.0
    %1381 = vmatpush2.msra.mxu0 0.0
    %1382 = vmatprep.subr.mxu0 0.0
    %1383 = vmatpush2.msra.mxu0 0.0
    %1384 = vmatprep.subr.mxu0 0.0
    %1385 = vmatpush2.msra.mxu0 0.0
    %1386 = vmatprep.subr.mxu0 0.0
    %1387 = vmatpush2.msra.mxu0 0.0
    %1388 = vmatprep.subr.mxu0 0.0
    %1389 = vmatpush2.msra.mxu0 0.0
    %1390 = vmatprep.subr.mxu0 0.0
    %1391 = vmatpush2.msra.mxu0 0.0
    %1392 = vmatprep.subr.mxu0 0.0
    %1393 = vmatpush2.msra.mxu0 0.0
    %1394 = vmatprep.subr.mxu0 0.0
    %1395 = vmatpush2.msra.mxu0 0.0
    %1396 = vmatprep.subr.mxu0 0.0
    %1397 = vmatpush2.msra.mxu0 0.0
    %1398 = vmatprep.subr.mxu0 0.0
    %1399 = vmatpush2.msra.mxu0 0.0
    %1400 = vmatprep.subr.mxu0 0.0
    %1401 = vmatpush2.msra.mxu0 0.0
    %1402 = vmatprep.mubr.f32.mxu0 0.0
    %1403 = vmatmul.mubr.f32.gmra.mxu0 %v1336
    %v1404 = vpop.f32.mrf.mxu0
    %v1405 = vadd.f32 0.0, %v1404
    %v1406 = vpop.f32.mrf.mxu0
    %1407 = vdwg.mxu0
    %v1409 = vrot.slane %v1332, 4
    %1410 = vrot.lane.b32.xlu0 %v1409, 64
    %v1411 = vpop.permute.xlu0 %1410
    %v1412 = vsel %vm132, %v1411, 0
    %1414 = vmatprep.subr.mxu0 0.0
    %1415 = vmatpush1.msra.mxu0 0.0
    %1416 = vmatprep.subr.mxu0 0.0
    %1417 = vmatpush1.msra.mxu0 0.0
    %1418 = vmatprep.subr.mxu0 0.0
    %1419 = vmatpush1.msra.mxu0 0.0
    %1420 = vmatprep.subr.mxu0 0.0
    %1421 = vmatpush1.msra.mxu0 0.0
    %1422 = vmatprep.subr.mxu0 0.0
    %1423 = vmatpush1.msra.mxu0 0.0
    %1424 = vmatprep.subr.mxu0 0.0
    %1425 = vmatpush1.msra.mxu0 0.0
    %1426 = vmatprep.subr.mxu0 0.0
    %1427 = vmatpush1.msra.mxu0 0.0
    %1428 = vmatprep.subr.mxu0 0.0
    %1429 = vmatpush1.msra.mxu0 0.0
    %1430 = vmatprep.subr.mxu0 0.0
    %1431 = vmatpush1.msra.mxu0 0.0
    %1432 = vmatprep.subr.mxu0 0.0
    %1433 = vmatpush1.msra.mxu0 0.0
    %1434 = vmatprep.subr.mxu0 0.0
    %1435 = vmatpush1.msra.mxu0 0.0
    %1436 = vmatprep.subr.mxu0 0.0
    %1437 = vmatpush1.msra.mxu0 0.0
    %1438 = vmatprep.subr.mxu0 0.0
    %1439 = vmatpush1.msra.mxu0 %v25
    %1440 = vmatprep.subr.mxu0 0.0
    %1441 = vmatpush1.msra.mxu0 %v24
    %1442 = vmatprep.subr.mxu0 0.0
    %1443 = vmatpush1.msra.mxu0 %v23
    %1444 = vmatprep.subr.mxu0 0.0
    %1445 = vmatpush1.msra.mxu0 %v22
    %1446 = vmatprep.subr.mxu0 0.0
    %1447 = vmatpush2.msra.mxu0 0.0
    %1448 = vmatprep.subr.mxu0 0.0
    %1449 = vmatpush2.msra.mxu0 0.0
    %1450 = vmatprep.subr.mxu0 0.0
    %1451 = vmatpush2.msra.mxu0 0.0
    %1452 = vmatprep.subr.mxu0 0.0
    %1453 = vmatpush2.msra.mxu0 0.0
    %1454 = vmatprep.subr.mxu0 0.0
    %1455 = vmatpush2.msra.mxu0 0.0
    %1456 = vmatprep.subr.mxu0 0.0
    %1457 = vmatpush2.msra.mxu0 0.0
    %1458 = vmatprep.subr.mxu0 0.0
    %1459 = vmatpush2.msra.mxu0 0.0
    %1460 = vmatprep.subr.mxu0 0.0
    %1461 = vmatpush2.msra.mxu0 0.0
    %1462 = vmatprep.subr.mxu0 0.0
    %1463 = vmatpush2.msra.mxu0 0.0
    %1464 = vmatprep.subr.mxu0 0.0
    %1465 = vmatpush2.msra.mxu0 0.0
    %1466 = vmatprep.subr.mxu0 0.0
    %1467 = vmatpush2.msra.mxu0 0.0
    %1468 = vmatprep.subr.mxu0 0.0
    %1469 = vmatpush2.msra.mxu0 0.0
    %1470 = vmatprep.subr.mxu0 0.0
    %1471 = vmatpush2.msra.mxu0 0.0
    %1472 = vmatprep.subr.mxu0 0.0
    %1473 = vmatpush2.msra.mxu0 0.0
    %1474 = vmatprep.subr.mxu0 0.0
    %1475 = vmatpush2.msra.mxu0 0.0
    %1476 = vmatprep.subr.mxu0 0.0
    %1477 = vmatpush2.msra.mxu0 0.0
    %1478 = vmatprep.mubr.f32.mxu0 0.0
    %1479 = vmatmul.mubr.f32.gmra.mxu0 %v1412
    %v1480 = vpop.f32.mrf.mxu0
    %v1481 = vadd.f32 %v35, %v1480
    %v1482 = vpop.f32.mrf.mxu0
    %1483 = vdwg.mxu0
    %v1484 = vadd.f32 %v1481, %v1405
    %v1485 = vxor.u32 %v1484, 2147483648
    %v1486 = vmul.f32 %v1485, 1.442695
    %v1487 = vpow.pop %v1486
    %v1488 = vadd.f32 %v1487, 1.0
    %v1489 = vrcp.pop %v1488
    %v1490 = vmul.f32 1.0, %v1489
    %v1491 = vtanh.pop %v1484
    %v1492 = vmul.f32 %v1490, %v1225
    %1494 = vrot.lane.b32.xlu0 %v1491, 32
    %v1495 = vpop.permute.xlu0 %1494
    %v1497 = vmul.f32 %v1490, %v1495
    %1499 = vrot.lane.b32.xlu0 %v1497, 32
    %v1500 = vpop.permute.xlu0 %1499
    %v1502 = vadd.f32 %v1492, %v1500
    %v1503 = vtanh.pop %v1502
    %1505 = vrot.lane.b32.xlu0 %v1503, 32
    %v1506 = vpop.permute.xlu0 %1505
    %v1508 = vmul.f32 %v1490, %v1506
    %1509 = vmatprep.subr.mxu0 0.0
    %1510 = vmatpush1.msra.mxu0 0.0
    %1511 = vmatprep.subr.mxu0 0.0
    %1512 = vmatpush1.msra.mxu0 0.0
    %1513 = vmatprep.subr.mxu0 0.0
    %1514 = vmatpush1.msra.mxu0 0.0
    %1515 = vmatprep.subr.mxu0 0.0
    %1516 = vmatpush1.msra.mxu0 0.0
    %1517 = vmatprep.subr.mxu0 0.0
    %1518 = vmatpush1.msra.mxu0 0.0
    %1519 = vmatprep.subr.mxu0 0.0
    %1520 = vmatpush1.msra.mxu0 0.0
    %1521 = vmatprep.subr.mxu0 0.0
    %1522 = vmatpush1.msra.mxu0 0.0
    %1523 = vmatprep.subr.mxu0 0.0
    %1524 = vmatpush1.msra.mxu0 0.0
    %1525 = vmatprep.subr.mxu0 0.0
    %1526 = vmatpush1.msra.mxu0 0.0
    %1527 = vmatprep.subr.mxu0 0.0
    %1528 = vmatpush1.msra.mxu0 0.0
    %1529 = vmatprep.subr.mxu0 0.0
    %1530 = vmatpush1.msra.mxu0 0.0
    %1531 = vmatprep.subr.mxu0 0.0
    %1532 = vmatpush1.msra.mxu0 0.0
    %1533 = vmatprep.subr.mxu0 0.0
    %1534 = vmatpush1.msra.mxu0 %v29
    %1535 = vmatprep.subr.mxu0 0.0
    %1536 = vmatpush1.msra.mxu0 %v28
    %1537 = vmatprep.subr.mxu0 0.0
    %1538 = vmatpush1.msra.mxu0 %v27
    %1539 = vmatprep.subr.mxu0 0.0
    %1540 = vmatpush1.msra.mxu0 %v26
    %1541 = vmatprep.subr.mxu0 0.0
    %1542 = vmatpush2.msra.mxu0 0.0
    %1543 = vmatprep.subr.mxu0 0.0
    %1544 = vmatpush2.msra.mxu0 0.0
    %1545 = vmatprep.subr.mxu0 0.0
    %1546 = vmatpush2.msra.mxu0 0.0
    %1547 = vmatprep.subr.mxu0 0.0
    %1548 = vmatpush2.msra.mxu0 0.0
    %1549 = vmatprep.subr.mxu0 0.0
    %1550 = vmatpush2.msra.mxu0 0.0
    %1551 = vmatprep.subr.mxu0 0.0
    %1552 = vmatpush2.msra.mxu0 0.0
    %1553 = vmatprep.subr.mxu0 0.0
    %1554 = vmatpush2.msra.mxu0 0.0
    %1555 = vmatprep.subr.mxu0 0.0
    %1556 = vmatpush2.msra.mxu0 0.0
    %1557 = vmatprep.subr.mxu0 0.0
    %1558 = vmatpush2.msra.mxu0 0.0
    %1559 = vmatprep.subr.mxu0 0.0
    %1560 = vmatpush2.msra.mxu0 0.0
    %1561 = vmatprep.subr.mxu0 0.0
    %1562 = vmatpush2.msra.mxu0 0.0
    %1563 = vmatprep.subr.mxu0 0.0
    %1564 = vmatpush2.msra.mxu0 0.0
    %1565 = vmatprep.subr.mxu0 0.0
    %1566 = vmatpush2.msra.mxu0 0.0
    %1567 = vmatprep.subr.mxu0 0.0
    %1568 = vmatpush2.msra.mxu0 0.0
    %1569 = vmatprep.subr.mxu0 0.0
    %1570 = vmatpush2.msra.mxu0 0.0
    %1571 = vmatprep.subr.mxu0 0.0
    %1572 = vmatpush2.msra.mxu0 0.0
    %1573 = vmatprep.mubr.f32.mxu0 0.0
    %1574 = vmatmul.mubr.f32.gmra.mxu0 %v1412
    %v1575 = vpop.f32.mrf.mxu0
    %v1576 = vadd.f32 0.0, %v1575
    %v1577 = vpop.f32.mrf.mxu0
    %1578 = vdwg.mxu0
    %v1580 = vrot.slane %v1576, 3
    %v1582 = vadd.f32 %v129, %v1580
    %v1583 = vxor.u32 %v1582, 2147483648
    %v1584 = vmul.f32 %v1583, 1.442695
    %v1585 = vpow.pop %v1584
    %v1586 = vadd.f32 %v1585, 1.0
    %v1587 = vrcp.pop %v1586
    %v1588 = vmul.f32 1.0, %v1587
    %v1589 = vtanh.pop %v1582
    %v1591 = vrot.slane %v1326, 7
    %v1593 = vmul.f32 %v1588, %v1591
    %1595 = vrot.lane.b32.xlu0 %v1589, 32
    %v1596 = vpop.permute.xlu0 %1595
    %v1598 = vmul.f32 %v1588, %v1596
    %1600 = vrot.lane.b32.xlu0 %v1598, 32
    %v1601 = vpop.permute.xlu0 %1600
    %v1603 = vadd.f32 %v1593, %v1601
    %v1604 = vtanh.pop %v1603
    %1606 = vrot.lane.b32.xlu0 %v1604, 32
    %v1607 = vpop.permute.xlu0 %1606
    %v1609 = vmul.f32 %v1588, %v1607
    %1611 = vrot.lane.b32.xlu0 %v1508, 64
    %v1612 = vpop.permute.xlu0 %1611
    %v1613 = vsel %vm132, %v1612, 0
    %1615 = vmatprep.subr.mxu0 0.0
    %1616 = vmatpush1.msra.mxu0 0.0
    %1617 = vmatprep.subr.mxu0 0.0
    %1618 = vmatpush1.msra.mxu0 0.0
    %1619 = vmatprep.subr.mxu0 0.0
    %1620 = vmatpush1.msra.mxu0 0.0
    %1621 = vmatprep.subr.mxu0 0.0
    %1622 = vmatpush1.msra.mxu0 0.0
    %1623 = vmatprep.subr.mxu0 0.0
    %1624 = vmatpush1.msra.mxu0 0.0
    %1625 = vmatprep.subr.mxu0 0.0
    %1626 = vmatpush1.msra.mxu0 0.0
    %1627 = vmatprep.subr.mxu0 0.0
    %1628 = vmatpush1.msra.mxu0 0.0
    %1629 = vmatprep.subr.mxu0 0.0
    %1630 = vmatpush1.msra.mxu0 0.0
    %1631 = vmatprep.subr.mxu0 0.0
    %1632 = vmatpush1.msra.mxu0 0.0
    %1633 = vmatprep.subr.mxu0 0.0
    %1634 = vmatpush1.msra.mxu0 0.0
    %1635 = vmatprep.subr.mxu0 0.0
    %1636 = vmatpush1.msra.mxu0 0.0
    %1637 = vmatprep.subr.mxu0 0.0
    %1638 = vmatpush1.msra.mxu0 0.0
    %1639 = vmatprep.subr.mxu0 0.0
    %1640 = vmatpush1.msra.mxu0 %v33
    %1641 = vmatprep.subr.mxu0 0.0
    %1642 = vmatpush1.msra.mxu0 %v32
    %1643 = vmatprep.subr.mxu0 0.0
    %1644 = vmatpush1.msra.mxu0 %v31
    %1645 = vmatprep.subr.mxu0 0.0
    %1646 = vmatpush1.msra.mxu0 %v30
    %1647 = vmatprep.subr.mxu0 0.0
    %1648 = vmatpush2.msra.mxu0 0.0
    %1649 = vmatprep.subr.mxu0 0.0
    %1650 = vmatpush2.msra.mxu0 0.0
    %1651 = vmatprep.subr.mxu0 0.0
    %1652 = vmatpush2.msra.mxu0 0.0
    %1653 = vmatprep.subr.mxu0 0.0
    %1654 = vmatpush2.msra.mxu0 0.0
    %1655 = vmatprep.subr.mxu0 0.0
    %1656 = vmatpush2.msra.mxu0 0.0
    %1657 = vmatprep.subr.mxu0 0.0
    %1658 = vmatpush2.msra.mxu0 0.0
    %1659 = vmatprep.subr.mxu0 0.0
    %1660 = vmatpush2.msra.mxu0 0.0
    %1661 = vmatprep.subr.mxu0 0.0
    %1662 = vmatpush2.msra.mxu0 0.0
    %1663 = vmatprep.subr.mxu0 0.0
    %1664 = vmatpush2.msra.mxu0 0.0
    %1665 = vmatprep.subr.mxu0 0.0
    %1666 = vmatpush2.msra.mxu0 0.0
    %1667 = vmatprep.subr.mxu0 0.0
    %1668 = vmatpush2.msra.mxu0 0.0
    %1669 = vmatprep.subr.mxu0 0.0
    %1670 = vmatpush2.msra.mxu0 0.0
    %1671 = vmatprep.subr.mxu0 0.0
    %1672 = vmatpush2.msra.mxu0 0.0
    %1673 = vmatprep.subr.mxu0 0.0
    %1674 = vmatpush2.msra.mxu0 0.0
    %1675 = vmatprep.subr.mxu0 0.0
    %1676 = vmatpush2.msra.mxu0 0.0
    %1677 = vmatprep.subr.mxu0 0.0
    %1678 = vmatpush2.msra.mxu0 0.0
    %1679 = vmatprep.mubr.f32.mxu0 0.0
    %1680 = vmatmul.mubr.f32.gmra.mxu0 %v1613
    %v1681 = vpop.f32.mrf.mxu0
    %v1682 = vadd.f32 0.0, %v1681
    %v1683 = vpop.f32.mrf.mxu0
    %1684 = vdwg.mxu0
    %v1686 = vrot.slane %v1609, 5
    %1687 = vrot.lane.b32.xlu0 %v1686, 64
    %v1688 = vpop.permute.xlu0 %1687
    %v1689 = vsel %vm132, %v1688, 0
    %1691 = vmatprep.subr.mxu0 0.0
    %1692 = vmatpush1.msra.mxu0 0.0
    %1693 = vmatprep.subr.mxu0 0.0
    %1694 = vmatpush1.msra.mxu0 0.0
    %1695 = vmatprep.subr.mxu0 0.0
    %1696 = vmatpush1.msra.mxu0 0.0
    %1697 = vmatprep.subr.mxu0 0.0
    %1698 = vmatpush1.msra.mxu0 0.0
    %1699 = vmatprep.subr.mxu0 0.0
    %1700 = vmatpush1.msra.mxu0 0.0
    %1701 = vmatprep.subr.mxu0 0.0
    %1702 = vmatpush1.msra.mxu0 0.0
    %1703 = vmatprep.subr.mxu0 0.0
    %1704 = vmatpush1.msra.mxu0 0.0
    %1705 = vmatprep.subr.mxu0 0.0
    %1706 = vmatpush1.msra.mxu0 0.0
    %1707 = vmatprep.subr.mxu0 0.0
    %1708 = vmatpush1.msra.mxu0 0.0
    %1709 = vmatprep.subr.mxu0 0.0
    %1710 = vmatpush1.msra.mxu0 0.0
    %1711 = vmatprep.subr.mxu0 0.0
    %1712 = vmatpush1.msra.mxu0 0.0
    %1713 = vmatprep.subr.mxu0 0.0
    %1714 = vmatpush1.msra.mxu0 0.0
    %1715 = vmatprep.subr.mxu0 0.0
    %1716 = vmatpush1.msra.mxu0 %v25
    %1717 = vmatprep.subr.mxu0 0.0
    %1718 = vmatpush1.msra.mxu0 %v24
    %1719 = vmatprep.subr.mxu0 0.0
    %1720 = vmatpush1.msra.mxu0 %v23
    %1721 = vmatprep.subr.mxu0 0.0
    %1722 = vmatpush1.msra.mxu0 %v22
    %1723 = vmatprep.subr.mxu0 0.0
    %1724 = vmatpush2.msra.mxu0 0.0
    %1725 = vmatprep.subr.mxu0 0.0
    %1726 = vmatpush2.msra.mxu0 0.0
    %1727 = vmatprep.subr.mxu0 0.0
    %1728 = vmatpush2.msra.mxu0 0.0
    %1729 = vmatprep.subr.mxu0 0.0
    %1730 = vmatpush2.msra.mxu0 0.0
    %1731 = vmatprep.subr.mxu0 0.0
    %1732 = vmatpush2.msra.mxu0 0.0
    %1733 = vmatprep.subr.mxu0 0.0
    %1734 = vmatpush2.msra.mxu0 0.0
    %1735 = vmatprep.subr.mxu0 0.0
    %1736 = vmatpush2.msra.mxu0 0.0
    %1737 = vmatprep.subr.mxu0 0.0
    %1738 = vmatpush2.msra.mxu0 0.0
    %1739 = vmatprep.subr.mxu0 0.0
    %1740 = vmatpush2.msra.mxu0 0.0
    %1741 = vmatprep.subr.mxu0 0.0
    %1742 = vmatpush2.msra.mxu0 0.0
    %1743 = vmatprep.subr.mxu0 0.0
    %1744 = vmatpush2.msra.mxu0 0.0
    %1745 = vmatprep.subr.mxu0 0.0
    %1746 = vmatpush2.msra.mxu0 0.0
    %1747 = vmatprep.subr.mxu0 0.0
    %1748 = vmatpush2.msra.mxu0 0.0
    %1749 = vmatprep.subr.mxu0 0.0
    %1750 = vmatpush2.msra.mxu0 0.0
    %1751 = vmatprep.subr.mxu0 0.0
    %1752 = vmatpush2.msra.mxu0 0.0
    %1753 = vmatprep.subr.mxu0 0.0
    %1754 = vmatpush2.msra.mxu0 0.0
    %1755 = vmatprep.mubr.f32.mxu0 0.0
    %1756 = vmatmul.mubr.f32.gmra.mxu0 %v1689
    %v1757 = vpop.f32.mrf.mxu0
    %v1758 = vadd.f32 %v35, %v1757
    %v1759 = vpop.f32.mrf.mxu0
    %1760 = vdwg.mxu0
    %v1761 = vadd.f32 %v1758, %v1682
    %v1762 = vxor.u32 %v1761, 2147483648
    %v1763 = vmul.f32 %v1762, 1.442695
    %v1764 = vpow.pop %v1763
    %v1765 = vadd.f32 %v1764, 1.0
    %v1766 = vrcp.pop %v1765
    %v1767 = vmul.f32 1.0, %v1766
    %v1768 = vtanh.pop %v1761
    %v1769 = vmul.f32 %v1767, %v1502
    %1771 = vrot.lane.b32.xlu0 %v1768, 32
    %v1772 = vpop.permute.xlu0 %1771
    %v1774 = vmul.f32 %v1767, %v1772
    %1776 = vrot.lane.b32.xlu0 %v1774, 32
    %v1777 = vpop.permute.xlu0 %1776
    %v1779 = vadd.f32 %v1769, %v1777
    %v1780 = vtanh.pop %v1779
    %1782 = vrot.lane.b32.xlu0 %v1780, 32
    %v1783 = vpop.permute.xlu0 %1782
    %v1785 = vmul.f32 %v1767, %v1783
    %1786 = vmatprep.subr.mxu0 0.0
    %1787 = vmatpush1.msra.mxu0 0.0
    %1788 = vmatprep.subr.mxu0 0.0
    %1789 = vmatpush1.msra.mxu0 0.0
    %1790 = vmatprep.subr.mxu0 0.0
    %1791 = vmatpush1.msra.mxu0 0.0
    %1792 = vmatprep.subr.mxu0 0.0
    %1793 = vmatpush1.msra.mxu0 0.0
    %1794 = vmatprep.subr.mxu0 0.0
    %1795 = vmatpush1.msra.mxu0 0.0
    %1796 = vmatprep.subr.mxu0 0.0
    %1797 = vmatpush1.msra.mxu0 0.0
    %1798 = vmatprep.subr.mxu0 0.0
    %1799 = vmatpush1.msra.mxu0 0.0
    %1800 = vmatprep.subr.mxu0 0.0
    %1801 = vmatpush1.msra.mxu0 0.0
    %1802 = vmatprep.subr.mxu0 0.0
    %1803 = vmatpush1.msra.mxu0 0.0
    %1804 = vmatprep.subr.mxu0 0.0
    %1805 = vmatpush1.msra.mxu0 0.0
    %1806 = vmatprep.subr.mxu0 0.0
    %1807 = vmatpush1.msra.mxu0 0.0
    %1808 = vmatprep.subr.mxu0 0.0
    %1809 = vmatpush1.msra.mxu0 0.0
    %1810 = vmatprep.subr.mxu0 0.0
    %1811 = vmatpush1.msra.mxu0 %v29
    %1812 = vmatprep.subr.mxu0 0.0
    %1813 = vmatpush1.msra.mxu0 %v28
    %1814 = vmatprep.subr.mxu0 0.0
    %1815 = vmatpush1.msra.mxu0 %v27
    %1816 = vmatprep.subr.mxu0 0.0
    %1817 = vmatpush1.msra.mxu0 %v26
    %1818 = vmatprep.subr.mxu0 0.0
    %1819 = vmatpush2.msra.mxu0 0.0
    %1820 = vmatprep.subr.mxu0 0.0
    %1821 = vmatpush2.msra.mxu0 0.0
    %1822 = vmatprep.subr.mxu0 0.0
    %1823 = vmatpush2.msra.mxu0 0.0
    %1824 = vmatprep.subr.mxu0 0.0
    %1825 = vmatpush2.msra.mxu0 0.0
    %1826 = vmatprep.subr.mxu0 0.0
    %1827 = vmatpush2.msra.mxu0 0.0
    %1828 = vmatprep.subr.mxu0 0.0
    %1829 = vmatpush2.msra.mxu0 0.0
    %1830 = vmatprep.subr.mxu0 0.0
    %1831 = vmatpush2.msra.mxu0 0.0
    %1832 = vmatprep.subr.mxu0 0.0
    %1833 = vmatpush2.msra.mxu0 0.0
    %1834 = vmatprep.subr.mxu0 0.0
    %1835 = vmatpush2.msra.mxu0 0.0
    %1836 = vmatprep.subr.mxu0 0.0
    %1837 = vmatpush2.msra.mxu0 0.0
    %1838 = vmatprep.subr.mxu0 0.0
    %1839 = vmatpush2.msra.mxu0 0.0
    %1840 = vmatprep.subr.mxu0 0.0
    %1841 = vmatpush2.msra.mxu0 0.0
    %1842 = vmatprep.subr.mxu0 0.0
    %1843 = vmatpush2.msra.mxu0 0.0
    %1844 = vmatprep.subr.mxu0 0.0
    %1845 = vmatpush2.msra.mxu0 0.0
    %1846 = vmatprep.subr.mxu0 0.0
    %1847 = vmatpush2.msra.mxu0 0.0
    %1848 = vmatprep.subr.mxu0 0.0
    %1849 = vmatpush2.msra.mxu0 0.0
    %1850 = vmatprep.mubr.f32.mxu0 0.0
    %1851 = vmatmul.mubr.f32.gmra.mxu0 %v1689
    %v1852 = vpop.f32.mrf.mxu0
    %v1853 = vadd.f32 0.0, %v1852
    %v1854 = vpop.f32.mrf.mxu0
    %1855 = vdwg.mxu0
    %v1857 = vrot.slane %v1853, 2
    %v1859 = vadd.f32 %v129, %v1857
    %v1860 = vxor.u32 %v1859, 2147483648
    %v1861 = vmul.f32 %v1860, 1.442695
    %v1862 = vpow.pop %v1861
    %v1863 = vadd.f32 %v1862, 1.0
    %v1864 = vrcp.pop %v1863
    %v1865 = vmul.f32 1.0, %v1864
    %v1866 = vtanh.pop %v1859
    %v1868 = vrot.slane %v1603, 7
    %v1870 = vmul.f32 %v1865, %v1868
    %1872 = vrot.lane.b32.xlu0 %v1866, 32
    %v1873 = vpop.permute.xlu0 %1872
    %v1875 = vmul.f32 %v1865, %v1873
    %1877 = vrot.lane.b32.xlu0 %v1875, 32
    %v1878 = vpop.permute.xlu0 %1877
    %v1880 = vadd.f32 %v1870, %v1878
    %v1881 = vtanh.pop %v1880
    %1883 = vrot.lane.b32.xlu0 %v1881, 32
    %v1884 = vpop.permute.xlu0 %1883
    %v1886 = vmul.f32 %v1865, %v1884
    %1888 = vrot.lane.b32.xlu0 %v1785, 64
    %v1889 = vpop.permute.xlu0 %1888
    %v1890 = vsel %vm132, %v1889, 0
    %1892 = vmatprep.subr.mxu0 0.0
    %1893 = vmatpush1.msra.mxu0 0.0
    %1894 = vmatprep.subr.mxu0 0.0
    %1895 = vmatpush1.msra.mxu0 0.0
    %1896 = vmatprep.subr.mxu0 0.0
    %1897 = vmatpush1.msra.mxu0 0.0
    %1898 = vmatprep.subr.mxu0 0.0
    %1899 = vmatpush1.msra.mxu0 0.0
    %1900 = vmatprep.subr.mxu0 0.0
    %1901 = vmatpush1.msra.mxu0 0.0
    %1902 = vmatprep.subr.mxu0 0.0
    %1903 = vmatpush1.msra.mxu0 0.0
    %1904 = vmatprep.subr.mxu0 0.0
    %1905 = vmatpush1.msra.mxu0 0.0
    %1906 = vmatprep.subr.mxu0 0.0
    %1907 = vmatpush1.msra.mxu0 0.0
    %1908 = vmatprep.subr.mxu0 0.0
    %1909 = vmatpush1.msra.mxu0 0.0
    %1910 = vmatprep.subr.mxu0 0.0
    %1911 = vmatpush1.msra.mxu0 0.0
    %1912 = vmatprep.subr.mxu0 0.0
    %1913 = vmatpush1.msra.mxu0 0.0
    %1914 = vmatprep.subr.mxu0 0.0
    %1915 = vmatpush1.msra.mxu0 0.0
    %1916 = vmatprep.subr.mxu0 0.0
    %1917 = vmatpush1.msra.mxu0 %v33
    %1918 = vmatprep.subr.mxu0 0.0
    %1919 = vmatpush1.msra.mxu0 %v32
    %1920 = vmatprep.subr.mxu0 0.0
    %1921 = vmatpush1.msra.mxu0 %v31
    %1922 = vmatprep.subr.mxu0 0.0
    %1923 = vmatpush1.msra.mxu0 %v30
    %1924 = vmatprep.subr.mxu0 0.0
    %1925 = vmatpush2.msra.mxu0 0.0
    %1926 = vmatprep.subr.mxu0 0.0
    %1927 = vmatpush2.msra.mxu0 0.0
    %1928 = vmatprep.subr.mxu0 0.0
    %1929 = vmatpush2.msra.mxu0 0.0
    %1930 = vmatprep.subr.mxu0 0.0
    %1931 = vmatpush2.msra.mxu0 0.0
    %1932 = vmatprep.subr.mxu0 0.0
    %1933 = vmatpush2.msra.mxu0 0.0
    %1934 = vmatprep.subr.mxu0 0.0
    %1935 = vmatpush2.msra.mxu0 0.0
    %1936 = vmatprep.subr.mxu0 0.0
    %1937 = vmatpush2.msra.mxu0 0.0
    %1938 = vmatprep.subr.mxu0 0.0
    %1939 = vmatpush2.msra.mxu0 0.0
    %1940 = vmatprep.subr.mxu0 0.0
    %1941 = vmatpush2.msra.mxu0 0.0
    %1942 = vmatprep.subr.mxu0 0.0
    %1943 = vmatpush2.msra.mxu0 0.0
    %1944 = vmatprep.subr.mxu0 0.0
    %1945 = vmatpush2.msra.mxu0 0.0
    %1946 = vmatprep.subr.mxu0 0.0
    %1947 = vmatpush2.msra.mxu0 0.0
    %1948 = vmatprep.subr.mxu0 0.0
    %1949 = vmatpush2.msra.mxu0 0.0
    %1950 = vmatprep.subr.mxu0 0.0
    %1951 = vmatpush2.msra.mxu0 0.0
    %1952 = vmatprep.subr.mxu0 0.0
    %1953 = vmatpush2.msra.mxu0 0.0
    %1954 = vmatprep.subr.mxu0 0.0
    %1955 = vmatpush2.msra.mxu0 0.0
    %1956 = vmatprep.mubr.f32.mxu0 0.0
    %1957 = vmatmul.mubr.f32.gmra.mxu0 %v1890
    %v1958 = vpop.f32.mrf.mxu0
    %v1959 = vadd.f32 0.0, %v1958
    %v1960 = vpop.f32.mrf.mxu0
    %1961 = vdwg.mxu0
    %v1963 = vrot.slane %v1886, 6
    %1964 = vrot.lane.b32.xlu0 %v1963, 64
    %v1965 = vpop.permute.xlu0 %1964
    %v1966 = vsel %vm132, %v1965, 0
    %1968 = vmatprep.subr.mxu0 0.0
    %1969 = vmatpush1.msra.mxu0 0.0
    %1970 = vmatprep.subr.mxu0 0.0
    %1971 = vmatpush1.msra.mxu0 0.0
    %1972 = vmatprep.subr.mxu0 0.0
    %1973 = vmatpush1.msra.mxu0 0.0
    %1974 = vmatprep.subr.mxu0 0.0
    %1975 = vmatpush1.msra.mxu0 0.0
    %1976 = vmatprep.subr.mxu0 0.0
    %1977 = vmatpush1.msra.mxu0 0.0
    %1978 = vmatprep.subr.mxu0 0.0
    %1979 = vmatpush1.msra.mxu0 0.0
    %1980 = vmatprep.subr.mxu0 0.0
    %1981 = vmatpush1.msra.mxu0 0.0
    %1982 = vmatprep.subr.mxu0 0.0
    %1983 = vmatpush1.msra.mxu0 0.0
    %1984 = vmatprep.subr.mxu0 0.0
    %1985 = vmatpush1.msra.mxu0 0.0
    %1986 = vmatprep.subr.mxu0 0.0
    %1987 = vmatpush1.msra.mxu0 0.0
    %1988 = vmatprep.subr.mxu0 0.0
    %1989 = vmatpush1.msra.mxu0 0.0
    %1990 = vmatprep.subr.mxu0 0.0
    %1991 = vmatpush1.msra.mxu0 0.0
    %1992 = vmatprep.subr.mxu0 0.0
    %1993 = vmatpush1.msra.mxu0 %v25
    %1994 = vmatprep.subr.mxu0 0.0
    %1995 = vmatpush1.msra.mxu0 %v24
    %1996 = vmatprep.subr.mxu0 0.0
    %1997 = vmatpush1.msra.mxu0 %v23
    %1998 = vmatprep.subr.mxu0 0.0
    %1999 = vmatpush1.msra.mxu0 %v22
    %2000 = vmatprep.subr.mxu0 0.0
    %2001 = vmatpush2.msra.mxu0 0.0
    %2002 = vmatprep.subr.mxu0 0.0
    %2003 = vmatpush2.msra.mxu0 0.0
    %2004 = vmatprep.subr.mxu0 0.0
    %2005 = vmatpush2.msra.mxu0 0.0
    %2006 = vmatprep.subr.mxu0 0.0
    %2007 = vmatpush2.msra.mxu0 0.0
    %2008 = vmatprep.subr.mxu0 0.0
    %2009 = vmatpush2.msra.mxu0 0.0
    %2010 = vmatprep.subr.mxu0 0.0
    %2011 = vmatpush2.msra.mxu0 0.0
    %2012 = vmatprep.subr.mxu0 0.0
    %2013 = vmatpush2.msra.mxu0 0.0
    %2014 = vmatprep.subr.mxu0 0.0
    %2015 = vmatpush2.msra.mxu0 0.0
    %2016 = vmatprep.subr.mxu0 0.0
    %2017 = vmatpush2.msra.mxu0 0.0
    %2018 = vmatprep.subr.mxu0 0.0
    %2019 = vmatpush2.msra.mxu0 0.0
    %2020 = vmatprep.subr.mxu0 0.0
    %2021 = vmatpush2.msra.mxu0 0.0
    %2022 = vmatprep.subr.mxu0 0.0
    %2023 = vmatpush2.msra.mxu0 0.0
    %2024 = vmatprep.subr.mxu0 0.0
    %2025 = vmatpush2.msra.mxu0 0.0
    %2026 = vmatprep.subr.mxu0 0.0
    %2027 = vmatpush2.msra.mxu0 0.0
    %2028 = vmatprep.subr.mxu0 0.0
    %2029 = vmatpush2.msra.mxu0 0.0
    %2030 = vmatprep.subr.mxu0 0.0
    %2031 = vmatpush2.msra.mxu0 0.0
    %2032 = vmatprep.mubr.f32.mxu0 0.0
    %2033 = vmatmul.mubr.f32.gmra.mxu0 %v1966
    %v2034 = vpop.f32.mrf.mxu0
    %v2035 = vadd.f32 %v35, %v2034
    %v2036 = vpop.f32.mrf.mxu0
    %2037 = vdwg.mxu0
    %v2038 = vadd.f32 %v2035, %v1959
    %v2039 = vxor.u32 %v2038, 2147483648
    %v2040 = vmul.f32 %v2039, 1.442695
    %v2041 = vpow.pop %v2040
    %v2042 = vadd.f32 %v2041, 1.0
    %v2043 = vrcp.pop %v2042
    %v2044 = vmul.f32 1.0, %v2043
    %v2045 = vtanh.pop %v2038
    %v2046 = vmul.f32 %v2044, %v1779
    %2048 = vrot.lane.b32.xlu0 %v2045, 32
    %v2049 = vpop.permute.xlu0 %2048
    %v2051 = vmul.f32 %v2044, %v2049
    %2053 = vrot.lane.b32.xlu0 %v2051, 32
    %v2054 = vpop.permute.xlu0 %2053
    %v2056 = vadd.f32 %v2046, %v2054
    %v2057 = vtanh.pop %v2056
    %2059 = vrot.lane.b32.xlu0 %v2057, 32
    %v2060 = vpop.permute.xlu0 %2059
    %v2062 = vmul.f32 %v2044, %v2060
    %2063 = vmatprep.subr.mxu0 0.0
    %2064 = vmatpush1.msra.mxu0 0.0
    %2065 = vmatprep.subr.mxu0 0.0
    %2066 = vmatpush1.msra.mxu0 0.0
    %2067 = vmatprep.subr.mxu0 0.0
    %2068 = vmatpush1.msra.mxu0 0.0
    %2069 = vmatprep.subr.mxu0 0.0
    %2070 = vmatpush1.msra.mxu0 0.0
    %2071 = vmatprep.subr.mxu0 0.0
    %2072 = vmatpush1.msra.mxu0 0.0
    %2073 = vmatprep.subr.mxu0 0.0
    %2074 = vmatpush1.msra.mxu0 0.0
    %2075 = vmatprep.subr.mxu0 0.0
    %2076 = vmatpush1.msra.mxu0 0.0
    %2077 = vmatprep.subr.mxu0 0.0
    %2078 = vmatpush1.msra.mxu0 0.0
    %2079 = vmatprep.subr.mxu0 0.0
    %2080 = vmatpush1.msra.mxu0 0.0
    %2081 = vmatprep.subr.mxu0 0.0
    %2082 = vmatpush1.msra.mxu0 0.0
    %2083 = vmatprep.subr.mxu0 0.0
    %2084 = vmatpush1.msra.mxu0 0.0
    %2085 = vmatprep.subr.mxu0 0.0
    %2086 = vmatpush1.msra.mxu0 0.0
    %2087 = vmatprep.subr.mxu0 0.0
    %2088 = vmatpush1.msra.mxu0 %v29
    %2089 = vmatprep.subr.mxu0 0.0
    %2090 = vmatpush1.msra.mxu0 %v28
    %2091 = vmatprep.subr.mxu0 0.0
    %2092 = vmatpush1.msra.mxu0 %v27
    %2093 = vmatprep.subr.mxu0 0.0
    %2094 = vmatpush1.msra.mxu0 %v26
    %2095 = vmatprep.subr.mxu0 0.0
    %2096 = vmatpush2.msra.mxu0 0.0
    %2097 = vmatprep.subr.mxu0 0.0
    %2098 = vmatpush2.msra.mxu0 0.0
    %2099 = vmatprep.subr.mxu0 0.0
    %2100 = vmatpush2.msra.mxu0 0.0
    %2101 = vmatprep.subr.mxu0 0.0
    %2102 = vmatpush2.msra.mxu0 0.0
    %2103 = vmatprep.subr.mxu0 0.0
    %2104 = vmatpush2.msra.mxu0 0.0
    %2105 = vmatprep.subr.mxu0 0.0
    %2106 = vmatpush2.msra.mxu0 0.0
    %2107 = vmatprep.subr.mxu0 0.0
    %2108 = vmatpush2.msra.mxu0 0.0
    %2109 = vmatprep.subr.mxu0 0.0
    %2110 = vmatpush2.msra.mxu0 0.0
    %2111 = vmatprep.subr.mxu0 0.0
    %2112 = vmatpush2.msra.mxu0 0.0
    %2113 = vmatprep.subr.mxu0 0.0
    %2114 = vmatpush2.msra.mxu0 0.0
    %2115 = vmatprep.subr.mxu0 0.0
    %2116 = vmatpush2.msra.mxu0 0.0
    %2117 = vmatprep.subr.mxu0 0.0
    %2118 = vmatpush2.msra.mxu0 0.0
    %2119 = vmatprep.subr.mxu0 0.0
    %2120 = vmatpush2.msra.mxu0 0.0
    %2121 = vmatprep.subr.mxu0 0.0
    %2122 = vmatpush2.msra.mxu0 0.0
    %2123 = vmatprep.subr.mxu0 0.0
    %2124 = vmatpush2.msra.mxu0 0.0
    %2125 = vmatprep.subr.mxu0 0.0
    %2126 = vmatpush2.msra.mxu0 0.0
    %2127 = vmatprep.mubr.f32.mxu0 0.0
    %2128 = vmatmul.mubr.f32.gmra.mxu0 %v1966
    %v2129 = vpop.f32.mrf.mxu0
    %v2130 = vadd.f32 0.0, %v2129
    %v2131 = vpop.f32.mrf.mxu0
    %2132 = vdwg.mxu0
    %v2134 = vrot.slane %v2130, 1
    %v2136 = vadd.f32 %v129, %v2134
    %v2137 = vxor.u32 %v2136, 2147483648
    %v2138 = vmul.f32 %v2137, 1.442695
    %v2139 = vpow.pop %v2138
    %v2140 = vadd.f32 %v2139, 1.0
    %v2141 = vrcp.pop %v2140
    %v2142 = vmul.f32 1.0, %v2141
    %v2143 = vtanh.pop %v2136
    %v2145 = vrot.slane %v1880, 7
    %v2147 = vmul.f32 %v2142, %v2145
    %2149 = vrot.lane.b32.xlu0 %v2143, 32
    %v2150 = vpop.permute.xlu0 %2149
    %v2152 = vmul.f32 %v2142, %v2150
    %2154 = vrot.lane.b32.xlu0 %v2152, 32
    %v2155 = vpop.permute.xlu0 %2154
    %v2157 = vadd.f32 %v2147, %v2155
    %v2158 = vtanh.pop %v2157
    %2160 = vrot.lane.b32.xlu0 %v2158, 32
    %v2161 = vpop.permute.xlu0 %2160
    %v2163 = vmul.f32 %v2142, %v2161
    %2165 = vrot.lane.b32.xlu0 %v2062, 64
    %v2166 = vpop.permute.xlu0 %2165
    %v2167 = vsel %vm132, %v2166, 0
    %2169 = vmatprep.subr.mxu0 0.0
    %2170 = vmatpush1.msra.mxu0 0.0
    %2171 = vmatprep.subr.mxu0 0.0
    %2172 = vmatpush1.msra.mxu0 0.0
    %2173 = vmatprep.subr.mxu0 0.0
    %2174 = vmatpush1.msra.mxu0 0.0
    %2175 = vmatprep.subr.mxu0 0.0
    %2176 = vmatpush1.msra.mxu0 0.0
    %2177 = vmatprep.subr.mxu0 0.0
    %2178 = vmatpush1.msra.mxu0 0.0
    %2179 = vmatprep.subr.mxu0 0.0
    %2180 = vmatpush1.msra.mxu0 0.0
    %2181 = vmatprep.subr.mxu0 0.0
    %2182 = vmatpush1.msra.mxu0 0.0
    %2183 = vmatprep.subr.mxu0 0.0
    %2184 = vmatpush1.msra.mxu0 0.0
    %2185 = vmatprep.subr.mxu0 0.0
    %2186 = vmatpush1.msra.mxu0 0.0
    %2187 = vmatprep.subr.mxu0 0.0
    %2188 = vmatpush1.msra.mxu0 0.0
    %2189 = vmatprep.subr.mxu0 0.0
    %2190 = vmatpush1.msra.mxu0 0.0
    %2191 = vmatprep.subr.mxu0 0.0
    %2192 = vmatpush1.msra.mxu0 0.0
    %2193 = vmatprep.subr.mxu0 0.0
    %2194 = vmatpush1.msra.mxu0 %v33
    %2195 = vmatprep.subr.mxu0 0.0
    %2196 = vmatpush1.msra.mxu0 %v32
    %2197 = vmatprep.subr.mxu0 0.0
    %2198 = vmatpush1.msra.mxu0 %v31
    %2199 = vmatprep.subr.mxu0 0.0
    %2200 = vmatpush1.msra.mxu0 %v30
    %2201 = vmatprep.subr.mxu0 0.0
    %2202 = vmatpush2.msra.mxu0 0.0
    %2203 = vmatprep.subr.mxu0 0.0
    %2204 = vmatpush2.msra.mxu0 0.0
    %2205 = vmatprep.subr.mxu0 0.0
    %2206 = vmatpush2.msra.mxu0 0.0
    %2207 = vmatprep.subr.mxu0 0.0
    %2208 = vmatpush2.msra.mxu0 0.0
    %2209 = vmatprep.subr.mxu0 0.0
    %2210 = vmatpush2.msra.mxu0 0.0
    %2211 = vmatprep.subr.mxu0 0.0
    %2212 = vmatpush2.msra.mxu0 0.0
    %2213 = vmatprep.subr.mxu0 0.0
    %2214 = vmatpush2.msra.mxu0 0.0
    %2215 = vmatprep.subr.mxu0 0.0
    %2216 = vmatpush2.msra.mxu0 0.0
    %2217 = vmatprep.subr.mxu0 0.0
    %2218 = vmatpush2.msra.mxu0 0.0
    %2219 = vmatprep.subr.mxu0 0.0
    %2220 = vmatpush2.msra.mxu0 0.0
    %2221 = vmatprep.subr.mxu0 0.0
    %2222 = vmatpush2.msra.mxu0 0.0
    %2223 = vmatprep.subr.mxu0 0.0
    %2224 = vmatpush2.msra.mxu0 0.0
    %2225 = vmatprep.subr.mxu0 0.0
    %2226 = vmatpush2.msra.mxu0 0.0
    %2227 = vmatprep.subr.mxu0 0.0
    %2228 = vmatpush2.msra.mxu0 0.0
    %2229 = vmatprep.subr.mxu0 0.0
    %2230 = vmatpush2.msra.mxu0 0.0
    %2231 = vmatprep.subr.mxu0 0.0
    %2232 = vmatpush2.msra.mxu0 0.0
    %2233 = vmatprep.mubr.f32.mxu0 0.0
    %2234 = vmatmul.mubr.f32.gmra.mxu0 %v2167
    %v2235 = vpop.f32.mrf.mxu0
    %v2236 = vadd.f32 0.0, %v2235
    %v2237 = vpop.f32.mrf.mxu0
    %2238 = vdwg.mxu0
    %v2240 = vrot.slane %v2163, 7
    %2241 = vrot.lane.b32.xlu0 %v2240, 64
    %v2242 = vpop.permute.xlu0 %2241
    %v2243 = vsel %vm132, %v2242, 0
    %2245 = vmatprep.subr.mxu0 0.0
    %2246 = vmatpush1.msra.mxu0 0.0
    %2247 = vmatprep.subr.mxu0 0.0
    %2248 = vmatpush1.msra.mxu0 0.0
    %2249 = vmatprep.subr.mxu0 0.0
    %2250 = vmatpush1.msra.mxu0 0.0
    %2251 = vmatprep.subr.mxu0 0.0
    %2252 = vmatpush1.msra.mxu0 0.0
    %2253 = vmatprep.subr.mxu0 0.0
    %2254 = vmatpush1.msra.mxu0 0.0
    %2255 = vmatprep.subr.mxu0 0.0
    %2256 = vmatpush1.msra.mxu0 0.0
    %2257 = vmatprep.subr.mxu0 0.0
    %2258 = vmatpush1.msra.mxu0 0.0
    %2259 = vmatprep.subr.mxu0 0.0
    %2260 = vmatpush1.msra.mxu0 0.0
    %2261 = vmatprep.subr.mxu0 0.0
    %2262 = vmatpush1.msra.mxu0 0.0
    %2263 = vmatprep.subr.mxu0 0.0
    %2264 = vmatpush1.msra.mxu0 0.0
    %2265 = vmatprep.subr.mxu0 0.0
    %2266 = vmatpush1.msra.mxu0 0.0
    %2267 = vmatprep.subr.mxu0 0.0
    %2268 = vmatpush1.msra.mxu0 0.0
    %2269 = vmatprep.subr.mxu0 0.0
    %2270 = vmatpush1.msra.mxu0 %v25
    %2271 = vmatprep.subr.mxu0 0.0
    %2272 = vmatpush1.msra.mxu0 %v24
    %2273 = vmatprep.subr.mxu0 0.0
    %2274 = vmatpush1.msra.mxu0 %v23
    %2275 = vmatprep.subr.mxu0 0.0
    %2276 = vmatpush1.msra.mxu0 %v22
    %2277 = vmatprep.subr.mxu0 0.0
    %2278 = vmatpush2.msra.mxu0 0.0
    %2279 = vmatprep.subr.mxu0 0.0
    %2280 = vmatpush2.msra.mxu0 0.0
    %2281 = vmatprep.subr.mxu0 0.0
    %2282 = vmatpush2.msra.mxu0 0.0
    %2283 = vmatprep.subr.mxu0 0.0
    %2284 = vmatpush2.msra.mxu0 0.0
    %2285 = vmatprep.subr.mxu0 0.0
    %2286 = vmatpush2.msra.mxu0 0.0
    %2287 = vmatprep.subr.mxu0 0.0
    %2288 = vmatpush2.msra.mxu0 0.0
    %2289 = vmatprep.subr.mxu0 0.0
    %2290 = vmatpush2.msra.mxu0 0.0
    %2291 = vmatprep.subr.mxu0 0.0
    %2292 = vmatpush2.msra.mxu0 0.0
    %2293 = vmatprep.subr.mxu0 0.0
    %2294 = vmatpush2.msra.mxu0 0.0
    %2295 = vmatprep.subr.mxu0 0.0
    %2296 = vmatpush2.msra.mxu0 0.0
    %2297 = vmatprep.subr.mxu0 0.0
    %2298 = vmatpush2.msra.mxu0 0.0
    %2299 = vmatprep.subr.mxu0 0.0
    %2300 = vmatpush2.msra.mxu0 0.0
    %2301 = vmatprep.subr.mxu0 0.0
    %2302 = vmatpush2.msra.mxu0 0.0
    %2303 = vmatprep.subr.mxu0 0.0
    %2304 = vmatpush2.msra.mxu0 0.0
    %2305 = vmatprep.subr.mxu0 0.0
    %2306 = vmatpush2.msra.mxu0 0.0
    %2307 = vmatprep.subr.mxu0 0.0
    %2308 = vmatpush2.msra.mxu0 0.0
    %2309 = vmatprep.mubr.f32.mxu0 0.0
    %2310 = vmatmul.mubr.f32.gmra.mxu0 %v2243
    %v2311 = vpop.f32.mrf.mxu0
    %v2312 = vadd.f32 %v35, %v2311
    %v2313 = vpop.f32.mrf.mxu0
    %2314 = vdwg.mxu0
    %v2315 = vadd.f32 %v2312, %v2236
    %v2316 = vxor.u32 %v2315, 2147483648
    %v2317 = vmul.f32 %v2316, 1.442695
    %v2318 = vpow.pop %v2317
    %v2319 = vadd.f32 %v2318, 1.0
    %v2320 = vrcp.pop %v2319
    %v2321 = vmul.f32 1.0, %v2320
    %v2322 = vtanh.pop %v2315
    %v2323 = vmul.f32 %v2321, %v2056
    %2325 = vrot.lane.b32.xlu0 %v2322, 32
    %v2326 = vpop.permute.xlu0 %2325
    %v2328 = vmul.f32 %v2321, %v2326
    %2330 = vrot.lane.b32.xlu0 %v2328, 32
    %v2331 = vpop.permute.xlu0 %2330
    %v2333 = vadd.f32 %v2323, %v2331
    %v2334 = vtanh.pop %v2333
    %2336 = vrot.lane.b32.xlu0 %v2334, 32
    %v2337 = vpop.permute.xlu0 %2336
    %v2339 = vmul.f32 %v2321, %v2337
    %2341 = vrot.lane.b32.xlu0 %v2339, 64
    %v2342 = vpop.permute.xlu0 %2341
    %v2343 = vsel %vm132, %v2342, 0
    %2345 = vmatprep.subr.mxu0 0.0
    %2346 = vmatpush1.msra.mxu0 0.0
    %2347 = vmatprep.subr.mxu0 0.0
    %2348 = vmatpush1.msra.mxu0 0.0
    %2349 = vmatprep.subr.mxu0 0.0
    %2350 = vmatpush1.msra.mxu0 0.0
    %2351 = vmatprep.subr.mxu0 0.0
    %2352 = vmatpush1.msra.mxu0 0.0
    %2353 = vmatprep.subr.mxu0 0.0
    %2354 = vmatpush1.msra.mxu0 0.0
    %2355 = vmatprep.subr.mxu0 0.0
    %2356 = vmatpush1.msra.mxu0 0.0
    %2357 = vmatprep.subr.mxu0 0.0
    %2358 = vmatpush1.msra.mxu0 0.0
    %2359 = vmatprep.subr.mxu0 0.0
    %2360 = vmatpush1.msra.mxu0 0.0
    %2361 = vmatprep.subr.mxu0 0.0
    %2362 = vmatpush1.msra.mxu0 0.0
    %2363 = vmatprep.subr.mxu0 0.0
    %2364 = vmatpush1.msra.mxu0 0.0
    %2365 = vmatprep.subr.mxu0 0.0
    %2366 = vmatpush1.msra.mxu0 0.0
    %2367 = vmatprep.subr.mxu0 0.0
    %2368 = vmatpush1.msra.mxu0 0.0
    %2369 = vmatprep.subr.mxu0 0.0
    %2370 = vmatpush1.msra.mxu0 %v39
    %2371 = vmatprep.subr.mxu0 0.0
    %2372 = vmatpush1.msra.mxu0 %v38
    %2373 = vmatprep.subr.mxu0 0.0
    %2374 = vmatpush1.msra.mxu0 %v37
    %2375 = vmatprep.subr.mxu0 0.0
    %2376 = vmatpush1.msra.mxu0 %v36
    %2377 = vmatprep.subr.mxu0 0.0
    %2378 = vmatpush2.msra.mxu0 0.0
    %2379 = vmatprep.subr.mxu0 0.0
    %2380 = vmatpush2.msra.mxu0 0.0
    %2381 = vmatprep.subr.mxu0 0.0
    %2382 = vmatpush2.msra.mxu0 0.0
    %2383 = vmatprep.subr.mxu0 0.0
    %2384 = vmatpush2.msra.mxu0 0.0
    %2385 = vmatprep.subr.mxu0 0.0
    %2386 = vmatpush2.msra.mxu0 0.0
    %2387 = vmatprep.subr.mxu0 0.0
    %2388 = vmatpush2.msra.mxu0 0.0
    %2389 = vmatprep.subr.mxu0 0.0
    %2390 = vmatpush2.msra.mxu0 0.0
    %2391 = vmatprep.subr.mxu0 0.0
    %2392 = vmatpush2.msra.mxu0 0.0
    %2393 = vmatprep.subr.mxu0 0.0
    %2394 = vmatpush2.msra.mxu0 0.0
    %2395 = vmatprep.subr.mxu0 0.0
    %2396 = vmatpush2.msra.mxu0 0.0
    %2397 = vmatprep.subr.mxu0 0.0
    %2398 = vmatpush2.msra.mxu0 0.0
    %2399 = vmatprep.subr.mxu0 0.0
    %2400 = vmatpush2.msra.mxu0 0.0
    %2401 = vmatprep.subr.mxu0 0.0
    %2402 = vmatpush2.msra.mxu0 0.0
    %2403 = vmatprep.subr.mxu0 0.0
    %2404 = vmatpush2.msra.mxu0 0.0
    %2405 = vmatprep.subr.mxu0 0.0
    %2406 = vmatpush2.msra.mxu0 0.0
    %2407 = vmatprep.subr.mxu0 0.0
    %2408 = vmatpush2.msra.mxu0 0.0
    %2409 = vmatprep.mubr.f32.mxu0 0.0
    %2410 = vmatmul.mubr.f32.gmra.mxu0 %v2343
    %v2411 = vpop.f32.mrf.mxu0
    %v2412 = vadd.f32 %v41, %v2411
    %v2413 = vpop.f32.mrf.mxu0
    %2414 = vdwg.mxu0
    %v2415 = vld [vmem:[%s2] sm:$0xff]
    %v2416 = vlaneseq
    %v2417 = vshrl.u32 %v2416, 7
    %v2418 = vsub.s32 0, %v2417
    %v2419 = vrot.slane %v2412, %v2418
    %v2421 = vsel %vm54, %v2415, 0
    %v2424 = vsel %vm58, %v40, 0
    %2426 = vmatprep.subr.mxu0 0.0
    %2427 = vmatpush1.msra.mxu0 0.0
    %2428 = vmatprep.subr.mxu0 0.0
    %2429 = vmatpush1.msra.mxu0 0.0
    %2430 = vmatprep.subr.mxu0 0.0
    %2431 = vmatpush1.msra.mxu0 0.0
    %2432 = vmatprep.subr.mxu0 0.0
    %2433 = vmatpush1.msra.mxu0 0.0
    %2434 = vmatprep.subr.mxu0 0.0
    %2435 = vmatpush1.msra.mxu0 0.0
    %2436 = vmatprep.subr.mxu0 0.0
    %2437 = vmatpush1.msra.mxu0 0.0
    %2438 = vmatprep.subr.mxu0 0.0
    %2439 = vmatpush1.msra.mxu0 0.0
    %2440 = vmatprep.subr.mxu0 0.0
    %2441 = vmatpush1.msra.mxu0 0.0
    %2442 = vmatprep.subr.mxu0 0.0
    %2443 = vmatpush1.msra.mxu0 0.0
    %2444 = vmatprep.subr.mxu0 0.0
    %2445 = vmatpush1.msra.mxu0 0.0
    %2446 = vmatprep.subr.mxu0 0.0
    %2447 = vmatpush1.msra.mxu0 0.0
    %2448 = vmatprep.subr.mxu0 0.0
    %2449 = vmatpush1.msra.mxu0 0.0
    %2450 = vmatprep.subr.mxu0 0.0
    %2451 = vmatpush1.msra.mxu0 0.0
    %2452 = vmatprep.subr.mxu0 0.0
    %2453 = vmatpush1.msra.mxu0 0.0
    %2454 = vmatprep.subr.mxu0 0.0
    %2455 = vmatpush1.msra.mxu0 0.0
    %2456 = vmatprep.subr.mxu0 0.0
    %2457 = vmatpush1.msra.mxu0 %v2424
    %2458 = vmatprep.subr.mxu0 0.0
    %2459 = vmatpush2.msra.mxu0 0.0
    %2460 = vmatprep.subr.mxu0 0.0
    %2461 = vmatpush2.msra.mxu0 0.0
    %2462 = vmatprep.subr.mxu0 0.0
    %2463 = vmatpush2.msra.mxu0 0.0
    %2464 = vmatprep.subr.mxu0 0.0
    %2465 = vmatpush2.msra.mxu0 0.0
    %2466 = vmatprep.subr.mxu0 0.0
    %2467 = vmatpush2.msra.mxu0 0.0
    %2468 = vmatprep.subr.mxu0 0.0
    %2469 = vmatpush2.msra.mxu0 0.0
    %2470 = vmatprep.subr.mxu0 0.0
    %2471 = vmatpush2.msra.mxu0 0.0
    %2472 = vmatprep.subr.mxu0 0.0
    %2473 = vmatpush2.msra.mxu0 0.0
    %2474 = vmatprep.subr.mxu0 0.0
    %2475 = vmatpush2.msra.mxu0 0.0
    %2476 = vmatprep.subr.mxu0 0.0
    %2477 = vmatpush2.msra.mxu0 0.0
    %2478 = vmatprep.subr.mxu0 0.0
    %2479 = vmatpush2.msra.mxu0 0.0
    %2480 = vmatprep.subr.mxu0 0.0
    %2481 = vmatpush2.msra.mxu0 0.0
    %2482 = vmatprep.subr.mxu0 0.0
    %2483 = vmatpush2.msra.mxu0 0.0
    %2484 = vmatprep.subr.mxu0 0.0
    %2485 = vmatpush2.msra.mxu0 0.0
    %2486 = vmatprep.subr.mxu0 0.0
    %2487 = vmatpush2.msra.mxu0 0.0
    %2488 = vmatprep.subr.mxu0 0.0
    %2489 = vmatpush2.msra.mxu0 0.0
    %2490 = vmatprep.mubr.f32.mxu0 0.0
    %2491 = vmatmul.mubr.f32.gmra.mxu0 %v2421
    %v2492 = vpop.f32.mrf.mxu0
    %v2493 = vadd.f32 %v2419, %v2492
    %v2494 = vpop.f32.mrf.mxu0
    %2495 = vdwg.mxu0
    %v2496 = vmax.f32 %v2493, 0.0
    %v2497 = vlaneseq
    %v2498 = vshrl.u32 %v2497, 7
    %v2499 = vsub.s32 0, %v2498
    %v2500 = vrot.slane %v46, %v2499
    %v2502 = vsel %vm132, %v2496, 0
    %2504 = vmatprep.subr.mxu0 0.0
    %2505 = vmatpush1.msra.mxu0 0.0
    %2506 = vmatprep.subr.mxu0 0.0
    %2507 = vmatpush1.msra.mxu0 0.0
    %2508 = vmatprep.subr.mxu0 0.0
    %2509 = vmatpush1.msra.mxu0 0.0
    %2510 = vmatprep.subr.mxu0 0.0
    %2511 = vmatpush1.msra.mxu0 0.0
    %2512 = vmatprep.subr.mxu0 0.0
    %2513 = vmatpush1.msra.mxu0 0.0
    %2514 = vmatprep.subr.mxu0 0.0
    %2515 = vmatpush1.msra.mxu0 0.0
    %2516 = vmatprep.subr.mxu0 0.0
    %2517 = vmatpush1.msra.mxu0 0.0
    %2518 = vmatprep.subr.mxu0 0.0
    %2519 = vmatpush1.msra.mxu0 0.0
    %2520 = vmatprep.subr.mxu0 0.0
    %2521 = vmatpush1.msra.mxu0 0.0
    %2522 = vmatprep.subr.mxu0 0.0
    %2523 = vmatpush1.msra.mxu0 0.0
    %2524 = vmatprep.subr.mxu0 0.0
    %2525 = vmatpush1.msra.mxu0 0.0
    %2526 = vmatprep.subr.mxu0 0.0
    %2527 = vmatpush1.msra.mxu0 0.0
    %2528 = vmatprep.subr.mxu0 0.0
    %2529 = vmatpush1.msra.mxu0 %v45
    %2530 = vmatprep.subr.mxu0 0.0
    %2531 = vmatpush1.msra.mxu0 %v44
    %2532 = vmatprep.subr.mxu0 0.0
    %2533 = vmatpush1.msra.mxu0 %v43
    %2534 = vmatprep.subr.mxu0 0.0
    %2535 = vmatpush1.msra.mxu0 %v42
    %2536 = vmatprep.subr.mxu0 0.0
    %2537 = vmatpush2.msra.mxu0 0.0
    %2538 = vmatprep.subr.mxu0 0.0
    %2539 = vmatpush2.msra.mxu0 0.0
    %2540 = vmatprep.subr.mxu0 0.0
    %2541 = vmatpush2.msra.mxu0 0.0
    %2542 = vmatprep.subr.mxu0 0.0
    %2543 = vmatpush2.msra.mxu0 0.0
    %2544 = vmatprep.subr.mxu0 0.0
    %2545 = vmatpush2.msra.mxu0 0.0
    %2546 = vmatprep.subr.mxu0 0.0
    %2547 = vmatpush2.msra.mxu0 0.0
    %2548 = vmatprep.subr.mxu0 0.0
    %2549 = vmatpush2.msra.mxu0 0.0
    %2550 = vmatprep.subr.mxu0 0.0
    %2551 = vmatpush2.msra.mxu0 0.0
    %2552 = vmatprep.subr.mxu0 0.0
    %2553 = vmatpush2.msra.mxu0 0.0
    %2554 = vmatprep.subr.mxu0 0.0
    %2555 = vmatpush2.msra.mxu0 0.0
    %2556 = vmatprep.subr.mxu0 0.0
    %2557 = vmatpush2.msra.mxu0 0.0
    %2558 = vmatprep.subr.mxu0 0.0
    %2559 = vmatpush2.msra.mxu0 0.0
    %2560 = vmatprep.subr.mxu0 0.0
    %2561 = vmatpush2.msra.mxu0 0.0
    %2562 = vmatprep.subr.mxu0 0.0
    %2563 = vmatpush2.msra.mxu0 0.0
    %2564 = vmatprep.subr.mxu0 0.0
    %2565 = vmatpush2.msra.mxu0 0.0
    %2566 = vmatprep.subr.mxu0 0.0
    %2567 = vmatpush2.msra.mxu0 0.0
    %2568 = vmatprep.mubr.f32.mxu0 0.0
    %2569 = vmatmul.mubr.f32.gmra.mxu0 %v2502
    %v2570 = vpop.f32.mrf.mxu0
    %v2571 = vadd.f32 %v2500, %v2570
    %v2572 = vpop.f32.mrf.mxu0
    %2573 = vdwg.mxu0
    %v2574 = vmax.f32 %v2571, 0.0
    %2576 = vset.pattern.permute.xlu0 0
    %2577 = vperm.xlu0 %2576, %v48
    %v2578 = vpop.permute.xlu0 %2577
    %v2581 = vsel %vm132, %v47, 0
    %v2584 = vsel %vm132, %v2574, 0
    %2586 = vmatprep.subr.mxu0 0.0
    %2587 = vmatpush1.xpose.msra.mxu0 0.0
    %2588 = vmatprep.subr.mxu0 0.0
    %2589 = vmatpush1.xpose.msra.mxu0 0.0
    %2590 = vmatprep.subr.mxu0 0.0
    %2591 = vmatpush1.xpose.msra.mxu0 0.0
    %2592 = vmatprep.subr.mxu0 0.0
    %2593 = vmatpush1.xpose.msra.mxu0 0.0
    %2594 = vmatprep.subr.mxu0 0.0
    %2595 = vmatpush1.xpose.msra.mxu0 0.0
    %2596 = vmatprep.subr.mxu0 0.0
    %2597 = vmatpush1.xpose.msra.mxu0 0.0
    %2598 = vmatprep.subr.mxu0 0.0
    %2599 = vmatpush1.xpose.msra.mxu0 0.0
    %2600 = vmatprep.subr.mxu0 0.0
    %2601 = vmatpush1.xpose.msra.mxu0 0.0
    %2602 = vmatprep.subr.mxu0 0.0
    %2603 = vmatpush1.xpose.msra.mxu0 0.0
    %2604 = vmatprep.subr.mxu0 0.0
    %2605 = vmatpush1.xpose.msra.mxu0 0.0
    %2606 = vmatprep.subr.mxu0 0.0
    %2607 = vmatpush1.xpose.msra.mxu0 0.0
    %2608 = vmatprep.subr.mxu0 0.0
    %2609 = vmatpush1.xpose.msra.mxu0 0.0
    %2610 = vmatprep.subr.mxu0 0.0
    %2611 = vmatpush1.xpose.msra.mxu0 0.0
    %2612 = vmatprep.subr.mxu0 0.0
    %2613 = vmatpush1.xpose.msra.mxu0 0.0
    %2614 = vmatprep.subr.mxu0 0.0
    %2615 = vmatpush1.xpose.msra.mxu0 0.0
    %2616 = vmatprep.subr.mxu0 0.0
    %2617 = vmatpush1.xpose.msra.mxu0 %v2584
    %2618 = vmatprep.subr.mxu0 0.0
    %2619 = vmatpush2.xpose.msra.mxu0 0.0
    %2620 = vmatprep.subr.mxu0 0.0
    %2621 = vmatpush2.xpose.msra.mxu0 0.0
    %2622 = vmatprep.subr.mxu0 0.0
    %2623 = vmatpush2.xpose.msra.mxu0 0.0
    %2624 = vmatprep.subr.mxu0 0.0
    %2625 = vmatpush2.xpose.msra.mxu0 0.0
    %2626 = vmatprep.subr.mxu0 0.0
    %2627 = vmatpush2.xpose.msra.mxu0 0.0
    %2628 = vmatprep.subr.mxu0 0.0
    %2629 = vmatpush2.xpose.msra.mxu0 0.0
    %2630 = vmatprep.subr.mxu0 0.0
    %2631 = vmatpush2.xpose.msra.mxu0 0.0
    %2632 = vmatprep.subr.mxu0 0.0
    %2633 = vmatpush2.xpose.msra.mxu0 0.0
    %2634 = vmatprep.subr.mxu0 0.0
    %2635 = vmatpush2.xpose.msra.mxu0 0.0
    %2636 = vmatprep.subr.mxu0 0.0
    %2637 = vmatpush2.xpose.msra.mxu0 0.0
    %2638 = vmatprep.subr.mxu0 0.0
    %2639 = vmatpush2.xpose.msra.mxu0 0.0
    %2640 = vmatprep.subr.mxu0 0.0
    %2641 = vmatpush2.xpose.msra.mxu0 0.0
    %2642 = vmatprep.subr.mxu0 0.0
    %2643 = vmatpush2.xpose.msra.mxu0 0.0
    %2644 = vmatprep.subr.mxu0 0.0
    %2645 = vmatpush2.xpose.msra.mxu0 0.0
    %2646 = vmatprep.subr.mxu0 0.0
    %2647 = vmatpush2.xpose.msra.mxu0 0.0
    %2648 = vmatprep.subr.mxu0 0.0
    %2649 = vmatpush2.xpose.msra.mxu0 0.0
    %2650 = vmatprep.mubr.f32.mxu0 0.0
    %2651 = vmatmul.mubr.f32.gmra.mxu0 %v2581
    %v2652 = vpop.f32.mrf.mxu0
    %v2653 = vadd.f32 %v2578, %v2652
    %v2654 = vpop.f32.mrf.mxu0
    %2655 = vdwg.mxu0
    %v2656 = vld [vmem:[%s1] sm:$0x1]
    %v2657 = vmul.f32 %v2656, %v2653
    %vm2658 = vcmask 57344
    %2659 = vst.msk [vmem:[#allocation2] sm:$0x1] %vm2658, %v2657
    // Predicated region
    $region22: #{tpu_custom_call.1} parent=1 // pred_check
      _
    $region23: #{tpu_custom_call.1} parent=1 // pred_check_branch
      %2661 = sbr.rel (0) target = $region25
    $region24: #{tpu_custom_call.1} parent=1 // pred_region
      %s2663 = ssub.s32 16, 16
      %2664 = vsyncadd [#allocation3], %s2663
      %s2666 = sshll.u32 [#allocation2], 4
      %s2667 = int_to_ptr.vmem [resolvable:$true] %s2666
      %2669 = dma.vmem_to_hbm [thread:$0]  %s2667, 16, %s5, [#allocation3]
    $region25: #{tpu_custom_call.1} parent=1 // pred_fallthru
      _
    // Predicated region
    $region26: #{tpu_custom_call.1} parent=1 // pred_check
      _
    $region27: #{tpu_custom_call.1} parent=1 // pred_check_branch
      %2671 = sbr.rel (0) target = $region29
    $region28: #{tpu_custom_call.1} parent=1 // pred_region
      %2672 = dma.done [#allocation3], 16
    $region29: #{tpu_custom_call.1} parent=1 // pred_fallthru
      _
    %2673 = vsyncpa [#allocation3], 1

</llo_original>
